<compile_context>
chip_gen: v7x
topology: tpu7x:2x2x1
jax: 0.10.0
libtpu: 0.0.40
codegen_flags: <defaults>
</compile_context>

<pallas_src>
import functools

import jax
import jax.numpy as jnp
import numpy as np
from jax import lax
from jax.experimental import pallas as pl
from jax.experimental.pallas import tpu as pltpu


def _spatial_gate_kernel(w_ref, x_ref, row_ref, col_ref, o_ref, *, H, W, K):
    """One grid step: `bb` batch elements, full C and (padded) flat spatial axis.

    w_ref   : SMEM (2*K*K,) f32 -- conv taps, [channel 0 = max-pool | channel 1 = mean-pool]
    x_ref   : VMEM (bb, C, HWp) f32
    row_ref : VMEM (1, HWp) f32 -- row index of each flat spatial position
    col_ref : VMEM (1, HWp) f32 -- col index of each flat spatial position
    o_ref   : VMEM (bb, C, HWp) f32
    """
    xb = x_ref[...]                                   # (bb, C, HWp)
    C = xb.shape[1]

    # --- channel pooling: torch.cat((max, mean), dim=1) -------------------
    maxp = jnp.max(xb, axis=1)                        # (bb, HWp)
    avgp = jnp.sum(xb, axis=1) * (1.0 / C)            # (bb, HWp)

    row = row_ref[...]                                # (1, HWp)
    col = col_ref[...]                                # (1, HWp)

    pad = (K - 1) // 2
    KK = K * K

    # --- K x K "same" conv (zero padding, no bias), unrolled as
    #     static lane shift + boundary mask + scalar FMA per tap ------------
    acc = jnp.zeros_like(maxp)                        # (bb, HWp) f32
    for dy in range(K):
        for dx in range(K):
            dyo = dy - pad
            dxo = dx - pad
            s = dyo * W + dxo                         # flat source = output + s
            if s == 0:
                sh_max, sh_avg = maxp, avgp
            else:
                # shifted[i] = pooled[(i + s) mod HWp]; wrap-around values are
                # masked off below, so only true in-bounds sources contribute.
                sh_max = jnp.roll(maxp, -s, axis=-1)
                sh_avg = jnp.roll(avgp, -s, axis=-1)
            # zero-padding of the conv: source (row+dyo, col+dxo) must be in-bounds
            valid = ((row + dyo >= 0.0) & (row + dyo <= float(H - 1)) &
                     (col + dxo >= 0.0) & (col + dxo <= float(W - 1)))
            w_max = w_ref[dy * K + dx]                # scalar from SMEM
            w_avg = w_ref[KK + dy * K + dx]
            acc = acc + jnp.where(valid, w_max * sh_max + w_avg * sh_avg, 0.0)

    # norm == 'sigmoid'
    scale = jax.nn.sigmoid(acc)                       # (bb, HWp)

    # broadcast the spatial attention map over channels
    o_ref[...] = xb * scale[:, None, :]


def _choose_block_batch(B, C, HWp, itemsize=4, vmem_budget_bytes=12 << 20):
    """Pick batch elements per grid step.

    Budget = 2 pipeline buffers x (input block + output block) = 4 * bb*C*HWp*itemsize.
    12 MiB fits comfortably under the default scoped VMEM on v5e (16 MiB) and
    v6e/v7x (32 MiB); raise vmem_limit_bytes for larger blocks on v5e/v6e if B
    is large.  Keep >= 2 grid steps when possible so v7x's two TensorCores are
    both used via dimension_semantics=("parallel",).
    """
    per_elem = C * HWp * itemsize
    max_bb = max(1, vmem_budget_bytes // (4 * per_elem))
    bb = min(B, max_bb)
    while bb > 1 and (B % bb != 0 or (B // bb) < 2):
        bb -= 1
    if B % bb != 0:
        bb = 1
    return bb


def spatial_gate(x, w):
    """SpatialGate forward (norm='sigmoid', seperate='none').

    x: (B, C, H, W) f32.  w: (1, 2, K, K) f32 torch Conv2d weight (bias=False).
    """
    B, C, H, W = x.shape
    K = w.shape[-1]
    assert w.shape == (1, 2, K, K)

    HW = H * W
    # Lane-dense spatial axis: round up to a multiple of 128 so stores are
    # unmasked.  (For the demo H*W = 256 already, so no extra copy is made.)
    HWp = ((HW + 127) // 128) * 128

    x_flat = x.reshape(B, C, HW)                      # free bitcast
    if HWp != HW:
        x_flat = jnp.pad(x_flat, ((0, 0), (0, 0), (0, HWp - HW)))

    bb = _choose_block_batch(B, C, HWp, itemsize=x.dtype.itemsize)
    grid = (B // bb,)

    # Conv weights flattened for SMEM: [max-channel taps | mean-channel taps].
    w_flat = w.reshape(2 * K * K).astype(jnp.float32)

    # Precompute flat-position row/col indices on the host (avoids integer
    # div/mod on the VPU); f32 is exact for these magnitudes.
    pos = np.arange(HWp)
    row_idx = jnp.asarray((pos // W).astype(np.float32)).reshape(1, HWp)
    col_idx = jnp.asarray((pos % W).astype(np.float32)).reshape(1, HWp)

    kernel = functools.partial(_spatial_gate_kernel, H=H, W=W, K=K)

    out = pl.pallas_call(
        kernel,
        out_shape=jax.ShapeDtypeStruct((B, C, HWp), x.dtype),
        grid_spec=pltpu.PrefetchScalarGridSpec(
            num_scalar_prefetch=0,
            grid=grid,
            in_specs=[
                pl.BlockSpec(memory_space=pltpu.MemorySpace.SMEM),   # conv weights
                pl.BlockSpec((bb, C, HWp), lambda b: (b, 0, 0)),     # x block
                pl.BlockSpec((1, HWp), lambda b: (0, 0)),            # row indices
                pl.BlockSpec((1, HWp), lambda b: (0, 0)),            # col indices
            ],
            out_specs=pl.BlockSpec((bb, C, HWp), lambda b: (b, 0, 0)),
        ),
        compiler_params=pltpu.CompilerParams(
            dimension_semantics=("parallel",)),
    )(w_flat, x_flat, row_idx, col_idx)

    if HWp != HW:
        out = out[:, :, :HW]
    return out.reshape(B, C, H, W)


def spatial_gate_ref(x, w):
    """Pure-JAX reference mirroring the PyTorch forward (seperate='none', sigmoid)."""
    maxp = jnp.max(x, axis=1, keepdims=True)
    avgp = jnp.mean(x, axis=1, keepdims=True)
    comp = jnp.concatenate([maxp, avgp], axis=1)              # (B, 2, H, W)
    att = lax.conv_general_dilated(
        comp, w, window_strides=(1, 1), padding="SAME",
        dimension_numbers=("NCHW", "OIHW", "NCHW"),
        precision=lax.Precision.HIGHEST)
    return x * jax.nn.sigmoid(att)


if __name__ == "__main__":
    # SpatialGate(kernel_size=7, norm='sigmoid', seperate='none')
    B, C, H, W = 2, 32, 16, 16
    K = 7

    key = jax.random.PRNGKey(0)
    kx, kw = jax.random.split(key)

    x = jax.random.normal(kx, (B, C, H, W), dtype=jnp.float32)
    # torch Conv2d(2, 1, K, bias=False) weight, shape (out=1, in=2, K, K)
    lim = 1.0 / np.sqrt(2 * K * K)
    w = jax.random.uniform(kw, (1, 2, K, K), jnp.float32, -lim, lim)

    out = spatial_gate(x, w)
    out = jax.block_until_ready(out)

    ref = spatial_gate_ref(x, w)
    np.testing.assert_allclose(np.asarray(out), np.asarray(ref), rtol=1e-5, atol=1e-5)

    print("KERNEL_OK")
</pallas_src>

<mosaic_0001>
module attributes {stable_mosaic.version = 11 : i64} {
  func.func @_spatial_gate_kernel(%arg0: i32, %arg1: memref<98xf32, #tpu.memory_space<smem>>, %arg2: memref<1x32x256xf32, #tpu.memory_space<vmem>>, %arg3: memref<1x256xf32, #tpu.memory_space<vmem>>, %arg4: memref<1x256xf32, #tpu.memory_space<vmem>>, %arg5: memref<1x32x256xf32, #tpu.memory_space<vmem>>) attributes {dimension_semantics = [#tpu.dimension_semantics<parallel>], iteration_bounds = array<i64: 2>, scalar_prefetch = 0 : i64, scratch_operands = 0 : i64, tpu.core_type = #tpu.core_type<tc>, window_params = [{transform_indices = @transform_0, window_bounds = array<i64: 98>}, {transform_indices = @transform_1, window_bounds = array<i64: 1, 32, 256>}, {pipeline_mode = #tpu.pipeline_mode<synchronous>, transform_indices = @transform_2, window_bounds = array<i64: 1, 256>}, {pipeline_mode = #tpu.pipeline_mode<synchronous>, transform_indices = @transform_3, window_bounds = array<i64: 1, 256>}, {transform_indices = @transform_4, window_bounds = array<i64: 1, 32, 256>}]} {
    %c0 = arith.constant 0 : index
    %c0_0 = arith.constant 0 : index
    %c0_1 = arith.constant 0 : index
    %0 = vector.load %arg2[%c0, %c0_0, %c0_1] : memref<1x32x256xf32, #tpu.memory_space<vmem>>, vector<1x32x256xf32>
    %cst = arith.constant dense<0xFF800000> : vector<1x256xf32>
    %1 = vector.multi_reduction <maximumf>, %0, %cst [1] : vector<1x32x256xf32> to vector<1x256xf32>
    %cst_2 = arith.constant dense<0.000000e+00> : vector<1x256xf32>
    %2 = vector.multi_reduction <add>, %0, %cst_2 [1] : vector<1x32x256xf32> to vector<1x256xf32>
    %cst_3 = arith.constant 3.125000e-02 : f32
    %3 = vector.broadcast %cst_3 : f32 to vector<1x256xf32>
    %4 = arith.mulf %2, %3 : vector<1x256xf32>
    %c0_4 = arith.constant 0 : index
    %c0_5 = arith.constant 0 : index
    %5 = vector.load %arg3[%c0_4, %c0_5] : memref<1x256xf32, #tpu.memory_space<vmem>>, vector<1x256xf32>
    %c0_6 = arith.constant 0 : index
    %c0_7 = arith.constant 0 : index
    %6 = vector.load %arg4[%c0_6, %c0_7] : memref<1x256xf32, #tpu.memory_space<vmem>>, vector<1x256xf32>
    %cst_8 = arith.constant 0.000000e+00 : f32
    %7 = vector.broadcast %cst_8 : f32 to vector<1x256xf32>
    %8 = vector.extract_strided_slice %1 {offsets = [0, 205], sizes = [1, 51], strides = [1, 1]} : vector<1x256xf32> to vector<1x51xf32>
    %9 = vector.extract_strided_slice %1 {offsets = [0, 0], sizes = [1, 205], strides = [1, 1]} : vector<1x256xf32> to vector<1x205xf32>
    %10 = tpu.concatenate %8, %9 in 1 : vector<1x51xf32>, vector<1x205xf32> -> vector<1x256xf32>
    %11 = vector.extract_strided_slice %4 {offsets = [0, 205], sizes = [1, 51], strides = [1, 1]} : vector<1x256xf32> to vector<1x51xf32>
    %12 = vector.extract_strided_slice %4 {offsets = [0, 0], sizes = [1, 205], strides = [1, 1]} : vector<1x256xf32> to vector<1x205xf32>
    %13 = tpu.concatenate %11, %12 in 1 : vector<1x51xf32>, vector<1x205xf32> -> vector<1x256xf32>
    %cst_9 = arith.constant -3.000000e+00 : f32
    %14 = vector.broadcast %cst_9 : f32 to vector<1x256xf32>
    %15 = arith.addf %5, %14 : vector<1x256xf32>
    %cst_10 = arith.constant 0.000000e+00 : f32
    %16 = vector.broadcast %cst_10 : f32 to vector<1x256xf32>
    %17 = arith.cmpf oge, %15, %16 : vector<1x256xf32>
    %cst_11 = arith.constant -3.000000e+00 : f32
    %18 = vector.broadcast %cst_11 : f32 to vector<1x256xf32>
    %19 = arith.addf %5, %18 : vector<1x256xf32>
    %cst_12 = arith.constant 1.500000e+01 : f32
    %20 = vector.broadcast %cst_12 : f32 to vector<1x256xf32>
    %21 = arith.cmpf ole, %19, %20 : vector<1x256xf32>
    %22 = arith.andi %17, %21 : vector<1x256xi1>
    %cst_13 = arith.constant -3.000000e+00 : f32
    %23 = vector.broadcast %cst_13 : f32 to vector<1x256xf32>
    %24 = arith.addf %6, %23 : vector<1x256xf32>
    %cst_14 = arith.constant 0.000000e+00 : f32
    %25 = vector.broadcast %cst_14 : f32 to vector<1x256xf32>
    %26 = arith.cmpf oge, %24, %25 : vector<1x256xf32>
    %27 = arith.andi %22, %26 : vector<1x256xi1>
    %cst_15 = arith.constant -3.000000e+00 : f32
    %28 = vector.broadcast %cst_15 : f32 to vector<1x256xf32>
    %29 = arith.addf %6, %28 : vector<1x256xf32>
    %cst_16 = arith.constant 1.500000e+01 : f32
    %30 = vector.broadcast %cst_16 : f32 to vector<1x256xf32>
    %31 = arith.cmpf ole, %29, %30 : vector<1x256xf32>
    %32 = arith.andi %27, %31 : vector<1x256xi1>
    %c0_17 = arith.constant 0 : index
    %33 = memref.load %arg1[%c0_17] : memref<98xf32, #tpu.memory_space<smem>>
    %c49 = arith.constant 49 : index
    %34 = memref.load %arg1[%c49] : memref<98xf32, #tpu.memory_space<smem>>
    %35 = vector.broadcast %33 : f32 to vector<1x256xf32>
    %36 = arith.mulf %35, %10 : vector<1x256xf32>
    %37 = vector.broadcast %34 : f32 to vector<1x256xf32>
    %38 = arith.mulf %37, %13 : vector<1x256xf32>
    %39 = arith.addf %36, %38 : vector<1x256xf32>
    %cst_18 = arith.constant 0.000000e+00 : f32
    %40 = vector.broadcast %cst_18 : f32 to vector<1x256xf32>
    %41 = arith.select %32, %39, %40 : vector<1x256xi1>, vector<1x256xf32>
    %42 = arith.addf %7, %41 : vector<1x256xf32>
    %43 = vector.extract_strided_slice %1 {offsets = [0, 206], sizes = [1, 50], strides = [1, 1]} : vector<1x256xf32> to vector<1x50xf32>
    %44 = vector.extract_strided_slice %1 {offsets = [0, 0], sizes = [1, 206], strides = [1, 1]} : vector<1x256xf32> to vector<1x206xf32>
    %45 = tpu.concatenate %43, %44 in 1 : vector<1x50xf32>, vector<1x206xf32> -> vector<1x256xf32>
    %46 = vector.extract_strided_slice %4 {offsets = [0, 206], sizes = [1, 50], strides = [1, 1]} : vector<1x256xf32> to vector<1x50xf32>
    %47 = vector.extract_strided_slice %4 {offsets = [0, 0], sizes = [1, 206], strides = [1, 1]} : vector<1x256xf32> to vector<1x206xf32>
    %48 = tpu.concatenate %46, %47 in 1 : vector<1x50xf32>, vector<1x206xf32> -> vector<1x256xf32>
    %cst_19 = arith.constant -3.000000e+00 : f32
    %49 = vector.broadcast %cst_19 : f32 to vector<1x256xf32>
    %50 = arith.addf %5, %49 : vector<1x256xf32>
    %cst_20 = arith.constant 0.000000e+00 : f32
    %51 = vector.broadcast %cst_20 : f32 to vector<1x256xf32>
    %52 = arith.cmpf oge, %50, %51 : vector<1x256xf32>
    %cst_21 = arith.constant -3.000000e+00 : f32
    %53 = vector.broadcast %cst_21 : f32 to vector<1x256xf32>
    %54 = arith.addf %5, %53 : vector<1x256xf32>
    %cst_22 = arith.constant 1.500000e+01 : f32
    %55 = vector.broadcast %cst_22 : f32 to vector<1x256xf32>
    %56 = arith.cmpf ole, %54, %55 : vector<1x256xf32>
    %57 = arith.andi %52, %56 : vector<1x256xi1>
    %cst_23 = arith.constant -2.000000e+00 : f32
    %58 = vector.broadcast %cst_23 : f32 to vector<1x256xf32>
    %59 = arith.addf %6, %58 : vector<1x256xf32>
    %cst_24 = arith.constant 0.000000e+00 : f32
    %60 = vector.broadcast %cst_24 : f32 to vector<1x256xf32>
    %61 = arith.cmpf oge, %59, %60 : vector<1x256xf32>
    %62 = arith.andi %57, %61 : vector<1x256xi1>
    %cst_25 = arith.constant -2.000000e+00 : f32
    %63 = vector.broadcast %cst_25 : f32 to vector<1x256xf32>
    %64 = arith.addf %6, %63 : vector<1x256xf32>
    %cst_26 = arith.constant 1.500000e+01 : f32
    %65 = vector.broadcast %cst_26 : f32 to vector<1x256xf32>
    %66 = arith.cmpf ole, %64, %65 : vector<1x256xf32>
    %67 = arith.andi %62, %66 : vector<1x256xi1>
    %c1 = arith.constant 1 : index
    %68 = memref.load %arg1[%c1] : memref<98xf32, #tpu.memory_space<smem>>
    %c50 = arith.constant 50 : index
    %69 = memref.load %arg1[%c50] : memref<98xf32, #tpu.memory_space<smem>>
    %70 = vector.broadcast %68 : f32 to vector<1x256xf32>
    %71 = arith.mulf %70, %45 : vector<1x256xf32>
    %72 = vector.broadcast %69 : f32 to vector<1x256xf32>
    %73 = arith.mulf %72, %48 : vector<1x256xf32>
    %74 = arith.addf %71, %73 : vector<1x256xf32>
    %cst_27 = arith.constant 0.000000e+00 : f32
    %75 = vector.broadcast %cst_27 : f32 to vector<1x256xf32>
    %76 = arith.select %67, %74, %75 : vector<1x256xi1>, vector<1x256xf32>
    %77 = arith.addf %42, %76 : vector<1x256xf32>
    %78 = vector.extract_strided_slice %1 {offsets = [0, 207], sizes = [1, 49], strides = [1, 1]} : vector<1x256xf32> to vector<1x49xf32>
    %79 = vector.extract_strided_slice %1 {offsets = [0, 0], sizes = [1, 207], strides = [1, 1]} : vector<1x256xf32> to vector<1x207xf32>
    %80 = tpu.concatenate %78, %79 in 1 : vector<1x49xf32>, vector<1x207xf32> -> vector<1x256xf32>
    %81 = vector.extract_strided_slice %4 {offsets = [0, 207], sizes = [1, 49], strides = [1, 1]} : vector<1x256xf32> to vector<1x49xf32>
    %82 = vector.extract_strided_slice %4 {offsets = [0, 0], sizes = [1, 207], strides = [1, 1]} : vector<1x256xf32> to vector<1x207xf32>
    %83 = tpu.concatenate %81, %82 in 1 : vector<1x49xf32>, vector<1x207xf32> -> vector<1x256xf32>
    %cst_28 = arith.constant -3.000000e+00 : f32
    %84 = vector.broadcast %cst_28 : f32 to vector<1x256xf32>
    %85 = arith.addf %5, %84 : vector<1x256xf32>
    %cst_29 = arith.constant 0.000000e+00 : f32
    %86 = vector.broadcast %cst_29 : f32 to vector<1x256xf32>
    %87 = arith.cmpf oge, %85, %86 : vector<1x256xf32>
    %cst_30 = arith.constant -3.000000e+00 : f32
    %88 = vector.broadcast %cst_30 : f32 to vector<1x256xf32>
    %89 = arith.addf %5, %88 : vector<1x256xf32>
    %cst_31 = arith.constant 1.500000e+01 : f32
    %90 = vector.broadcast %cst_31 : f32 to vector<1x256xf32>
    %91 = arith.cmpf ole, %89, %90 : vector<1x256xf32>
    %92 = arith.andi %87, %91 : vector<1x256xi1>
    %cst_32 = arith.constant -1.000000e+00 : f32
    %93 = vector.broadcast %cst_32 : f32 to vector<1x256xf32>
    %94 = arith.addf %6, %93 : vector<1x256xf32>
    %cst_33 = arith.constant 0.000000e+00 : f32
    %95 = vector.broadcast %cst_33 : f32 to vector<1x256xf32>
    %96 = arith.cmpf oge, %94, %95 : vector<1x256xf32>
    %97 = arith.andi %92, %96 : vector<1x256xi1>
    %cst_34 = arith.constant -1.000000e+00 : f32
    %98 = vector.broadcast %cst_34 : f32 to vector<1x256xf32>
    %99 = arith.addf %6, %98 : vector<1x256xf32>
    %cst_35 = arith.constant 1.500000e+01 : f32
    %100 = vector.broadcast %cst_35 : f32 to vector<1x256xf32>
    %101 = arith.cmpf ole, %99, %100 : vector<1x256xf32>
    %102 = arith.andi %97, %101 : vector<1x256xi1>
    %c2 = arith.constant 2 : index
    %103 = memref.load %arg1[%c2] : memref<98xf32, #tpu.memory_space<smem>>
    %c51 = arith.constant 51 : index
    %104 = memref.load %arg1[%c51] : memref<98xf32, #tpu.memory_space<smem>>
    %105 = vector.broadcast %103 : f32 to vector<1x256xf32>
    %106 = arith.mulf %105, %80 : vector<1x256xf32>
    %107 = vector.broadcast %104 : f32 to vector<1x256xf32>
    %108 = arith.mulf %107, %83 : vector<1x256xf32>
    %109 = arith.addf %106, %108 : vector<1x256xf32>
    %cst_36 = arith.constant 0.000000e+00 : f32
    %110 = vector.broadcast %cst_36 : f32 to vector<1x256xf32>
    %111 = arith.select %102, %109, %110 : vector<1x256xi1>, vector<1x256xf32>
    %112 = arith.addf %77, %111 : vector<1x256xf32>
    %113 = vector.extract_strided_slice %1 {offsets = [0, 208], sizes = [1, 48], strides = [1, 1]} : vector<1x256xf32> to vector<1x48xf32>
    %114 = vector.extract_strided_slice %1 {offsets = [0, 0], sizes = [1, 208], strides = [1, 1]} : vector<1x256xf32> to vector<1x208xf32>
    %115 = tpu.concatenate %113, %114 in 1 : vector<1x48xf32>, vector<1x208xf32> -> vector<1x256xf32>
    %116 = vector.extract_strided_slice %4 {offsets = [0, 208], sizes = [1, 48], strides = [1, 1]} : vector<1x256xf32> to vector<1x48xf32>
    %117 = vector.extract_strided_slice %4 {offsets = [0, 0], sizes = [1, 208], strides = [1, 1]} : vector<1x256xf32> to vector<1x208xf32>
    %118 = tpu.concatenate %116, %117 in 1 : vector<1x48xf32>, vector<1x208xf32> -> vector<1x256xf32>
    %cst_37 = arith.constant -3.000000e+00 : f32
    %119 = vector.broadcast %cst_37 : f32 to vector<1x256xf32>
    %120 = arith.addf %5, %119 : vector<1x256xf32>
    %cst_38 = arith.constant 0.000000e+00 : f32
    %121 = vector.broadcast %cst_38 : f32 to vector<1x256xf32>
    %122 = arith.cmpf oge, %120, %121 : vector<1x256xf32>
    %cst_39 = arith.constant -3.000000e+00 : f32
    %123 = vector.broadcast %cst_39 : f32 to vector<1x256xf32>
    %124 = arith.addf %5, %123 : vector<1x256xf32>
    %cst_40 = arith.constant 1.500000e+01 : f32
    %125 = vector.broadcast %cst_40 : f32 to vector<1x256xf32>
    %126 = arith.cmpf ole, %124, %125 : vector<1x256xf32>
    %127 = arith.andi %122, %126 : vector<1x256xi1>
    %cst_41 = arith.constant 0.000000e+00 : f32
    %128 = vector.broadcast %cst_41 : f32 to vector<1x256xf32>
    %129 = arith.addf %6, %128 : vector<1x256xf32>
    %cst_42 = arith.constant 0.000000e+00 : f32
    %130 = vector.broadcast %cst_42 : f32 to vector<1x256xf32>
    %131 = arith.cmpf oge, %129, %130 : vector<1x256xf32>
    %132 = arith.andi %127, %131 : vector<1x256xi1>
    %cst_43 = arith.constant 0.000000e+00 : f32
    %133 = vector.broadcast %cst_43 : f32 to vector<1x256xf32>
    %134 = arith.addf %6, %133 : vector<1x256xf32>
    %cst_44 = arith.constant 1.500000e+01 : f32
    %135 = vector.broadcast %cst_44 : f32 to vector<1x256xf32>
    %136 = arith.cmpf ole, %134, %135 : vector<1x256xf32>
    %137 = arith.andi %132, %136 : vector<1x256xi1>
    %c3 = arith.constant 3 : index
    %138 = memref.load %arg1[%c3] : memref<98xf32, #tpu.memory_space<smem>>
    %c52 = arith.constant 52 : index
    %139 = memref.load %arg1[%c52] : memref<98xf32, #tpu.memory_space<smem>>
    %140 = vector.broadcast %138 : f32 to vector<1x256xf32>
    %141 = arith.mulf %140, %115 : vector<1x256xf32>
    %142 = vector.broadcast %139 : f32 to vector<1x256xf32>
    %143 = arith.mulf %142, %118 : vector<1x256xf32>
    %144 = arith.addf %141, %143 : vector<1x256xf32>
    %cst_45 = arith.constant 0.000000e+00 : f32
    %145 = vector.broadcast %cst_45 : f32 to vector<1x256xf32>
    %146 = arith.select %137, %144, %145 : vector<1x256xi1>, vector<1x256xf32>
    %147 = arith.addf %112, %146 : vector<1x256xf32>
    %148 = vector.extract_strided_slice %1 {offsets = [0, 209], sizes = [1, 47], strides = [1, 1]} : vector<1x256xf32> to vector<1x47xf32>
    %149 = vector.extract_strided_slice %1 {offsets = [0, 0], sizes = [1, 209], strides = [1, 1]} : vector<1x256xf32> to vector<1x209xf32>
    %150 = tpu.concatenate %148, %149 in 1 : vector<1x47xf32>, vector<1x209xf32> -> vector<1x256xf32>
    %151 = vector.extract_strided_slice %4 {offsets = [0, 209], sizes = [1, 47], strides = [1, 1]} : vector<1x256xf32> to vector<1x47xf32>
    %152 = vector.extract_strided_slice %4 {offsets = [0, 0], sizes = [1, 209], strides = [1, 1]} : vector<1x256xf32> to vector<1x209xf32>
    %153 = tpu.concatenate %151, %152 in 1 : vector<1x47xf32>, vector<1x209xf32> -> vector<1x256xf32>
    %cst_46 = arith.constant -3.000000e+00 : f32
    %154 = vector.broadcast %cst_46 : f32 to vector<1x256xf32>
    %155 = arith.addf %5, %154 : vector<1x256xf32>
    %cst_47 = arith.constant 0.000000e+00 : f32
    %156 = vector.broadcast %cst_47 : f32 to vector<1x256xf32>
    %157 = arith.cmpf oge, %155, %156 : vector<1x256xf32>
    %cst_48 = arith.constant -3.000000e+00 : f32
    %158 = vector.broadcast %cst_48 : f32 to vector<1x256xf32>
    %159 = arith.addf %5, %158 : vector<1x256xf32>
    %cst_49 = arith.constant 1.500000e+01 : f32
    %160 = vector.broadcast %cst_49 : f32 to vector<1x256xf32>
    %161 = arith.cmpf ole, %159, %160 : vector<1x256xf32>
    %162 = arith.andi %157, %161 : vector<1x256xi1>
    %cst_50 = arith.constant 1.000000e+00 : f32
    %163 = vector.broadcast %cst_50 : f32 to vector<1x256xf32>
    %164 = arith.addf %6, %163 : vector<1x256xf32>
    %cst_51 = arith.constant 0.000000e+00 : f32
    %165 = vector.broadcast %cst_51 : f32 to vector<1x256xf32>
    %166 = arith.cmpf oge, %164, %165 : vector<1x256xf32>
    %167 = arith.andi %162, %166 : vector<1x256xi1>
    %cst_52 = arith.constant 1.000000e+00 : f32
    %168 = vector.broadcast %cst_52 : f32 to vector<1x256xf32>
    %169 = arith.addf %6, %168 : vector<1x256xf32>
    %cst_53 = arith.constant 1.500000e+01 : f32
    %170 = vector.broadcast %cst_53 : f32 to vector<1x256xf32>
    %171 = arith.cmpf ole, %169, %170 : vector<1x256xf32>
    %172 = arith.andi %167, %171 : vector<1x256xi1>
    %c4 = arith.constant 4 : index
    %173 = memref.load %arg1[%c4] : memref<98xf32, #tpu.memory_space<smem>>
    %c53 = arith.constant 53 : index
    %174 = memref.load %arg1[%c53] : memref<98xf32, #tpu.memory_space<smem>>
    %175 = vector.broadcast %173 : f32 to vector<1x256xf32>
    %176 = arith.mulf %175, %150 : vector<1x256xf32>
    %177 = vector.broadcast %174 : f32 to vector<1x256xf32>
    %178 = arith.mulf %177, %153 : vector<1x256xf32>
    %179 = arith.addf %176, %178 : vector<1x256xf32>
    %cst_54 = arith.constant 0.000000e+00 : f32
    %180 = vector.broadcast %cst_54 : f32 to vector<1x256xf32>
    %181 = arith.select %172, %179, %180 : vector<1x256xi1>, vector<1x256xf32>
    %182 = arith.addf %147, %181 : vector<1x256xf32>
    %183 = vector.extract_strided_slice %1 {offsets = [0, 210], sizes = [1, 46], strides = [1, 1]} : vector<1x256xf32> to vector<1x46xf32>
    %184 = vector.extract_strided_slice %1 {offsets = [0, 0], sizes = [1, 210], strides = [1, 1]} : vector<1x256xf32> to vector<1x210xf32>
    %185 = tpu.concatenate %183, %184 in 1 : vector<1x46xf32>, vector<1x210xf32> -> vector<1x256xf32>
    %186 = vector.extract_strided_slice %4 {offsets = [0, 210], sizes = [1, 46], strides = [1, 1]} : vector<1x256xf32> to vector<1x46xf32>
    %187 = vector.extract_strided_slice %4 {offsets = [0, 0], sizes = [1, 210], strides = [1, 1]} : vector<1x256xf32> to vector<1x210xf32>
    %188 = tpu.concatenate %186, %187 in 1 : vector<1x46xf32>, vector<1x210xf32> -> vector<1x256xf32>
    %cst_55 = arith.constant -3.000000e+00 : f32
    %189 = vector.broadcast %cst_55 : f32 to vector<1x256xf32>
    %190 = arith.addf %5, %189 : vector<1x256xf32>
    %cst_56 = arith.constant 0.000000e+00 : f32
    %191 = vector.broadcast %cst_56 : f32 to vector<1x256xf32>
    %192 = arith.cmpf oge, %190, %191 : vector<1x256xf32>
    %cst_57 = arith.constant -3.000000e+00 : f32
    %193 = vector.broadcast %cst_57 : f32 to vector<1x256xf32>
    %194 = arith.addf %5, %193 : vector<1x256xf32>
    %cst_58 = arith.constant 1.500000e+01 : f32
    %195 = vector.broadcast %cst_58 : f32 to vector<1x256xf32>
    %196 = arith.cmpf ole, %194, %195 : vector<1x256xf32>
    %197 = arith.andi %192, %196 : vector<1x256xi1>
    %cst_59 = arith.constant 2.000000e+00 : f32
    %198 = vector.broadcast %cst_59 : f32 to vector<1x256xf32>
    %199 = arith.addf %6, %198 : vector<1x256xf32>
    %cst_60 = arith.constant 0.000000e+00 : f32
    %200 = vector.broadcast %cst_60 : f32 to vector<1x256xf32>
    %201 = arith.cmpf oge, %199, %200 : vector<1x256xf32>
    %202 = arith.andi %197, %201 : vector<1x256xi1>
    %cst_61 = arith.constant 2.000000e+00 : f32
    %203 = vector.broadcast %cst_61 : f32 to vector<1x256xf32>
    %204 = arith.addf %6, %203 : vector<1x256xf32>
    %cst_62 = arith.constant 1.500000e+01 : f32
    %205 = vector.broadcast %cst_62 : f32 to vector<1x256xf32>
    %206 = arith.cmpf ole, %204, %205 : vector<1x256xf32>
    %207 = arith.andi %202, %206 : vector<1x256xi1>
    %c5 = arith.constant 5 : index
    %208 = memref.load %arg1[%c5] : memref<98xf32, #tpu.memory_space<smem>>
    %c54 = arith.constant 54 : index
    %209 = memref.load %arg1[%c54] : memref<98xf32, #tpu.memory_space<smem>>
    %210 = vector.broadcast %208 : f32 to vector<1x256xf32>
    %211 = arith.mulf %210, %185 : vector<1x256xf32>
    %212 = vector.broadcast %209 : f32 to vector<1x256xf32>
    %213 = arith.mulf %212, %188 : vector<1x256xf32>
    %214 = arith.addf %211, %213 : vector<1x256xf32>
    %cst_63 = arith.constant 0.000000e+00 : f32
    %215 = vector.broadcast %cst_63 : f32 to vector<1x256xf32>
    %216 = arith.select %207, %214, %215 : vector<1x256xi1>, vector<1x256xf32>
    %217 = arith.addf %182, %216 : vector<1x256xf32>
    %218 = vector.extract_strided_slice %1 {offsets = [0, 211], sizes = [1, 45], strides = [1, 1]} : vector<1x256xf32> to vector<1x45xf32>
    %219 = vector.extract_strided_slice %1 {offsets = [0, 0], sizes = [1, 211], strides = [1, 1]} : vector<1x256xf32> to vector<1x211xf32>
    %220 = tpu.concatenate %218, %219 in 1 : vector<1x45xf32>, vector<1x211xf32> -> vector<1x256xf32>
    %221 = vector.extract_strided_slice %4 {offsets = [0, 211], sizes = [1, 45], strides = [1, 1]} : vector<1x256xf32> to vector<1x45xf32>
    %222 = vector.extract_strided_slice %4 {offsets = [0, 0], sizes = [1, 211], strides = [1, 1]} : vector<1x256xf32> to vector<1x211xf32>
    %223 = tpu.concatenate %221, %222 in 1 : vector<1x45xf32>, vector<1x211xf32> -> vector<1x256xf32>
    %cst_64 = arith.constant -3.000000e+00 : f32
    %224 = vector.broadcast %cst_64 : f32 to vector<1x256xf32>
    %225 = arith.addf %5, %224 : vector<1x256xf32>
    %cst_65 = arith.constant 0.000000e+00 : f32
    %226 = vector.broadcast %cst_65 : f32 to vector<1x256xf32>
    %227 = arith.cmpf oge, %225, %226 : vector<1x256xf32>
    %cst_66 = arith.constant -3.000000e+00 : f32
    %228 = vector.broadcast %cst_66 : f32 to vector<1x256xf32>
    %229 = arith.addf %5, %228 : vector<1x256xf32>
    %cst_67 = arith.constant 1.500000e+01 : f32
    %230 = vector.broadcast %cst_67 : f32 to vector<1x256xf32>
    %231 = arith.cmpf ole, %229, %230 : vector<1x256xf32>
    %232 = arith.andi %227, %231 : vector<1x256xi1>
    %cst_68 = arith.constant 3.000000e+00 : f32
    %233 = vector.broadcast %cst_68 : f32 to vector<1x256xf32>
    %234 = arith.addf %6, %233 : vector<1x256xf32>
    %cst_69 = arith.constant 0.000000e+00 : f32
    %235 = vector.broadcast %cst_69 : f32 to vector<1x256xf32>
    %236 = arith.cmpf oge, %234, %235 : vector<1x256xf32>
    %237 = arith.andi %232, %236 : vector<1x256xi1>
    %cst_70 = arith.constant 3.000000e+00 : f32
    %238 = vector.broadcast %cst_70 : f32 to vector<1x256xf32>
    %239 = arith.addf %6, %238 : vector<1x256xf32>
    %cst_71 = arith.constant 1.500000e+01 : f32
    %240 = vector.broadcast %cst_71 : f32 to vector<1x256xf32>
    %241 = arith.cmpf ole, %239, %240 : vector<1x256xf32>
    %242 = arith.andi %237, %241 : vector<1x256xi1>
    %c6 = arith.constant 6 : index
    %243 = memref.load %arg1[%c6] : memref<98xf32, #tpu.memory_space<smem>>
    %c55 = arith.constant 55 : index
    %244 = memref.load %arg1[%c55] : memref<98xf32, #tpu.memory_space<smem>>
    %245 = vector.broadcast %243 : f32 to vector<1x256xf32>
    %246 = arith.mulf %245, %220 : vector<1x256xf32>
    %247 = vector.broadcast %244 : f32 to vector<1x256xf32>
    %248 = arith.mulf %247, %223 : vector<1x256xf32>
    %249 = arith.addf %246, %248 : vector<1x256xf32>
    %cst_72 = arith.constant 0.000000e+00 : f32
    %250 = vector.broadcast %cst_72 : f32 to vector<1x256xf32>
    %251 = arith.select %242, %249, %250 : vector<1x256xi1>, vector<1x256xf32>
    %252 = arith.addf %217, %251 : vector<1x256xf32>
    %253 = vector.extract_strided_slice %1 {offsets = [0, 221], sizes = [1, 35], strides = [1, 1]} : vector<1x256xf32> to vector<1x35xf32>
    %254 = vector.extract_strided_slice %1 {offsets = [0, 0], sizes = [1, 221], strides = [1, 1]} : vector<1x256xf32> to vector<1x221xf32>
    %255 = tpu.concatenate %253, %254 in 1 : vector<1x35xf32>, vector<1x221xf32> -> vector<1x256xf32>
    %256 = vector.extract_strided_slice %4 {offsets = [0, 221], sizes = [1, 35], strides = [1, 1]} : vector<1x256xf32> to vector<1x35xf32>
    %257 = vector.extract_strided_slice %4 {offsets = [0, 0], sizes = [1, 221], strides = [1, 1]} : vector<1x256xf32> to vector<1x221xf32>
    %258 = tpu.concatenate %256, %257 in 1 : vector<1x35xf32>, vector<1x221xf32> -> vector<1x256xf32>
    %cst_73 = arith.constant -2.000000e+00 : f32
    %259 = vector.broadcast %cst_73 : f32 to vector<1x256xf32>
    %260 = arith.addf %5, %259 : vector<1x256xf32>
    %cst_74 = arith.constant 0.000000e+00 : f32
    %261 = vector.broadcast %cst_74 : f32 to vector<1x256xf32>
    %262 = arith.cmpf oge, %260, %261 : vector<1x256xf32>
    %cst_75 = arith.constant -2.000000e+00 : f32
    %263 = vector.broadcast %cst_75 : f32 to vector<1x256xf32>
    %264 = arith.addf %5, %263 : vector<1x256xf32>
    %cst_76 = arith.constant 1.500000e+01 : f32
    %265 = vector.broadcast %cst_76 : f32 to vector<1x256xf32>
    %266 = arith.cmpf ole, %264, %265 : vector<1x256xf32>
    %267 = arith.andi %262, %266 : vector<1x256xi1>
    %cst_77 = arith.constant -3.000000e+00 : f32
    %268 = vector.broadcast %cst_77 : f32 to vector<1x256xf32>
    %269 = arith.addf %6, %268 : vector<1x256xf32>
    %cst_78 = arith.constant 0.000000e+00 : f32
    %270 = vector.broadcast %cst_78 : f32 to vector<1x256xf32>
    %271 = arith.cmpf oge, %269, %270 : vector<1x256xf32>
    %272 = arith.andi %267, %271 : vector<1x256xi1>
    %cst_79 = arith.constant -3.000000e+00 : f32
    %273 = vector.broadcast %cst_79 : f32 to vector<1x256xf32>
    %274 = arith.addf %6, %273 : vector<1x256xf32>
    %cst_80 = arith.constant 1.500000e+01 : f32
    %275 = vector.broadcast %cst_80 : f32 to vector<1x256xf32>
    %276 = arith.cmpf ole, %274, %275 : vector<1x256xf32>
    %277 = arith.andi %272, %276 : vector<1x256xi1>
    %c7 = arith.constant 7 : index
    %278 = memref.load %arg1[%c7] : memref<98xf32, #tpu.memory_space<smem>>
    %c56 = arith.constant 56 : index
    %279 = memref.load %arg1[%c56] : memref<98xf32, #tpu.memory_space<smem>>
    %280 = vector.broadcast %278 : f32 to vector<1x256xf32>
    %281 = arith.mulf %280, %255 : vector<1x256xf32>
    %282 = vector.broadcast %279 : f32 to vector<1x256xf32>
    %283 = arith.mulf %282, %258 : vector<1x256xf32>
    %284 = arith.addf %281, %283 : vector<1x256xf32>
    %cst_81 = arith.constant 0.000000e+00 : f32
    %285 = vector.broadcast %cst_81 : f32 to vector<1x256xf32>
    %286 = arith.select %277, %284, %285 : vector<1x256xi1>, vector<1x256xf32>
    %287 = arith.addf %252, %286 : vector<1x256xf32>
    %288 = vector.extract_strided_slice %1 {offsets = [0, 222], sizes = [1, 34], strides = [1, 1]} : vector<1x256xf32> to vector<1x34xf32>
    %289 = vector.extract_strided_slice %1 {offsets = [0, 0], sizes = [1, 222], strides = [1, 1]} : vector<1x256xf32> to vector<1x222xf32>
    %290 = tpu.concatenate %288, %289 in 1 : vector<1x34xf32>, vector<1x222xf32> -> vector<1x256xf32>
    %291 = vector.extract_strided_slice %4 {offsets = [0, 222], sizes = [1, 34], strides = [1, 1]} : vector<1x256xf32> to vector<1x34xf32>
    %292 = vector.extract_strided_slice %4 {offsets = [0, 0], sizes = [1, 222], strides = [1, 1]} : vector<1x256xf32> to vector<1x222xf32>
    %293 = tpu.concatenate %291, %292 in 1 : vector<1x34xf32>, vector<1x222xf32> -> vector<1x256xf32>
    %cst_82 = arith.constant -2.000000e+00 : f32
    %294 = vector.broadcast %cst_82 : f32 to vector<1x256xf32>
    %295 = arith.addf %5, %294 : vector<1x256xf32>
    %cst_83 = arith.constant 0.000000e+00 : f32
    %296 = vector.broadcast %cst_83 : f32 to vector<1x256xf32>
    %297 = arith.cmpf oge, %295, %296 : vector<1x256xf32>
    %cst_84 = arith.constant -2.000000e+00 : f32
    %298 = vector.broadcast %cst_84 : f32 to vector<1x256xf32>
    %299 = arith.addf %5, %298 : vector<1x256xf32>
    %cst_85 = arith.constant 1.500000e+01 : f32
    %300 = vector.broadcast %cst_85 : f32 to vector<1x256xf32>
    %301 = arith.cmpf ole, %299, %300 : vector<1x256xf32>
    %302 = arith.andi %297, %301 : vector<1x256xi1>
    %cst_86 = arith.constant -2.000000e+00 : f32
    %303 = vector.broadcast %cst_86 : f32 to vector<1x256xf32>
    %304 = arith.addf %6, %303 : vector<1x256xf32>
    %cst_87 = arith.constant 0.000000e+00 : f32
    %305 = vector.broadcast %cst_87 : f32 to vector<1x256xf32>
    %306 = arith.cmpf oge, %304, %305 : vector<1x256xf32>
    %307 = arith.andi %302, %306 : vector<1x256xi1>
    %cst_88 = arith.constant -2.000000e+00 : f32
    %308 = vector.broadcast %cst_88 : f32 to vector<1x256xf32>
    %309 = arith.addf %6, %308 : vector<1x256xf32>
    %cst_89 = arith.constant 1.500000e+01 : f32
    %310 = vector.broadcast %cst_89 : f32 to vector<1x256xf32>
    %311 = arith.cmpf ole, %309, %310 : vector<1x256xf32>
    %312 = arith.andi %307, %311 : vector<1x256xi1>
    %c8 = arith.constant 8 : index
    %313 = memref.load %arg1[%c8] : memref<98xf32, #tpu.memory_space<smem>>
    %c57 = arith.constant 57 : index
    %314 = memref.load %arg1[%c57] : memref<98xf32, #tpu.memory_space<smem>>
    %315 = vector.broadcast %313 : f32 to vector<1x256xf32>
    %316 = arith.mulf %315, %290 : vector<1x256xf32>
    %317 = vector.broadcast %314 : f32 to vector<1x256xf32>
    %318 = arith.mulf %317, %293 : vector<1x256xf32>
    %319 = arith.addf %316, %318 : vector<1x256xf32>
    %cst_90 = arith.constant 0.000000e+00 : f32
    %320 = vector.broadcast %cst_90 : f32 to vector<1x256xf32>
    %321 = arith.select %312, %319, %320 : vector<1x256xi1>, vector<1x256xf32>
    %322 = arith.addf %287, %321 : vector<1x256xf32>
    %323 = vector.extract_strided_slice %1 {offsets = [0, 223], sizes = [1, 33], strides = [1, 1]} : vector<1x256xf32> to vector<1x33xf32>
    %324 = vector.extract_strided_slice %1 {offsets = [0, 0], sizes = [1, 223], strides = [1, 1]} : vector<1x256xf32> to vector<1x223xf32>
    %325 = tpu.concatenate %323, %324 in 1 : vector<1x33xf32>, vector<1x223xf32> -> vector<1x256xf32>
    %326 = vector.extract_strided_slice %4 {offsets = [0, 223], sizes = [1, 33], strides = [1, 1]} : vector<1x256xf32> to vector<1x33xf32>
    %327 = vector.extract_strided_slice %4 {offsets = [0, 0], sizes = [1, 223], strides = [1, 1]} : vector<1x256xf32> to vector<1x223xf32>
    %328 = tpu.concatenate %326, %327 in 1 : vector<1x33xf32>, vector<1x223xf32> -> vector<1x256xf32>
    %cst_91 = arith.constant -2.000000e+00 : f32
    %329 = vector.broadcast %cst_91 : f32 to vector<1x256xf32>
    %330 = arith.addf %5, %329 : vector<1x256xf32>
    %cst_92 = arith.constant 0.000000e+00 : f32
    %331 = vector.broadcast %cst_92 : f32 to vector<1x256xf32>
    %332 = arith.cmpf oge, %330, %331 : vector<1x256xf32>
    %cst_93 = arith.constant -2.000000e+00 : f32
    %333 = vector.broadcast %cst_93 : f32 to vector<1x256xf32>
    %334 = arith.addf %5, %333 : vector<1x256xf32>
    %cst_94 = arith.constant 1.500000e+01 : f32
    %335 = vector.broadcast %cst_94 : f32 to vector<1x256xf32>
    %336 = arith.cmpf ole, %334, %335 : vector<1x256xf32>
    %337 = arith.andi %332, %336 : vector<1x256xi1>
    %cst_95 = arith.constant -1.000000e+00 : f32
    %338 = vector.broadcast %cst_95 : f32 to vector<1x256xf32>
    %339 = arith.addf %6, %338 : vector<1x256xf32>
    %cst_96 = arith.constant 0.000000e+00 : f32
    %340 = vector.broadcast %cst_96 : f32 to vector<1x256xf32>
    %341 = arith.cmpf oge, %339, %340 : vector<1x256xf32>
    %342 = arith.andi %337, %341 : vector<1x256xi1>
    %cst_97 = arith.constant -1.000000e+00 : f32
    %343 = vector.broadcast %cst_97 : f32 to vector<1x256xf32>
    %344 = arith.addf %6, %343 : vector<1x256xf32>
    %cst_98 = arith.constant 1.500000e+01 : f32
    %345 = vector.broadcast %cst_98 : f32 to vector<1x256xf32>
    %346 = arith.cmpf ole, %344, %345 : vector<1x256xf32>
    %347 = arith.andi %342, %346 : vector<1x256xi1>
    %c9 = arith.constant 9 : index
    %348 = memref.load %arg1[%c9] : memref<98xf32, #tpu.memory_space<smem>>
    %c58 = arith.constant 58 : index
    %349 = memref.load %arg1[%c58] : memref<98xf32, #tpu.memory_space<smem>>
    %350 = vector.broadcast %348 : f32 to vector<1x256xf32>
    %351 = arith.mulf %350, %325 : vector<1x256xf32>
    %352 = vector.broadcast %349 : f32 to vector<1x256xf32>
    %353 = arith.mulf %352, %328 : vector<1x256xf32>
    %354 = arith.addf %351, %353 : vector<1x256xf32>
    %cst_99 = arith.constant 0.000000e+00 : f32
    %355 = vector.broadcast %cst_99 : f32 to vector<1x256xf32>
    %356 = arith.select %347, %354, %355 : vector<1x256xi1>, vector<1x256xf32>
    %357 = arith.addf %322, %356 : vector<1x256xf32>
    %358 = vector.extract_strided_slice %1 {offsets = [0, 224], sizes = [1, 32], strides = [1, 1]} : vector<1x256xf32> to vector<1x32xf32>
    %359 = vector.extract_strided_slice %1 {offsets = [0, 0], sizes = [1, 224], strides = [1, 1]} : vector<1x256xf32> to vector<1x224xf32>
    %360 = tpu.concatenate %358, %359 in 1 : vector<1x32xf32>, vector<1x224xf32> -> vector<1x256xf32>
    %361 = vector.extract_strided_slice %4 {offsets = [0, 224], sizes = [1, 32], strides = [1, 1]} : vector<1x256xf32> to vector<1x32xf32>
    %362 = vector.extract_strided_slice %4 {offsets = [0, 0], sizes = [1, 224], strides = [1, 1]} : vector<1x256xf32> to vector<1x224xf32>
    %363 = tpu.concatenate %361, %362 in 1 : vector<1x32xf32>, vector<1x224xf32> -> vector<1x256xf32>
    %cst_100 = arith.constant -2.000000e+00 : f32
    %364 = vector.broadcast %cst_100 : f32 to vector<1x256xf32>
    %365 = arith.addf %5, %364 : vector<1x256xf32>
    %cst_101 = arith.constant 0.000000e+00 : f32
    %366 = vector.broadcast %cst_101 : f32 to vector<1x256xf32>
    %367 = arith.cmpf oge, %365, %366 : vector<1x256xf32>
    %cst_102 = arith.constant -2.000000e+00 : f32
    %368 = vector.broadcast %cst_102 : f32 to vector<1x256xf32>
    %369 = arith.addf %5, %368 : vector<1x256xf32>
    %cst_103 = arith.constant 1.500000e+01 : f32
    %370 = vector.broadcast %cst_103 : f32 to vector<1x256xf32>
    %371 = arith.cmpf ole, %369, %370 : vector<1x256xf32>
    %372 = arith.andi %367, %371 : vector<1x256xi1>
    %cst_104 = arith.constant 0.000000e+00 : f32
    %373 = vector.broadcast %cst_104 : f32 to vector<1x256xf32>
    %374 = arith.addf %6, %373 : vector<1x256xf32>
    %cst_105 = arith.constant 0.000000e+00 : f32
    %375 = vector.broadcast %cst_105 : f32 to vector<1x256xf32>
    %376 = arith.cmpf oge, %374, %375 : vector<1x256xf32>
    %377 = arith.andi %372, %376 : vector<1x256xi1>
    %cst_106 = arith.constant 0.000000e+00 : f32
    %378 = vector.broadcast %cst_106 : f32 to vector<1x256xf32>
    %379 = arith.addf %6, %378 : vector<1x256xf32>
    %cst_107 = arith.constant 1.500000e+01 : f32
    %380 = vector.broadcast %cst_107 : f32 to vector<1x256xf32>
    %381 = arith.cmpf ole, %379, %380 : vector<1x256xf32>
    %382 = arith.andi %377, %381 : vector<1x256xi1>
    %c10 = arith.constant 10 : index
    %383 = memref.load %arg1[%c10] : memref<98xf32, #tpu.memory_space<smem>>
    %c59 = arith.constant 59 : index
    %384 = memref.load %arg1[%c59] : memref<98xf32, #tpu.memory_space<smem>>
    %385 = vector.broadcast %383 : f32 to vector<1x256xf32>
    %386 = arith.mulf %385, %360 : vector<1x256xf32>
    %387 = vector.broadcast %384 : f32 to vector<1x256xf32>
    %388 = arith.mulf %387, %363 : vector<1x256xf32>
    %389 = arith.addf %386, %388 : vector<1x256xf32>
    %cst_108 = arith.constant 0.000000e+00 : f32
    %390 = vector.broadcast %cst_108 : f32 to vector<1x256xf32>
    %391 = arith.select %382, %389, %390 : vector<1x256xi1>, vector<1x256xf32>
    %392 = arith.addf %357, %391 : vector<1x256xf32>
    %393 = vector.extract_strided_slice %1 {offsets = [0, 225], sizes = [1, 31], strides = [1, 1]} : vector<1x256xf32> to vector<1x31xf32>
    %394 = vector.extract_strided_slice %1 {offsets = [0, 0], sizes = [1, 225], strides = [1, 1]} : vector<1x256xf32> to vector<1x225xf32>
    %395 = tpu.concatenate %393, %394 in 1 : vector<1x31xf32>, vector<1x225xf32> -> vector<1x256xf32>
    %396 = vector.extract_strided_slice %4 {offsets = [0, 225], sizes = [1, 31], strides = [1, 1]} : vector<1x256xf32> to vector<1x31xf32>
    %397 = vector.extract_strided_slice %4 {offsets = [0, 0], sizes = [1, 225], strides = [1, 1]} : vector<1x256xf32> to vector<1x225xf32>
    %398 = tpu.concatenate %396, %397 in 1 : vector<1x31xf32>, vector<1x225xf32> -> vector<1x256xf32>
    %cst_109 = arith.constant -2.000000e+00 : f32
    %399 = vector.broadcast %cst_109 : f32 to vector<1x256xf32>
    %400 = arith.addf %5, %399 : vector<1x256xf32>
    %cst_110 = arith.constant 0.000000e+00 : f32
    %401 = vector.broadcast %cst_110 : f32 to vector<1x256xf32>
    %402 = arith.cmpf oge, %400, %401 : vector<1x256xf32>
    %cst_111 = arith.constant -2.000000e+00 : f32
    %403 = vector.broadcast %cst_111 : f32 to vector<1x256xf32>
    %404 = arith.addf %5, %403 : vector<1x256xf32>
    %cst_112 = arith.constant 1.500000e+01 : f32
    %405 = vector.broadcast %cst_112 : f32 to vector<1x256xf32>
    %406 = arith.cmpf ole, %404, %405 : vector<1x256xf32>
    %407 = arith.andi %402, %406 : vector<1x256xi1>
    %cst_113 = arith.constant 1.000000e+00 : f32
    %408 = vector.broadcast %cst_113 : f32 to vector<1x256xf32>
    %409 = arith.addf %6, %408 : vector<1x256xf32>
    %cst_114 = arith.constant 0.000000e+00 : f32
    %410 = vector.broadcast %cst_114 : f32 to vector<1x256xf32>
    %411 = arith.cmpf oge, %409, %410 : vector<1x256xf32>
    %412 = arith.andi %407, %411 : vector<1x256xi1>
    %cst_115 = arith.constant 1.000000e+00 : f32
    %413 = vector.broadcast %cst_115 : f32 to vector<1x256xf32>
    %414 = arith.addf %6, %413 : vector<1x256xf32>
    %cst_116 = arith.constant 1.500000e+01 : f32
    %415 = vector.broadcast %cst_116 : f32 to vector<1x256xf32>
    %416 = arith.cmpf ole, %414, %415 : vector<1x256xf32>
    %417 = arith.andi %412, %416 : vector<1x256xi1>
    %c11 = arith.constant 11 : index
    %418 = memref.load %arg1[%c11] : memref<98xf32, #tpu.memory_space<smem>>
    %c60 = arith.constant 60 : index
    %419 = memref.load %arg1[%c60] : memref<98xf32, #tpu.memory_space<smem>>
    %420 = vector.broadcast %418 : f32 to vector<1x256xf32>
    %421 = arith.mulf %420, %395 : vector<1x256xf32>
    %422 = vector.broadcast %419 : f32 to vector<1x256xf32>
    %423 = arith.mulf %422, %398 : vector<1x256xf32>
    %424 = arith.addf %421, %423 : vector<1x256xf32>
    %cst_117 = arith.constant 0.000000e+00 : f32
    %425 = vector.broadcast %cst_117 : f32 to vector<1x256xf32>
    %426 = arith.select %417, %424, %425 : vector<1x256xi1>, vector<1x256xf32>
    %427 = arith.addf %392, %426 : vector<1x256xf32>
    %428 = vector.extract_strided_slice %1 {offsets = [0, 226], sizes = [1, 30], strides = [1, 1]} : vector<1x256xf32> to vector<1x30xf32>
    %429 = vector.extract_strided_slice %1 {offsets = [0, 0], sizes = [1, 226], strides = [1, 1]} : vector<1x256xf32> to vector<1x226xf32>
    %430 = tpu.concatenate %428, %429 in 1 : vector<1x30xf32>, vector<1x226xf32> -> vector<1x256xf32>
    %431 = vector.extract_strided_slice %4 {offsets = [0, 226], sizes = [1, 30], strides = [1, 1]} : vector<1x256xf32> to vector<1x30xf32>
    %432 = vector.extract_strided_slice %4 {offsets = [0, 0], sizes = [1, 226], strides = [1, 1]} : vector<1x256xf32> to vector<1x226xf32>
    %433 = tpu.concatenate %431, %432 in 1 : vector<1x30xf32>, vector<1x226xf32> -> vector<1x256xf32>
    %cst_118 = arith.constant -2.000000e+00 : f32
    %434 = vector.broadcast %cst_118 : f32 to vector<1x256xf32>
    %435 = arith.addf %5, %434 : vector<1x256xf32>
    %cst_119 = arith.constant 0.000000e+00 : f32
    %436 = vector.broadcast %cst_119 : f32 to vector<1x256xf32>
    %437 = arith.cmpf oge, %435, %436 : vector<1x256xf32>
    %cst_120 = arith.constant -2.000000e+00 : f32
    %438 = vector.broadcast %cst_120 : f32 to vector<1x256xf32>
    %439 = arith.addf %5, %438 : vector<1x256xf32>
    %cst_121 = arith.constant 1.500000e+01 : f32
    %440 = vector.broadcast %cst_121 : f32 to vector<1x256xf32>
    %441 = arith.cmpf ole, %439, %440 : vector<1x256xf32>
    %442 = arith.andi %437, %441 : vector<1x256xi1>
    %cst_122 = arith.constant 2.000000e+00 : f32
    %443 = vector.broadcast %cst_122 : f32 to vector<1x256xf32>
    %444 = arith.addf %6, %443 : vector<1x256xf32>
    %cst_123 = arith.constant 0.000000e+00 : f32
    %445 = vector.broadcast %cst_123 : f32 to vector<1x256xf32>
    %446 = arith.cmpf oge, %444, %445 : vector<1x256xf32>
    %447 = arith.andi %442, %446 : vector<1x256xi1>
    %cst_124 = arith.constant 2.000000e+00 : f32
    %448 = vector.broadcast %cst_124 : f32 to vector<1x256xf32>
    %449 = arith.addf %6, %448 : vector<1x256xf32>
    %cst_125 = arith.constant 1.500000e+01 : f32
    %450 = vector.broadcast %cst_125 : f32 to vector<1x256xf32>
    %451 = arith.cmpf ole, %449, %450 : vector<1x256xf32>
    %452 = arith.andi %447, %451 : vector<1x256xi1>
    %c12 = arith.constant 12 : index
    %453 = memref.load %arg1[%c12] : memref<98xf32, #tpu.memory_space<smem>>
    %c61 = arith.constant 61 : index
    %454 = memref.load %arg1[%c61] : memref<98xf32, #tpu.memory_space<smem>>
    %455 = vector.broadcast %453 : f32 to vector<1x256xf32>
    %456 = arith.mulf %455, %430 : vector<1x256xf32>
    %457 = vector.broadcast %454 : f32 to vector<1x256xf32>
    %458 = arith.mulf %457, %433 : vector<1x256xf32>
    %459 = arith.addf %456, %458 : vector<1x256xf32>
    %cst_126 = arith.constant 0.000000e+00 : f32
    %460 = vector.broadcast %cst_126 : f32 to vector<1x256xf32>
    %461 = arith.select %452, %459, %460 : vector<1x256xi1>, vector<1x256xf32>
    %462 = arith.addf %427, %461 : vector<1x256xf32>
    %463 = vector.extract_strided_slice %1 {offsets = [0, 227], sizes = [1, 29], strides = [1, 1]} : vector<1x256xf32> to vector<1x29xf32>
    %464 = vector.extract_strided_slice %1 {offsets = [0, 0], sizes = [1, 227], strides = [1, 1]} : vector<1x256xf32> to vector<1x227xf32>
    %465 = tpu.concatenate %463, %464 in 1 : vector<1x29xf32>, vector<1x227xf32> -> vector<1x256xf32>
    %466 = vector.extract_strided_slice %4 {offsets = [0, 227], sizes = [1, 29], strides = [1, 1]} : vector<1x256xf32> to vector<1x29xf32>
    %467 = vector.extract_strided_slice %4 {offsets = [0, 0], sizes = [1, 227], strides = [1, 1]} : vector<1x256xf32> to vector<1x227xf32>
    %468 = tpu.concatenate %466, %467 in 1 : vector<1x29xf32>, vector<1x227xf32> -> vector<1x256xf32>
    %cst_127 = arith.constant -2.000000e+00 : f32
    %469 = vector.broadcast %cst_127 : f32 to vector<1x256xf32>
    %470 = arith.addf %5, %469 : vector<1x256xf32>
    %cst_128 = arith.constant 0.000000e+00 : f32
    %471 = vector.broadcast %cst_128 : f32 to vector<1x256xf32>
    %472 = arith.cmpf oge, %470, %471 : vector<1x256xf32>
    %cst_129 = arith.constant -2.000000e+00 : f32
    %473 = vector.broadcast %cst_129 : f32 to vector<1x256xf32>
    %474 = arith.addf %5, %473 : vector<1x256xf32>
    %cst_130 = arith.constant 1.500000e+01 : f32
    %475 = vector.broadcast %cst_130 : f32 to vector<1x256xf32>
    %476 = arith.cmpf ole, %474, %475 : vector<1x256xf32>
    %477 = arith.andi %472, %476 : vector<1x256xi1>
    %cst_131 = arith.constant 3.000000e+00 : f32
    %478 = vector.broadcast %cst_131 : f32 to vector<1x256xf32>
    %479 = arith.addf %6, %478 : vector<1x256xf32>
    %cst_132 = arith.constant 0.000000e+00 : f32
    %480 = vector.broadcast %cst_132 : f32 to vector<1x256xf32>
    %481 = arith.cmpf oge, %479, %480 : vector<1x256xf32>
    %482 = arith.andi %477, %481 : vector<1x256xi1>
    %cst_133 = arith.constant 3.000000e+00 : f32
    %483 = vector.broadcast %cst_133 : f32 to vector<1x256xf32>
    %484 = arith.addf %6, %483 : vector<1x256xf32>
    %cst_134 = arith.constant 1.500000e+01 : f32
    %485 = vector.broadcast %cst_134 : f32 to vector<1x256xf32>
    %486 = arith.cmpf ole, %484, %485 : vector<1x256xf32>
    %487 = arith.andi %482, %486 : vector<1x256xi1>
    %c13 = arith.constant 13 : index
    %488 = memref.load %arg1[%c13] : memref<98xf32, #tpu.memory_space<smem>>
    %c62 = arith.constant 62 : index
    %489 = memref.load %arg1[%c62] : memref<98xf32, #tpu.memory_space<smem>>
    %490 = vector.broadcast %488 : f32 to vector<1x256xf32>
    %491 = arith.mulf %490, %465 : vector<1x256xf32>
    %492 = vector.broadcast %489 : f32 to vector<1x256xf32>
    %493 = arith.mulf %492, %468 : vector<1x256xf32>
    %494 = arith.addf %491, %493 : vector<1x256xf32>
    %cst_135 = arith.constant 0.000000e+00 : f32
    %495 = vector.broadcast %cst_135 : f32 to vector<1x256xf32>
    %496 = arith.select %487, %494, %495 : vector<1x256xi1>, vector<1x256xf32>
    %497 = arith.addf %462, %496 : vector<1x256xf32>
    %498 = vector.extract_strided_slice %1 {offsets = [0, 237], sizes = [1, 19], strides = [1, 1]} : vector<1x256xf32> to vector<1x19xf32>
    %499 = vector.extract_strided_slice %1 {offsets = [0, 0], sizes = [1, 237], strides = [1, 1]} : vector<1x256xf32> to vector<1x237xf32>
    %500 = tpu.concatenate %498, %499 in 1 : vector<1x19xf32>, vector<1x237xf32> -> vector<1x256xf32>
    %501 = vector.extract_strided_slice %4 {offsets = [0, 237], sizes = [1, 19], strides = [1, 1]} : vector<1x256xf32> to vector<1x19xf32>
    %502 = vector.extract_strided_slice %4 {offsets = [0, 0], sizes = [1, 237], strides = [1, 1]} : vector<1x256xf32> to vector<1x237xf32>
    %503 = tpu.concatenate %501, %502 in 1 : vector<1x19xf32>, vector<1x237xf32> -> vector<1x256xf32>
    %cst_136 = arith.constant -1.000000e+00 : f32
    %504 = vector.broadcast %cst_136 : f32 to vector<1x256xf32>
    %505 = arith.addf %5, %504 : vector<1x256xf32>
    %cst_137 = arith.constant 0.000000e+00 : f32
    %506 = vector.broadcast %cst_137 : f32 to vector<1x256xf32>
    %507 = arith.cmpf oge, %505, %506 : vector<1x256xf32>
    %cst_138 = arith.constant -1.000000e+00 : f32
    %508 = vector.broadcast %cst_138 : f32 to vector<1x256xf32>
    %509 = arith.addf %5, %508 : vector<1x256xf32>
    %cst_139 = arith.constant 1.500000e+01 : f32
    %510 = vector.broadcast %cst_139 : f32 to vector<1x256xf32>
    %511 = arith.cmpf ole, %509, %510 : vector<1x256xf32>
    %512 = arith.andi %507, %511 : vector<1x256xi1>
    %cst_140 = arith.constant -3.000000e+00 : f32
    %513 = vector.broadcast %cst_140 : f32 to vector<1x256xf32>
    %514 = arith.addf %6, %513 : vector<1x256xf32>
    %cst_141 = arith.constant 0.000000e+00 : f32
    %515 = vector.broadcast %cst_141 : f32 to vector<1x256xf32>
    %516 = arith.cmpf oge, %514, %515 : vector<1x256xf32>
    %517 = arith.andi %512, %516 : vector<1x256xi1>
    %cst_142 = arith.constant -3.000000e+00 : f32
    %518 = vector.broadcast %cst_142 : f32 to vector<1x256xf32>
    %519 = arith.addf %6, %518 : vector<1x256xf32>
    %cst_143 = arith.constant 1.500000e+01 : f32
    %520 = vector.broadcast %cst_143 : f32 to vector<1x256xf32>
    %521 = arith.cmpf ole, %519, %520 : vector<1x256xf32>
    %522 = arith.andi %517, %521 : vector<1x256xi1>
    %c14 = arith.constant 14 : index
    %523 = memref.load %arg1[%c14] : memref<98xf32, #tpu.memory_space<smem>>
    %c63 = arith.constant 63 : index
    %524 = memref.load %arg1[%c63] : memref<98xf32, #tpu.memory_space<smem>>
    %525 = vector.broadcast %523 : f32 to vector<1x256xf32>
    %526 = arith.mulf %525, %500 : vector<1x256xf32>
    %527 = vector.broadcast %524 : f32 to vector<1x256xf32>
    %528 = arith.mulf %527, %503 : vector<1x256xf32>
    %529 = arith.addf %526, %528 : vector<1x256xf32>
    %cst_144 = arith.constant 0.000000e+00 : f32
    %530 = vector.broadcast %cst_144 : f32 to vector<1x256xf32>
    %531 = arith.select %522, %529, %530 : vector<1x256xi1>, vector<1x256xf32>
    %532 = arith.addf %497, %531 : vector<1x256xf32>
    %533 = vector.extract_strided_slice %1 {offsets = [0, 238], sizes = [1, 18], strides = [1, 1]} : vector<1x256xf32> to vector<1x18xf32>
    %534 = vector.extract_strided_slice %1 {offsets = [0, 0], sizes = [1, 238], strides = [1, 1]} : vector<1x256xf32> to vector<1x238xf32>
    %535 = tpu.concatenate %533, %534 in 1 : vector<1x18xf32>, vector<1x238xf32> -> vector<1x256xf32>
    %536 = vector.extract_strided_slice %4 {offsets = [0, 238], sizes = [1, 18], strides = [1, 1]} : vector<1x256xf32> to vector<1x18xf32>
    %537 = vector.extract_strided_slice %4 {offsets = [0, 0], sizes = [1, 238], strides = [1, 1]} : vector<1x256xf32> to vector<1x238xf32>
    %538 = tpu.concatenate %536, %537 in 1 : vector<1x18xf32>, vector<1x238xf32> -> vector<1x256xf32>
    %cst_145 = arith.constant -1.000000e+00 : f32
    %539 = vector.broadcast %cst_145 : f32 to vector<1x256xf32>
    %540 = arith.addf %5, %539 : vector<1x256xf32>
    %cst_146 = arith.constant 0.000000e+00 : f32
    %541 = vector.broadcast %cst_146 : f32 to vector<1x256xf32>
    %542 = arith.cmpf oge, %540, %541 : vector<1x256xf32>
    %cst_147 = arith.constant -1.000000e+00 : f32
    %543 = vector.broadcast %cst_147 : f32 to vector<1x256xf32>
    %544 = arith.addf %5, %543 : vector<1x256xf32>
    %cst_148 = arith.constant 1.500000e+01 : f32
    %545 = vector.broadcast %cst_148 : f32 to vector<1x256xf32>
    %546 = arith.cmpf ole, %544, %545 : vector<1x256xf32>
    %547 = arith.andi %542, %546 : vector<1x256xi1>
    %cst_149 = arith.constant -2.000000e+00 : f32
    %548 = vector.broadcast %cst_149 : f32 to vector<1x256xf32>
    %549 = arith.addf %6, %548 : vector<1x256xf32>
    %cst_150 = arith.constant 0.000000e+00 : f32
    %550 = vector.broadcast %cst_150 : f32 to vector<1x256xf32>
    %551 = arith.cmpf oge, %549, %550 : vector<1x256xf32>
    %552 = arith.andi %547, %551 : vector<1x256xi1>
    %cst_151 = arith.constant -2.000000e+00 : f32
    %553 = vector.broadcast %cst_151 : f32 to vector<1x256xf32>
    %554 = arith.addf %6, %553 : vector<1x256xf32>
    %cst_152 = arith.constant 1.500000e+01 : f32
    %555 = vector.broadcast %cst_152 : f32 to vector<1x256xf32>
    %556 = arith.cmpf ole, %554, %555 : vector<1x256xf32>
    %557 = arith.andi %552, %556 : vector<1x256xi1>
    %c15 = arith.constant 15 : index
    %558 = memref.load %arg1[%c15] : memref<98xf32, #tpu.memory_space<smem>>
    %c64 = arith.constant 64 : index
    %559 = memref.load %arg1[%c64] : memref<98xf32, #tpu.memory_space<smem>>
    %560 = vector.broadcast %558 : f32 to vector<1x256xf32>
    %561 = arith.mulf %560, %535 : vector<1x256xf32>
    %562 = vector.broadcast %559 : f32 to vector<1x256xf32>
    %563 = arith.mulf %562, %538 : vector<1x256xf32>
    %564 = arith.addf %561, %563 : vector<1x256xf32>
    %cst_153 = arith.constant 0.000000e+00 : f32
    %565 = vector.broadcast %cst_153 : f32 to vector<1x256xf32>
    %566 = arith.select %557, %564, %565 : vector<1x256xi1>, vector<1x256xf32>
    %567 = arith.addf %532, %566 : vector<1x256xf32>
    %568 = vector.extract_strided_slice %1 {offsets = [0, 239], sizes = [1, 17], strides = [1, 1]} : vector<1x256xf32> to vector<1x17xf32>
    %569 = vector.extract_strided_slice %1 {offsets = [0, 0], sizes = [1, 239], strides = [1, 1]} : vector<1x256xf32> to vector<1x239xf32>
    %570 = tpu.concatenate %568, %569 in 1 : vector<1x17xf32>, vector<1x239xf32> -> vector<1x256xf32>
    %571 = vector.extract_strided_slice %4 {offsets = [0, 239], sizes = [1, 17], strides = [1, 1]} : vector<1x256xf32> to vector<1x17xf32>
    %572 = vector.extract_strided_slice %4 {offsets = [0, 0], sizes = [1, 239], strides = [1, 1]} : vector<1x256xf32> to vector<1x239xf32>
    %573 = tpu.concatenate %571, %572 in 1 : vector<1x17xf32>, vector<1x239xf32> -> vector<1x256xf32>
    %cst_154 = arith.constant -1.000000e+00 : f32
    %574 = vector.broadcast %cst_154 : f32 to vector<1x256xf32>
    %575 = arith.addf %5, %574 : vector<1x256xf32>
    %cst_155 = arith.constant 0.000000e+00 : f32
    %576 = vector.broadcast %cst_155 : f32 to vector<1x256xf32>
    %577 = arith.cmpf oge, %575, %576 : vector<1x256xf32>
    %cst_156 = arith.constant -1.000000e+00 : f32
    %578 = vector.broadcast %cst_156 : f32 to vector<1x256xf32>
    %579 = arith.addf %5, %578 : vector<1x256xf32>
    %cst_157 = arith.constant 1.500000e+01 : f32
    %580 = vector.broadcast %cst_157 : f32 to vector<1x256xf32>
    %581 = arith.cmpf ole, %579, %580 : vector<1x256xf32>
    %582 = arith.andi %577, %581 : vector<1x256xi1>
    %cst_158 = arith.constant -1.000000e+00 : f32
    %583 = vector.broadcast %cst_158 : f32 to vector<1x256xf32>
    %584 = arith.addf %6, %583 : vector<1x256xf32>
    %cst_159 = arith.constant 0.000000e+00 : f32
    %585 = vector.broadcast %cst_159 : f32 to vector<1x256xf32>
    %586 = arith.cmpf oge, %584, %585 : vector<1x256xf32>
    %587 = arith.andi %582, %586 : vector<1x256xi1>
    %cst_160 = arith.constant -1.000000e+00 : f32
    %588 = vector.broadcast %cst_160 : f32 to vector<1x256xf32>
    %589 = arith.addf %6, %588 : vector<1x256xf32>
    %cst_161 = arith.constant 1.500000e+01 : f32
    %590 = vector.broadcast %cst_161 : f32 to vector<1x256xf32>
    %591 = arith.cmpf ole, %589, %590 : vector<1x256xf32>
    %592 = arith.andi %587, %591 : vector<1x256xi1>
    %c16 = arith.constant 16 : index
    %593 = memref.load %arg1[%c16] : memref<98xf32, #tpu.memory_space<smem>>
    %c65 = arith.constant 65 : index
    %594 = memref.load %arg1[%c65] : memref<98xf32, #tpu.memory_space<smem>>
    %595 = vector.broadcast %593 : f32 to vector<1x256xf32>
    %596 = arith.mulf %595, %570 : vector<1x256xf32>
    %597 = vector.broadcast %594 : f32 to vector<1x256xf32>
    %598 = arith.mulf %597, %573 : vector<1x256xf32>
    %599 = arith.addf %596, %598 : vector<1x256xf32>
    %cst_162 = arith.constant 0.000000e+00 : f32
    %600 = vector.broadcast %cst_162 : f32 to vector<1x256xf32>
    %601 = arith.select %592, %599, %600 : vector<1x256xi1>, vector<1x256xf32>
    %602 = arith.addf %567, %601 : vector<1x256xf32>
    %603 = vector.extract_strided_slice %1 {offsets = [0, 240], sizes = [1, 16], strides = [1, 1]} : vector<1x256xf32> to vector<1x16xf32>
    %604 = vector.extract_strided_slice %1 {offsets = [0, 0], sizes = [1, 240], strides = [1, 1]} : vector<1x256xf32> to vector<1x240xf32>
    %605 = tpu.concatenate %603, %604 in 1 : vector<1x16xf32>, vector<1x240xf32> -> vector<1x256xf32>
    %606 = vector.extract_strided_slice %4 {offsets = [0, 240], sizes = [1, 16], strides = [1, 1]} : vector<1x256xf32> to vector<1x16xf32>
    %607 = vector.extract_strided_slice %4 {offsets = [0, 0], sizes = [1, 240], strides = [1, 1]} : vector<1x256xf32> to vector<1x240xf32>
    %608 = tpu.concatenate %606, %607 in 1 : vector<1x16xf32>, vector<1x240xf32> -> vector<1x256xf32>
    %cst_163 = arith.constant -1.000000e+00 : f32
    %609 = vector.broadcast %cst_163 : f32 to vector<1x256xf32>
    %610 = arith.addf %5, %609 : vector<1x256xf32>
    %cst_164 = arith.constant 0.000000e+00 : f32
    %611 = vector.broadcast %cst_164 : f32 to vector<1x256xf32>
    %612 = arith.cmpf oge, %610, %611 : vector<1x256xf32>
    %cst_165 = arith.constant -1.000000e+00 : f32
    %613 = vector.broadcast %cst_165 : f32 to vector<1x256xf32>
    %614 = arith.addf %5, %613 : vector<1x256xf32>
    %cst_166 = arith.constant 1.500000e+01 : f32
    %615 = vector.broadcast %cst_166 : f32 to vector<1x256xf32>
    %616 = arith.cmpf ole, %614, %615 : vector<1x256xf32>
    %617 = arith.andi %612, %616 : vector<1x256xi1>
    %cst_167 = arith.constant 0.000000e+00 : f32
    %618 = vector.broadcast %cst_167 : f32 to vector<1x256xf32>
    %619 = arith.addf %6, %618 : vector<1x256xf32>
    %cst_168 = arith.constant 0.000000e+00 : f32
    %620 = vector.broadcast %cst_168 : f32 to vector<1x256xf32>
    %621 = arith.cmpf oge, %619, %620 : vector<1x256xf32>
    %622 = arith.andi %617, %621 : vector<1x256xi1>
    %cst_169 = arith.constant 0.000000e+00 : f32
    %623 = vector.broadcast %cst_169 : f32 to vector<1x256xf32>
    %624 = arith.addf %6, %623 : vector<1x256xf32>
    %cst_170 = arith.constant 1.500000e+01 : f32
    %625 = vector.broadcast %cst_170 : f32 to vector<1x256xf32>
    %626 = arith.cmpf ole, %624, %625 : vector<1x256xf32>
    %627 = arith.andi %622, %626 : vector<1x256xi1>
    %c17 = arith.constant 17 : index
    %628 = memref.load %arg1[%c17] : memref<98xf32, #tpu.memory_space<smem>>
    %c66 = arith.constant 66 : index
    %629 = memref.load %arg1[%c66] : memref<98xf32, #tpu.memory_space<smem>>
    %630 = vector.broadcast %628 : f32 to vector<1x256xf32>
    %631 = arith.mulf %630, %605 : vector<1x256xf32>
    %632 = vector.broadcast %629 : f32 to vector<1x256xf32>
    %633 = arith.mulf %632, %608 : vector<1x256xf32>
    %634 = arith.addf %631, %633 : vector<1x256xf32>
    %cst_171 = arith.constant 0.000000e+00 : f32
    %635 = vector.broadcast %cst_171 : f32 to vector<1x256xf32>
    %636 = arith.select %627, %634, %635 : vector<1x256xi1>, vector<1x256xf32>
    %637 = arith.addf %602, %636 : vector<1x256xf32>
    %638 = vector.extract_strided_slice %1 {offsets = [0, 241], sizes = [1, 15], strides = [1, 1]} : vector<1x256xf32> to vector<1x15xf32>
    %639 = vector.extract_strided_slice %1 {offsets = [0, 0], sizes = [1, 241], strides = [1, 1]} : vector<1x256xf32> to vector<1x241xf32>
    %640 = tpu.concatenate %638, %639 in 1 : vector<1x15xf32>, vector<1x241xf32> -> vector<1x256xf32>
    %641 = vector.extract_strided_slice %4 {offsets = [0, 241], sizes = [1, 15], strides = [1, 1]} : vector<1x256xf32> to vector<1x15xf32>
    %642 = vector.extract_strided_slice %4 {offsets = [0, 0], sizes = [1, 241], strides = [1, 1]} : vector<1x256xf32> to vector<1x241xf32>
    %643 = tpu.concatenate %641, %642 in 1 : vector<1x15xf32>, vector<1x241xf32> -> vector<1x256xf32>
    %cst_172 = arith.constant -1.000000e+00 : f32
    %644 = vector.broadcast %cst_172 : f32 to vector<1x256xf32>
    %645 = arith.addf %5, %644 : vector<1x256xf32>
    %cst_173 = arith.constant 0.000000e+00 : f32
    %646 = vector.broadcast %cst_173 : f32 to vector<1x256xf32>
    %647 = arith.cmpf oge, %645, %646 : vector<1x256xf32>
    %cst_174 = arith.constant -1.000000e+00 : f32
    %648 = vector.broadcast %cst_174 : f32 to vector<1x256xf32>
    %649 = arith.addf %5, %648 : vector<1x256xf32>
    %cst_175 = arith.constant 1.500000e+01 : f32
    %650 = vector.broadcast %cst_175 : f32 to vector<1x256xf32>
    %651 = arith.cmpf ole, %649, %650 : vector<1x256xf32>
    %652 = arith.andi %647, %651 : vector<1x256xi1>
    %cst_176 = arith.constant 1.000000e+00 : f32
    %653 = vector.broadcast %cst_176 : f32 to vector<1x256xf32>
    %654 = arith.addf %6, %653 : vector<1x256xf32>
    %cst_177 = arith.constant 0.000000e+00 : f32
    %655 = vector.broadcast %cst_177 : f32 to vector<1x256xf32>
    %656 = arith.cmpf oge, %654, %655 : vector<1x256xf32>
    %657 = arith.andi %652, %656 : vector<1x256xi1>
    %cst_178 = arith.constant 1.000000e+00 : f32
    %658 = vector.broadcast %cst_178 : f32 to vector<1x256xf32>
    %659 = arith.addf %6, %658 : vector<1x256xf32>
    %cst_179 = arith.constant 1.500000e+01 : f32
    %660 = vector.broadcast %cst_179 : f32 to vector<1x256xf32>
    %661 = arith.cmpf ole, %659, %660 : vector<1x256xf32>
    %662 = arith.andi %657, %661 : vector<1x256xi1>
    %c18 = arith.constant 18 : index
    %663 = memref.load %arg1[%c18] : memref<98xf32, #tpu.memory_space<smem>>
    %c67 = arith.constant 67 : index
    %664 = memref.load %arg1[%c67] : memref<98xf32, #tpu.memory_space<smem>>
    %665 = vector.broadcast %663 : f32 to vector<1x256xf32>
    %666 = arith.mulf %665, %640 : vector<1x256xf32>
    %667 = vector.broadcast %664 : f32 to vector<1x256xf32>
    %668 = arith.mulf %667, %643 : vector<1x256xf32>
    %669 = arith.addf %666, %668 : vector<1x256xf32>
    %cst_180 = arith.constant 0.000000e+00 : f32
    %670 = vector.broadcast %cst_180 : f32 to vector<1x256xf32>
    %671 = arith.select %662, %669, %670 : vector<1x256xi1>, vector<1x256xf32>
    %672 = arith.addf %637, %671 : vector<1x256xf32>
    %673 = vector.extract_strided_slice %1 {offsets = [0, 242], sizes = [1, 14], strides = [1, 1]} : vector<1x256xf32> to vector<1x14xf32>
    %674 = vector.extract_strided_slice %1 {offsets = [0, 0], sizes = [1, 242], strides = [1, 1]} : vector<1x256xf32> to vector<1x242xf32>
    %675 = tpu.concatenate %673, %674 in 1 : vector<1x14xf32>, vector<1x242xf32> -> vector<1x256xf32>
    %676 = vector.extract_strided_slice %4 {offsets = [0, 242], sizes = [1, 14], strides = [1, 1]} : vector<1x256xf32> to vector<1x14xf32>
    %677 = vector.extract_strided_slice %4 {offsets = [0, 0], sizes = [1, 242], strides = [1, 1]} : vector<1x256xf32> to vector<1x242xf32>
    %678 = tpu.concatenate %676, %677 in 1 : vector<1x14xf32>, vector<1x242xf32> -> vector<1x256xf32>
    %cst_181 = arith.constant -1.000000e+00 : f32
    %679 = vector.broadcast %cst_181 : f32 to vector<1x256xf32>
    %680 = arith.addf %5, %679 : vector<1x256xf32>
    %cst_182 = arith.constant 0.000000e+00 : f32
    %681 = vector.broadcast %cst_182 : f32 to vector<1x256xf32>
    %682 = arith.cmpf oge, %680, %681 : vector<1x256xf32>
    %cst_183 = arith.constant -1.000000e+00 : f32
    %683 = vector.broadcast %cst_183 : f32 to vector<1x256xf32>
    %684 = arith.addf %5, %683 : vector<1x256xf32>
    %cst_184 = arith.constant 1.500000e+01 : f32
    %685 = vector.broadcast %cst_184 : f32 to vector<1x256xf32>
    %686 = arith.cmpf ole, %684, %685 : vector<1x256xf32>
    %687 = arith.andi %682, %686 : vector<1x256xi1>
    %cst_185 = arith.constant 2.000000e+00 : f32
    %688 = vector.broadcast %cst_185 : f32 to vector<1x256xf32>
    %689 = arith.addf %6, %688 : vector<1x256xf32>
    %cst_186 = arith.constant 0.000000e+00 : f32
    %690 = vector.broadcast %cst_186 : f32 to vector<1x256xf32>
    %691 = arith.cmpf oge, %689, %690 : vector<1x256xf32>
    %692 = arith.andi %687, %691 : vector<1x256xi1>
    %cst_187 = arith.constant 2.000000e+00 : f32
    %693 = vector.broadcast %cst_187 : f32 to vector<1x256xf32>
    %694 = arith.addf %6, %693 : vector<1x256xf32>
    %cst_188 = arith.constant 1.500000e+01 : f32
    %695 = vector.broadcast %cst_188 : f32 to vector<1x256xf32>
    %696 = arith.cmpf ole, %694, %695 : vector<1x256xf32>
    %697 = arith.andi %692, %696 : vector<1x256xi1>
    %c19 = arith.constant 19 : index
    %698 = memref.load %arg1[%c19] : memref<98xf32, #tpu.memory_space<smem>>
    %c68 = arith.constant 68 : index
    %699 = memref.load %arg1[%c68] : memref<98xf32, #tpu.memory_space<smem>>
    %700 = vector.broadcast %698 : f32 to vector<1x256xf32>
    %701 = arith.mulf %700, %675 : vector<1x256xf32>
    %702 = vector.broadcast %699 : f32 to vector<1x256xf32>
    %703 = arith.mulf %702, %678 : vector<1x256xf32>
    %704 = arith.addf %701, %703 : vector<1x256xf32>
    %cst_189 = arith.constant 0.000000e+00 : f32
    %705 = vector.broadcast %cst_189 : f32 to vector<1x256xf32>
    %706 = arith.select %697, %704, %705 : vector<1x256xi1>, vector<1x256xf32>
    %707 = arith.addf %672, %706 : vector<1x256xf32>
    %708 = vector.extract_strided_slice %1 {offsets = [0, 243], sizes = [1, 13], strides = [1, 1]} : vector<1x256xf32> to vector<1x13xf32>
    %709 = vector.extract_strided_slice %1 {offsets = [0, 0], sizes = [1, 243], strides = [1, 1]} : vector<1x256xf32> to vector<1x243xf32>
    %710 = tpu.concatenate %708, %709 in 1 : vector<1x13xf32>, vector<1x243xf32> -> vector<1x256xf32>
    %711 = vector.extract_strided_slice %4 {offsets = [0, 243], sizes = [1, 13], strides = [1, 1]} : vector<1x256xf32> to vector<1x13xf32>
    %712 = vector.extract_strided_slice %4 {offsets = [0, 0], sizes = [1, 243], strides = [1, 1]} : vector<1x256xf32> to vector<1x243xf32>
    %713 = tpu.concatenate %711, %712 in 1 : vector<1x13xf32>, vector<1x243xf32> -> vector<1x256xf32>
    %cst_190 = arith.constant -1.000000e+00 : f32
    %714 = vector.broadcast %cst_190 : f32 to vector<1x256xf32>
    %715 = arith.addf %5, %714 : vector<1x256xf32>
    %cst_191 = arith.constant 0.000000e+00 : f32
    %716 = vector.broadcast %cst_191 : f32 to vector<1x256xf32>
    %717 = arith.cmpf oge, %715, %716 : vector<1x256xf32>
    %cst_192 = arith.constant -1.000000e+00 : f32
    %718 = vector.broadcast %cst_192 : f32 to vector<1x256xf32>
    %719 = arith.addf %5, %718 : vector<1x256xf32>
    %cst_193 = arith.constant 1.500000e+01 : f32
    %720 = vector.broadcast %cst_193 : f32 to vector<1x256xf32>
    %721 = arith.cmpf ole, %719, %720 : vector<1x256xf32>
    %722 = arith.andi %717, %721 : vector<1x256xi1>
    %cst_194 = arith.constant 3.000000e+00 : f32
    %723 = vector.broadcast %cst_194 : f32 to vector<1x256xf32>
    %724 = arith.addf %6, %723 : vector<1x256xf32>
    %cst_195 = arith.constant 0.000000e+00 : f32
    %725 = vector.broadcast %cst_195 : f32 to vector<1x256xf32>
    %726 = arith.cmpf oge, %724, %725 : vector<1x256xf32>
    %727 = arith.andi %722, %726 : vector<1x256xi1>
    %cst_196 = arith.constant 3.000000e+00 : f32
    %728 = vector.broadcast %cst_196 : f32 to vector<1x256xf32>
    %729 = arith.addf %6, %728 : vector<1x256xf32>
    %cst_197 = arith.constant 1.500000e+01 : f32
    %730 = vector.broadcast %cst_197 : f32 to vector<1x256xf32>
    %731 = arith.cmpf ole, %729, %730 : vector<1x256xf32>
    %732 = arith.andi %727, %731 : vector<1x256xi1>
    %c20 = arith.constant 20 : index
    %733 = memref.load %arg1[%c20] : memref<98xf32, #tpu.memory_space<smem>>
    %c69 = arith.constant 69 : index
    %734 = memref.load %arg1[%c69] : memref<98xf32, #tpu.memory_space<smem>>
    %735 = vector.broadcast %733 : f32 to vector<1x256xf32>
    %736 = arith.mulf %735, %710 : vector<1x256xf32>
    %737 = vector.broadcast %734 : f32 to vector<1x256xf32>
    %738 = arith.mulf %737, %713 : vector<1x256xf32>
    %739 = arith.addf %736, %738 : vector<1x256xf32>
    %cst_198 = arith.constant 0.000000e+00 : f32
    %740 = vector.broadcast %cst_198 : f32 to vector<1x256xf32>
    %741 = arith.select %732, %739, %740 : vector<1x256xi1>, vector<1x256xf32>
    %742 = arith.addf %707, %741 : vector<1x256xf32>
    %743 = vector.extract_strided_slice %1 {offsets = [0, 253], sizes = [1, 3], strides = [1, 1]} : vector<1x256xf32> to vector<1x3xf32>
    %744 = vector.extract_strided_slice %1 {offsets = [0, 0], sizes = [1, 253], strides = [1, 1]} : vector<1x256xf32> to vector<1x253xf32>
    %745 = tpu.concatenate %743, %744 in 1 : vector<1x3xf32>, vector<1x253xf32> -> vector<1x256xf32>
    %746 = vector.extract_strided_slice %4 {offsets = [0, 253], sizes = [1, 3], strides = [1, 1]} : vector<1x256xf32> to vector<1x3xf32>
    %747 = vector.extract_strided_slice %4 {offsets = [0, 0], sizes = [1, 253], strides = [1, 1]} : vector<1x256xf32> to vector<1x253xf32>
    %748 = tpu.concatenate %746, %747 in 1 : vector<1x3xf32>, vector<1x253xf32> -> vector<1x256xf32>
    %cst_199 = arith.constant 0.000000e+00 : f32
    %749 = vector.broadcast %cst_199 : f32 to vector<1x256xf32>
    %750 = arith.addf %5, %749 : vector<1x256xf32>
    %cst_200 = arith.constant 0.000000e+00 : f32
    %751 = vector.broadcast %cst_200 : f32 to vector<1x256xf32>
    %752 = arith.cmpf oge, %750, %751 : vector<1x256xf32>
    %cst_201 = arith.constant 0.000000e+00 : f32
    %753 = vector.broadcast %cst_201 : f32 to vector<1x256xf32>
    %754 = arith.addf %5, %753 : vector<1x256xf32>
    %cst_202 = arith.constant 1.500000e+01 : f32
    %755 = vector.broadcast %cst_202 : f32 to vector<1x256xf32>
    %756 = arith.cmpf ole, %754, %755 : vector<1x256xf32>
    %757 = arith.andi %752, %756 : vector<1x256xi1>
    %cst_203 = arith.constant -3.000000e+00 : f32
    %758 = vector.broadcast %cst_203 : f32 to vector<1x256xf32>
    %759 = arith.addf %6, %758 : vector<1x256xf32>
    %cst_204 = arith.constant 0.000000e+00 : f32
    %760 = vector.broadcast %cst_204 : f32 to vector<1x256xf32>
    %761 = arith.cmpf oge, %759, %760 : vector<1x256xf32>
    %762 = arith.andi %757, %761 : vector<1x256xi1>
    %cst_205 = arith.constant -3.000000e+00 : f32
    %763 = vector.broadcast %cst_205 : f32 to vector<1x256xf32>
    %764 = arith.addf %6, %763 : vector<1x256xf32>
    %cst_206 = arith.constant 1.500000e+01 : f32
    %765 = vector.broadcast %cst_206 : f32 to vector<1x256xf32>
    %766 = arith.cmpf ole, %764, %765 : vector<1x256xf32>
    %767 = arith.andi %762, %766 : vector<1x256xi1>
    %c21 = arith.constant 21 : index
    %768 = memref.load %arg1[%c21] : memref<98xf32, #tpu.memory_space<smem>>
    %c70 = arith.constant 70 : index
    %769 = memref.load %arg1[%c70] : memref<98xf32, #tpu.memory_space<smem>>
    %770 = vector.broadcast %768 : f32 to vector<1x256xf32>
    %771 = arith.mulf %770, %745 : vector<1x256xf32>
    %772 = vector.broadcast %769 : f32 to vector<1x256xf32>
    %773 = arith.mulf %772, %748 : vector<1x256xf32>
    %774 = arith.addf %771, %773 : vector<1x256xf32>
    %cst_207 = arith.constant 0.000000e+00 : f32
    %775 = vector.broadcast %cst_207 : f32 to vector<1x256xf32>
    %776 = arith.select %767, %774, %775 : vector<1x256xi1>, vector<1x256xf32>
    %777 = arith.addf %742, %776 : vector<1x256xf32>
    %778 = vector.extract_strided_slice %1 {offsets = [0, 254], sizes = [1, 2], strides = [1, 1]} : vector<1x256xf32> to vector<1x2xf32>
    %779 = vector.extract_strided_slice %1 {offsets = [0, 0], sizes = [1, 254], strides = [1, 1]} : vector<1x256xf32> to vector<1x254xf32>
    %780 = tpu.concatenate %778, %779 in 1 : vector<1x2xf32>, vector<1x254xf32> -> vector<1x256xf32>
    %781 = vector.extract_strided_slice %4 {offsets = [0, 254], sizes = [1, 2], strides = [1, 1]} : vector<1x256xf32> to vector<1x2xf32>
    %782 = vector.extract_strided_slice %4 {offsets = [0, 0], sizes = [1, 254], strides = [1, 1]} : vector<1x256xf32> to vector<1x254xf32>
    %783 = tpu.concatenate %781, %782 in 1 : vector<1x2xf32>, vector<1x254xf32> -> vector<1x256xf32>
    %cst_208 = arith.constant 0.000000e+00 : f32
    %784 = vector.broadcast %cst_208 : f32 to vector<1x256xf32>
    %785 = arith.addf %5, %784 : vector<1x256xf32>
    %cst_209 = arith.constant 0.000000e+00 : f32
    %786 = vector.broadcast %cst_209 : f32 to vector<1x256xf32>
    %787 = arith.cmpf oge, %785, %786 : vector<1x256xf32>
    %cst_210 = arith.constant 0.000000e+00 : f32
    %788 = vector.broadcast %cst_210 : f32 to vector<1x256xf32>
    %789 = arith.addf %5, %788 : vector<1x256xf32>
    %cst_211 = arith.constant 1.500000e+01 : f32
    %790 = vector.broadcast %cst_211 : f32 to vector<1x256xf32>
    %791 = arith.cmpf ole, %789, %790 : vector<1x256xf32>
    %792 = arith.andi %787, %791 : vector<1x256xi1>
    %cst_212 = arith.constant -2.000000e+00 : f32
    %793 = vector.broadcast %cst_212 : f32 to vector<1x256xf32>
    %794 = arith.addf %6, %793 : vector<1x256xf32>
    %cst_213 = arith.constant 0.000000e+00 : f32
    %795 = vector.broadcast %cst_213 : f32 to vector<1x256xf32>
    %796 = arith.cmpf oge, %794, %795 : vector<1x256xf32>
    %797 = arith.andi %792, %796 : vector<1x256xi1>
    %cst_214 = arith.constant -2.000000e+00 : f32
    %798 = vector.broadcast %cst_214 : f32 to vector<1x256xf32>
    %799 = arith.addf %6, %798 : vector<1x256xf32>
    %cst_215 = arith.constant 1.500000e+01 : f32
    %800 = vector.broadcast %cst_215 : f32 to vector<1x256xf32>
    %801 = arith.cmpf ole, %799, %800 : vector<1x256xf32>
    %802 = arith.andi %797, %801 : vector<1x256xi1>
    %c22 = arith.constant 22 : index
    %803 = memref.load %arg1[%c22] : memref<98xf32, #tpu.memory_space<smem>>
    %c71 = arith.constant 71 : index
    %804 = memref.load %arg1[%c71] : memref<98xf32, #tpu.memory_space<smem>>
    %805 = vector.broadcast %803 : f32 to vector<1x256xf32>
    %806 = arith.mulf %805, %780 : vector<1x256xf32>
    %807 = vector.broadcast %804 : f32 to vector<1x256xf32>
    %808 = arith.mulf %807, %783 : vector<1x256xf32>
    %809 = arith.addf %806, %808 : vector<1x256xf32>
    %cst_216 = arith.constant 0.000000e+00 : f32
    %810 = vector.broadcast %cst_216 : f32 to vector<1x256xf32>
    %811 = arith.select %802, %809, %810 : vector<1x256xi1>, vector<1x256xf32>
    %812 = arith.addf %777, %811 : vector<1x256xf32>
    %813 = vector.extract_strided_slice %1 {offsets = [0, 255], sizes = [1, 1], strides = [1, 1]} : vector<1x256xf32> to vector<1x1xf32>
    %814 = vector.extract_strided_slice %1 {offsets = [0, 0], sizes = [1, 255], strides = [1, 1]} : vector<1x256xf32> to vector<1x255xf32>
    %815 = tpu.concatenate %813, %814 in 1 : vector<1x1xf32>, vector<1x255xf32> -> vector<1x256xf32>
    %816 = vector.extract_strided_slice %4 {offsets = [0, 255], sizes = [1, 1], strides = [1, 1]} : vector<1x256xf32> to vector<1x1xf32>
    %817 = vector.extract_strided_slice %4 {offsets = [0, 0], sizes = [1, 255], strides = [1, 1]} : vector<1x256xf32> to vector<1x255xf32>
    %818 = tpu.concatenate %816, %817 in 1 : vector<1x1xf32>, vector<1x255xf32> -> vector<1x256xf32>
    %cst_217 = arith.constant 0.000000e+00 : f32
    %819 = vector.broadcast %cst_217 : f32 to vector<1x256xf32>
    %820 = arith.addf %5, %819 : vector<1x256xf32>
    %cst_218 = arith.constant 0.000000e+00 : f32
    %821 = vector.broadcast %cst_218 : f32 to vector<1x256xf32>
    %822 = arith.cmpf oge, %820, %821 : vector<1x256xf32>
    %cst_219 = arith.constant 0.000000e+00 : f32
    %823 = vector.broadcast %cst_219 : f32 to vector<1x256xf32>
    %824 = arith.addf %5, %823 : vector<1x256xf32>
    %cst_220 = arith.constant 1.500000e+01 : f32
    %825 = vector.broadcast %cst_220 : f32 to vector<1x256xf32>
    %826 = arith.cmpf ole, %824, %825 : vector<1x256xf32>
    %827 = arith.andi %822, %826 : vector<1x256xi1>
    %cst_221 = arith.constant -1.000000e+00 : f32
    %828 = vector.broadcast %cst_221 : f32 to vector<1x256xf32>
    %829 = arith.addf %6, %828 : vector<1x256xf32>
    %cst_222 = arith.constant 0.000000e+00 : f32
    %830 = vector.broadcast %cst_222 : f32 to vector<1x256xf32>
    %831 = arith.cmpf oge, %829, %830 : vector<1x256xf32>
    %832 = arith.andi %827, %831 : vector<1x256xi1>
    %cst_223 = arith.constant -1.000000e+00 : f32
    %833 = vector.broadcast %cst_223 : f32 to vector<1x256xf32>
    %834 = arith.addf %6, %833 : vector<1x256xf32>
    %cst_224 = arith.constant 1.500000e+01 : f32
    %835 = vector.broadcast %cst_224 : f32 to vector<1x256xf32>
    %836 = arith.cmpf ole, %834, %835 : vector<1x256xf32>
    %837 = arith.andi %832, %836 : vector<1x256xi1>
    %c23 = arith.constant 23 : index
    %838 = memref.load %arg1[%c23] : memref<98xf32, #tpu.memory_space<smem>>
    %c72 = arith.constant 72 : index
    %839 = memref.load %arg1[%c72] : memref<98xf32, #tpu.memory_space<smem>>
    %840 = vector.broadcast %838 : f32 to vector<1x256xf32>
    %841 = arith.mulf %840, %815 : vector<1x256xf32>
    %842 = vector.broadcast %839 : f32 to vector<1x256xf32>
    %843 = arith.mulf %842, %818 : vector<1x256xf32>
    %844 = arith.addf %841, %843 : vector<1x256xf32>
    %cst_225 = arith.constant 0.000000e+00 : f32
    %845 = vector.broadcast %cst_225 : f32 to vector<1x256xf32>
    %846 = arith.select %837, %844, %845 : vector<1x256xi1>, vector<1x256xf32>
    %847 = arith.addf %812, %846 : vector<1x256xf32>
    %cst_226 = arith.constant 0.000000e+00 : f32
    %848 = vector.broadcast %cst_226 : f32 to vector<1x256xf32>
    %849 = arith.addf %5, %848 : vector<1x256xf32>
    %cst_227 = arith.constant 0.000000e+00 : f32
    %850 = vector.broadcast %cst_227 : f32 to vector<1x256xf32>
    %851 = arith.cmpf oge, %849, %850 : vector<1x256xf32>
    %cst_228 = arith.constant 0.000000e+00 : f32
    %852 = vector.broadcast %cst_228 : f32 to vector<1x256xf32>
    %853 = arith.addf %5, %852 : vector<1x256xf32>
    %cst_229 = arith.constant 1.500000e+01 : f32
    %854 = vector.broadcast %cst_229 : f32 to vector<1x256xf32>
    %855 = arith.cmpf ole, %853, %854 : vector<1x256xf32>
    %856 = arith.andi %851, %855 : vector<1x256xi1>
    %cst_230 = arith.constant 0.000000e+00 : f32
    %857 = vector.broadcast %cst_230 : f32 to vector<1x256xf32>
    %858 = arith.addf %6, %857 : vector<1x256xf32>
    %cst_231 = arith.constant 0.000000e+00 : f32
    %859 = vector.broadcast %cst_231 : f32 to vector<1x256xf32>
    %860 = arith.cmpf oge, %858, %859 : vector<1x256xf32>
    %861 = arith.andi %856, %860 : vector<1x256xi1>
    %cst_232 = arith.constant 0.000000e+00 : f32
    %862 = vector.broadcast %cst_232 : f32 to vector<1x256xf32>
    %863 = arith.addf %6, %862 : vector<1x256xf32>
    %cst_233 = arith.constant 1.500000e+01 : f32
    %864 = vector.broadcast %cst_233 : f32 to vector<1x256xf32>
    %865 = arith.cmpf ole, %863, %864 : vector<1x256xf32>
    %866 = arith.andi %861, %865 : vector<1x256xi1>
    %c24 = arith.constant 24 : index
    %867 = memref.load %arg1[%c24] : memref<98xf32, #tpu.memory_space<smem>>
    %c73 = arith.constant 73 : index
    %868 = memref.load %arg1[%c73] : memref<98xf32, #tpu.memory_space<smem>>
    %869 = vector.broadcast %867 : f32 to vector<1x256xf32>
    %870 = arith.mulf %869, %1 : vector<1x256xf32>
    %871 = vector.broadcast %868 : f32 to vector<1x256xf32>
    %872 = arith.mulf %871, %4 : vector<1x256xf32>
    %873 = arith.addf %870, %872 : vector<1x256xf32>
    %cst_234 = arith.constant 0.000000e+00 : f32
    %874 = vector.broadcast %cst_234 : f32 to vector<1x256xf32>
    %875 = arith.select %866, %873, %874 : vector<1x256xi1>, vector<1x256xf32>
    %876 = arith.addf %847, %875 : vector<1x256xf32>
    %877 = vector.extract_strided_slice %1 {offsets = [0, 1], sizes = [1, 255], strides = [1, 1]} : vector<1x256xf32> to vector<1x255xf32>
    %878 = vector.extract_strided_slice %1 {offsets = [0, 0], sizes = [1, 1], strides = [1, 1]} : vector<1x256xf32> to vector<1x1xf32>
    %879 = tpu.concatenate %877, %878 in 1 : vector<1x255xf32>, vector<1x1xf32> -> vector<1x256xf32>
    %880 = vector.extract_strided_slice %4 {offsets = [0, 1], sizes = [1, 255], strides = [1, 1]} : vector<1x256xf32> to vector<1x255xf32>
    %881 = vector.extract_strided_slice %4 {offsets = [0, 0], sizes = [1, 1], strides = [1, 1]} : vector<1x256xf32> to vector<1x1xf32>
    %882 = tpu.concatenate %880, %881 in 1 : vector<1x255xf32>, vector<1x1xf32> -> vector<1x256xf32>
    %cst_235 = arith.constant 0.000000e+00 : f32
    %883 = vector.broadcast %cst_235 : f32 to vector<1x256xf32>
    %884 = arith.addf %5, %883 : vector<1x256xf32>
    %cst_236 = arith.constant 0.000000e+00 : f32
    %885 = vector.broadcast %cst_236 : f32 to vector<1x256xf32>
    %886 = arith.cmpf oge, %884, %885 : vector<1x256xf32>
    %cst_237 = arith.constant 0.000000e+00 : f32
    %887 = vector.broadcast %cst_237 : f32 to vector<1x256xf32>
    %888 = arith.addf %5, %887 : vector<1x256xf32>
    %cst_238 = arith.constant 1.500000e+01 : f32
    %889 = vector.broadcast %cst_238 : f32 to vector<1x256xf32>
    %890 = arith.cmpf ole, %888, %889 : vector<1x256xf32>
    %891 = arith.andi %886, %890 : vector<1x256xi1>
    %cst_239 = arith.constant 1.000000e+00 : f32
    %892 = vector.broadcast %cst_239 : f32 to vector<1x256xf32>
    %893 = arith.addf %6, %892 : vector<1x256xf32>
    %cst_240 = arith.constant 0.000000e+00 : f32
    %894 = vector.broadcast %cst_240 : f32 to vector<1x256xf32>
    %895 = arith.cmpf oge, %893, %894 : vector<1x256xf32>
    %896 = arith.andi %891, %895 : vector<1x256xi1>
    %cst_241 = arith.constant 1.000000e+00 : f32
    %897 = vector.broadcast %cst_241 : f32 to vector<1x256xf32>
    %898 = arith.addf %6, %897 : vector<1x256xf32>
    %cst_242 = arith.constant 1.500000e+01 : f32
    %899 = vector.broadcast %cst_242 : f32 to vector<1x256xf32>
    %900 = arith.cmpf ole, %898, %899 : vector<1x256xf32>
    %901 = arith.andi %896, %900 : vector<1x256xi1>
    %c25 = arith.constant 25 : index
    %902 = memref.load %arg1[%c25] : memref<98xf32, #tpu.memory_space<smem>>
    %c74 = arith.constant 74 : index
    %903 = memref.load %arg1[%c74] : memref<98xf32, #tpu.memory_space<smem>>
    %904 = vector.broadcast %902 : f32 to vector<1x256xf32>
    %905 = arith.mulf %904, %879 : vector<1x256xf32>
    %906 = vector.broadcast %903 : f32 to vector<1x256xf32>
    %907 = arith.mulf %906, %882 : vector<1x256xf32>
    %908 = arith.addf %905, %907 : vector<1x256xf32>
    %cst_243 = arith.constant 0.000000e+00 : f32
    %909 = vector.broadcast %cst_243 : f32 to vector<1x256xf32>
    %910 = arith.select %901, %908, %909 : vector<1x256xi1>, vector<1x256xf32>
    %911 = arith.addf %876, %910 : vector<1x256xf32>
    %912 = vector.extract_strided_slice %1 {offsets = [0, 2], sizes = [1, 254], strides = [1, 1]} : vector<1x256xf32> to vector<1x254xf32>
    %913 = vector.extract_strided_slice %1 {offsets = [0, 0], sizes = [1, 2], strides = [1, 1]} : vector<1x256xf32> to vector<1x2xf32>
    %914 = tpu.concatenate %912, %913 in 1 : vector<1x254xf32>, vector<1x2xf32> -> vector<1x256xf32>
    %915 = vector.extract_strided_slice %4 {offsets = [0, 2], sizes = [1, 254], strides = [1, 1]} : vector<1x256xf32> to vector<1x254xf32>
    %916 = vector.extract_strided_slice %4 {offsets = [0, 0], sizes = [1, 2], strides = [1, 1]} : vector<1x256xf32> to vector<1x2xf32>
    %917 = tpu.concatenate %915, %916 in 1 : vector<1x254xf32>, vector<1x2xf32> -> vector<1x256xf32>
    %cst_244 = arith.constant 0.000000e+00 : f32
    %918 = vector.broadcast %cst_244 : f32 to vector<1x256xf32>
    %919 = arith.addf %5, %918 : vector<1x256xf32>
    %cst_245 = arith.constant 0.000000e+00 : f32
    %920 = vector.broadcast %cst_245 : f32 to vector<1x256xf32>
    %921 = arith.cmpf oge, %919, %920 : vector<1x256xf32>
    %cst_246 = arith.constant 0.000000e+00 : f32
    %922 = vector.broadcast %cst_246 : f32 to vector<1x256xf32>
    %923 = arith.addf %5, %922 : vector<1x256xf32>
    %cst_247 = arith.constant 1.500000e+01 : f32
    %924 = vector.broadcast %cst_247 : f32 to vector<1x256xf32>
    %925 = arith.cmpf ole, %923, %924 : vector<1x256xf32>
    %926 = arith.andi %921, %925 : vector<1x256xi1>
    %cst_248 = arith.constant 2.000000e+00 : f32
    %927 = vector.broadcast %cst_248 : f32 to vector<1x256xf32>
    %928 = arith.addf %6, %927 : vector<1x256xf32>
    %cst_249 = arith.constant 0.000000e+00 : f32
    %929 = vector.broadcast %cst_249 : f32 to vector<1x256xf32>
    %930 = arith.cmpf oge, %928, %929 : vector<1x256xf32>
    %931 = arith.andi %926, %930 : vector<1x256xi1>
    %cst_250 = arith.constant 2.000000e+00 : f32
    %932 = vector.broadcast %cst_250 : f32 to vector<1x256xf32>
    %933 = arith.addf %6, %932 : vector<1x256xf32>
    %cst_251 = arith.constant 1.500000e+01 : f32
    %934 = vector.broadcast %cst_251 : f32 to vector<1x256xf32>
    %935 = arith.cmpf ole, %933, %934 : vector<1x256xf32>
    %936 = arith.andi %931, %935 : vector<1x256xi1>
    %c26 = arith.constant 26 : index
    %937 = memref.load %arg1[%c26] : memref<98xf32, #tpu.memory_space<smem>>
    %c75 = arith.constant 75 : index
    %938 = memref.load %arg1[%c75] : memref<98xf32, #tpu.memory_space<smem>>
    %939 = vector.broadcast %937 : f32 to vector<1x256xf32>
    %940 = arith.mulf %939, %914 : vector<1x256xf32>
    %941 = vector.broadcast %938 : f32 to vector<1x256xf32>
    %942 = arith.mulf %941, %917 : vector<1x256xf32>
    %943 = arith.addf %940, %942 : vector<1x256xf32>
    %cst_252 = arith.constant 0.000000e+00 : f32
    %944 = vector.broadcast %cst_252 : f32 to vector<1x256xf32>
    %945 = arith.select %936, %943, %944 : vector<1x256xi1>, vector<1x256xf32>
    %946 = arith.addf %911, %945 : vector<1x256xf32>
    %947 = vector.extract_strided_slice %1 {offsets = [0, 3], sizes = [1, 253], strides = [1, 1]} : vector<1x256xf32> to vector<1x253xf32>
    %948 = vector.extract_strided_slice %1 {offsets = [0, 0], sizes = [1, 3], strides = [1, 1]} : vector<1x256xf32> to vector<1x3xf32>
    %949 = tpu.concatenate %947, %948 in 1 : vector<1x253xf32>, vector<1x3xf32> -> vector<1x256xf32>
    %950 = vector.extract_strided_slice %4 {offsets = [0, 3], sizes = [1, 253], strides = [1, 1]} : vector<1x256xf32> to vector<1x253xf32>
    %951 = vector.extract_strided_slice %4 {offsets = [0, 0], sizes = [1, 3], strides = [1, 1]} : vector<1x256xf32> to vector<1x3xf32>
    %952 = tpu.concatenate %950, %951 in 1 : vector<1x253xf32>, vector<1x3xf32> -> vector<1x256xf32>
    %cst_253 = arith.constant 0.000000e+00 : f32
    %953 = vector.broadcast %cst_253 : f32 to vector<1x256xf32>
    %954 = arith.addf %5, %953 : vector<1x256xf32>
    %cst_254 = arith.constant 0.000000e+00 : f32
    %955 = vector.broadcast %cst_254 : f32 to vector<1x256xf32>
    %956 = arith.cmpf oge, %954, %955 : vector<1x256xf32>
    %cst_255 = arith.constant 0.000000e+00 : f32
    %957 = vector.broadcast %cst_255 : f32 to vector<1x256xf32>
    %958 = arith.addf %5, %957 : vector<1x256xf32>
    %cst_256 = arith.constant 1.500000e+01 : f32
    %959 = vector.broadcast %cst_256 : f32 to vector<1x256xf32>
    %960 = arith.cmpf ole, %958, %959 : vector<1x256xf32>
    %961 = arith.andi %956, %960 : vector<1x256xi1>
    %cst_257 = arith.constant 3.000000e+00 : f32
    %962 = vector.broadcast %cst_257 : f32 to vector<1x256xf32>
    %963 = arith.addf %6, %962 : vector<1x256xf32>
    %cst_258 = arith.constant 0.000000e+00 : f32
    %964 = vector.broadcast %cst_258 : f32 to vector<1x256xf32>
    %965 = arith.cmpf oge, %963, %964 : vector<1x256xf32>
    %966 = arith.andi %961, %965 : vector<1x256xi1>
    %cst_259 = arith.constant 3.000000e+00 : f32
    %967 = vector.broadcast %cst_259 : f32 to vector<1x256xf32>
    %968 = arith.addf %6, %967 : vector<1x256xf32>
    %cst_260 = arith.constant 1.500000e+01 : f32
    %969 = vector.broadcast %cst_260 : f32 to vector<1x256xf32>
    %970 = arith.cmpf ole, %968, %969 : vector<1x256xf32>
    %971 = arith.andi %966, %970 : vector<1x256xi1>
    %c27 = arith.constant 27 : index
    %972 = memref.load %arg1[%c27] : memref<98xf32, #tpu.memory_space<smem>>
    %c76 = arith.constant 76 : index
    %973 = memref.load %arg1[%c76] : memref<98xf32, #tpu.memory_space<smem>>
    %974 = vector.broadcast %972 : f32 to vector<1x256xf32>
    %975 = arith.mulf %974, %949 : vector<1x256xf32>
    %976 = vector.broadcast %973 : f32 to vector<1x256xf32>
    %977 = arith.mulf %976, %952 : vector<1x256xf32>
    %978 = arith.addf %975, %977 : vector<1x256xf32>
    %cst_261 = arith.constant 0.000000e+00 : f32
    %979 = vector.broadcast %cst_261 : f32 to vector<1x256xf32>
    %980 = arith.select %971, %978, %979 : vector<1x256xi1>, vector<1x256xf32>
    %981 = arith.addf %946, %980 : vector<1x256xf32>
    %982 = vector.extract_strided_slice %1 {offsets = [0, 13], sizes = [1, 243], strides = [1, 1]} : vector<1x256xf32> to vector<1x243xf32>
    %983 = vector.extract_strided_slice %1 {offsets = [0, 0], sizes = [1, 13], strides = [1, 1]} : vector<1x256xf32> to vector<1x13xf32>
    %984 = tpu.concatenate %982, %983 in 1 : vector<1x243xf32>, vector<1x13xf32> -> vector<1x256xf32>
    %985 = vector.extract_strided_slice %4 {offsets = [0, 13], sizes = [1, 243], strides = [1, 1]} : vector<1x256xf32> to vector<1x243xf32>
    %986 = vector.extract_strided_slice %4 {offsets = [0, 0], sizes = [1, 13], strides = [1, 1]} : vector<1x256xf32> to vector<1x13xf32>
    %987 = tpu.concatenate %985, %986 in 1 : vector<1x243xf32>, vector<1x13xf32> -> vector<1x256xf32>
    %cst_262 = arith.constant 1.000000e+00 : f32
    %988 = vector.broadcast %cst_262 : f32 to vector<1x256xf32>
    %989 = arith.addf %5, %988 : vector<1x256xf32>
    %cst_263 = arith.constant 0.000000e+00 : f32
    %990 = vector.broadcast %cst_263 : f32 to vector<1x256xf32>
    %991 = arith.cmpf oge, %989, %990 : vector<1x256xf32>
    %cst_264 = arith.constant 1.000000e+00 : f32
    %992 = vector.broadcast %cst_264 : f32 to vector<1x256xf32>
    %993 = arith.addf %5, %992 : vector<1x256xf32>
    %cst_265 = arith.constant 1.500000e+01 : f32
    %994 = vector.broadcast %cst_265 : f32 to vector<1x256xf32>
    %995 = arith.cmpf ole, %993, %994 : vector<1x256xf32>
    %996 = arith.andi %991, %995 : vector<1x256xi1>
    %cst_266 = arith.constant -3.000000e+00 : f32
    %997 = vector.broadcast %cst_266 : f32 to vector<1x256xf32>
    %998 = arith.addf %6, %997 : vector<1x256xf32>
    %cst_267 = arith.constant 0.000000e+00 : f32
    %999 = vector.broadcast %cst_267 : f32 to vector<1x256xf32>
    %1000 = arith.cmpf oge, %998, %999 : vector<1x256xf32>
    %1001 = arith.andi %996, %1000 : vector<1x256xi1>
    %cst_268 = arith.constant -3.000000e+00 : f32
    %1002 = vector.broadcast %cst_268 : f32 to vector<1x256xf32>
    %1003 = arith.addf %6, %1002 : vector<1x256xf32>
    %cst_269 = arith.constant 1.500000e+01 : f32
    %1004 = vector.broadcast %cst_269 : f32 to vector<1x256xf32>
    %1005 = arith.cmpf ole, %1003, %1004 : vector<1x256xf32>
    %1006 = arith.andi %1001, %1005 : vector<1x256xi1>
    %c28 = arith.constant 28 : index
    %1007 = memref.load %arg1[%c28] : memref<98xf32, #tpu.memory_space<smem>>
    %c77 = arith.constant 77 : index
    %1008 = memref.load %arg1[%c77] : memref<98xf32, #tpu.memory_space<smem>>
    %1009 = vector.broadcast %1007 : f32 to vector<1x256xf32>
    %1010 = arith.mulf %1009, %984 : vector<1x256xf32>
    %1011 = vector.broadcast %1008 : f32 to vector<1x256xf32>
    %1012 = arith.mulf %1011, %987 : vector<1x256xf32>
    %1013 = arith.addf %1010, %1012 : vector<1x256xf32>
    %cst_270 = arith.constant 0.000000e+00 : f32
    %1014 = vector.broadcast %cst_270 : f32 to vector<1x256xf32>
    %1015 = arith.select %1006, %1013, %1014 : vector<1x256xi1>, vector<1x256xf32>
    %1016 = arith.addf %981, %1015 : vector<1x256xf32>
    %1017 = vector.extract_strided_slice %1 {offsets = [0, 14], sizes = [1, 242], strides = [1, 1]} : vector<1x256xf32> to vector<1x242xf32>
    %1018 = vector.extract_strided_slice %1 {offsets = [0, 0], sizes = [1, 14], strides = [1, 1]} : vector<1x256xf32> to vector<1x14xf32>
    %1019 = tpu.concatenate %1017, %1018 in 1 : vector<1x242xf32>, vector<1x14xf32> -> vector<1x256xf32>
    %1020 = vector.extract_strided_slice %4 {offsets = [0, 14], sizes = [1, 242], strides = [1, 1]} : vector<1x256xf32> to vector<1x242xf32>
    %1021 = vector.extract_strided_slice %4 {offsets = [0, 0], sizes = [1, 14], strides = [1, 1]} : vector<1x256xf32> to vector<1x14xf32>
    %1022 = tpu.concatenate %1020, %1021 in 1 : vector<1x242xf32>, vector<1x14xf32> -> vector<1x256xf32>
    %cst_271 = arith.constant 1.000000e+00 : f32
    %1023 = vector.broadcast %cst_271 : f32 to vector<1x256xf32>
    %1024 = arith.addf %5, %1023 : vector<1x256xf32>
    %cst_272 = arith.constant 0.000000e+00 : f32
    %1025 = vector.broadcast %cst_272 : f32 to vector<1x256xf32>
    %1026 = arith.cmpf oge, %1024, %1025 : vector<1x256xf32>
    %cst_273 = arith.constant 1.000000e+00 : f32
    %1027 = vector.broadcast %cst_273 : f32 to vector<1x256xf32>
    %1028 = arith.addf %5, %1027 : vector<1x256xf32>
    %cst_274 = arith.constant 1.500000e+01 : f32
    %1029 = vector.broadcast %cst_274 : f32 to vector<1x256xf32>
    %1030 = arith.cmpf ole, %1028, %1029 : vector<1x256xf32>
    %1031 = arith.andi %1026, %1030 : vector<1x256xi1>
    %cst_275 = arith.constant -2.000000e+00 : f32
    %1032 = vector.broadcast %cst_275 : f32 to vector<1x256xf32>
    %1033 = arith.addf %6, %1032 : vector<1x256xf32>
    %cst_276 = arith.constant 0.000000e+00 : f32
    %1034 = vector.broadcast %cst_276 : f32 to vector<1x256xf32>
    %1035 = arith.cmpf oge, %1033, %1034 : vector<1x256xf32>
    %1036 = arith.andi %1031, %1035 : vector<1x256xi1>
    %cst_277 = arith.constant -2.000000e+00 : f32
    %1037 = vector.broadcast %cst_277 : f32 to vector<1x256xf32>
    %1038 = arith.addf %6, %1037 : vector<1x256xf32>
    %cst_278 = arith.constant 1.500000e+01 : f32
    %1039 = vector.broadcast %cst_278 : f32 to vector<1x256xf32>
    %1040 = arith.cmpf ole, %1038, %1039 : vector<1x256xf32>
    %1041 = arith.andi %1036, %1040 : vector<1x256xi1>
    %c29 = arith.constant 29 : index
    %1042 = memref.load %arg1[%c29] : memref<98xf32, #tpu.memory_space<smem>>
    %c78 = arith.constant 78 : index
    %1043 = memref.load %arg1[%c78] : memref<98xf32, #tpu.memory_space<smem>>
    %1044 = vector.broadcast %1042 : f32 to vector<1x256xf32>
    %1045 = arith.mulf %1044, %1019 : vector<1x256xf32>
    %1046 = vector.broadcast %1043 : f32 to vector<1x256xf32>
    %1047 = arith.mulf %1046, %1022 : vector<1x256xf32>
    %1048 = arith.addf %1045, %1047 : vector<1x256xf32>
    %cst_279 = arith.constant 0.000000e+00 : f32
    %1049 = vector.broadcast %cst_279 : f32 to vector<1x256xf32>
    %1050 = arith.select %1041, %1048, %1049 : vector<1x256xi1>, vector<1x256xf32>
    %1051 = arith.addf %1016, %1050 : vector<1x256xf32>
    %1052 = vector.extract_strided_slice %1 {offsets = [0, 15], sizes = [1, 241], strides = [1, 1]} : vector<1x256xf32> to vector<1x241xf32>
    %1053 = vector.extract_strided_slice %1 {offsets = [0, 0], sizes = [1, 15], strides = [1, 1]} : vector<1x256xf32> to vector<1x15xf32>
    %1054 = tpu.concatenate %1052, %1053 in 1 : vector<1x241xf32>, vector<1x15xf32> -> vector<1x256xf32>
    %1055 = vector.extract_strided_slice %4 {offsets = [0, 15], sizes = [1, 241], strides = [1, 1]} : vector<1x256xf32> to vector<1x241xf32>
    %1056 = vector.extract_strided_slice %4 {offsets = [0, 0], sizes = [1, 15], strides = [1, 1]} : vector<1x256xf32> to vector<1x15xf32>
    %1057 = tpu.concatenate %1055, %1056 in 1 : vector<1x241xf32>, vector<1x15xf32> -> vector<1x256xf32>
    %cst_280 = arith.constant 1.000000e+00 : f32
    %1058 = vector.broadcast %cst_280 : f32 to vector<1x256xf32>
    %1059 = arith.addf %5, %1058 : vector<1x256xf32>
    %cst_281 = arith.constant 0.000000e+00 : f32
    %1060 = vector.broadcast %cst_281 : f32 to vector<1x256xf32>
    %1061 = arith.cmpf oge, %1059, %1060 : vector<1x256xf32>
    %cst_282 = arith.constant 1.000000e+00 : f32
    %1062 = vector.broadcast %cst_282 : f32 to vector<1x256xf32>
    %1063 = arith.addf %5, %1062 : vector<1x256xf32>
    %cst_283 = arith.constant 1.500000e+01 : f32
    %1064 = vector.broadcast %cst_283 : f32 to vector<1x256xf32>
    %1065 = arith.cmpf ole, %1063, %1064 : vector<1x256xf32>
    %1066 = arith.andi %1061, %1065 : vector<1x256xi1>
    %cst_284 = arith.constant -1.000000e+00 : f32
    %1067 = vector.broadcast %cst_284 : f32 to vector<1x256xf32>
    %1068 = arith.addf %6, %1067 : vector<1x256xf32>
    %cst_285 = arith.constant 0.000000e+00 : f32
    %1069 = vector.broadcast %cst_285 : f32 to vector<1x256xf32>
    %1070 = arith.cmpf oge, %1068, %1069 : vector<1x256xf32>
    %1071 = arith.andi %1066, %1070 : vector<1x256xi1>
    %cst_286 = arith.constant -1.000000e+00 : f32
    %1072 = vector.broadcast %cst_286 : f32 to vector<1x256xf32>
    %1073 = arith.addf %6, %1072 : vector<1x256xf32>
    %cst_287 = arith.constant 1.500000e+01 : f32
    %1074 = vector.broadcast %cst_287 : f32 to vector<1x256xf32>
    %1075 = arith.cmpf ole, %1073, %1074 : vector<1x256xf32>
    %1076 = arith.andi %1071, %1075 : vector<1x256xi1>
    %c30 = arith.constant 30 : index
    %1077 = memref.load %arg1[%c30] : memref<98xf32, #tpu.memory_space<smem>>
    %c79 = arith.constant 79 : index
    %1078 = memref.load %arg1[%c79] : memref<98xf32, #tpu.memory_space<smem>>
    %1079 = vector.broadcast %1077 : f32 to vector<1x256xf32>
    %1080 = arith.mulf %1079, %1054 : vector<1x256xf32>
    %1081 = vector.broadcast %1078 : f32 to vector<1x256xf32>
    %1082 = arith.mulf %1081, %1057 : vector<1x256xf32>
    %1083 = arith.addf %1080, %1082 : vector<1x256xf32>
    %cst_288 = arith.constant 0.000000e+00 : f32
    %1084 = vector.broadcast %cst_288 : f32 to vector<1x256xf32>
    %1085 = arith.select %1076, %1083, %1084 : vector<1x256xi1>, vector<1x256xf32>
    %1086 = arith.addf %1051, %1085 : vector<1x256xf32>
    %1087 = vector.extract_strided_slice %1 {offsets = [0, 16], sizes = [1, 240], strides = [1, 1]} : vector<1x256xf32> to vector<1x240xf32>
    %1088 = vector.extract_strided_slice %1 {offsets = [0, 0], sizes = [1, 16], strides = [1, 1]} : vector<1x256xf32> to vector<1x16xf32>
    %1089 = tpu.concatenate %1087, %1088 in 1 : vector<1x240xf32>, vector<1x16xf32> -> vector<1x256xf32>
    %1090 = vector.extract_strided_slice %4 {offsets = [0, 16], sizes = [1, 240], strides = [1, 1]} : vector<1x256xf32> to vector<1x240xf32>
    %1091 = vector.extract_strided_slice %4 {offsets = [0, 0], sizes = [1, 16], strides = [1, 1]} : vector<1x256xf32> to vector<1x16xf32>
    %1092 = tpu.concatenate %1090, %1091 in 1 : vector<1x240xf32>, vector<1x16xf32> -> vector<1x256xf32>
    %cst_289 = arith.constant 1.000000e+00 : f32
    %1093 = vector.broadcast %cst_289 : f32 to vector<1x256xf32>
    %1094 = arith.addf %5, %1093 : vector<1x256xf32>
    %cst_290 = arith.constant 0.000000e+00 : f32
    %1095 = vector.broadcast %cst_290 : f32 to vector<1x256xf32>
    %1096 = arith.cmpf oge, %1094, %1095 : vector<1x256xf32>
    %cst_291 = arith.constant 1.000000e+00 : f32
    %1097 = vector.broadcast %cst_291 : f32 to vector<1x256xf32>
    %1098 = arith.addf %5, %1097 : vector<1x256xf32>
    %cst_292 = arith.constant 1.500000e+01 : f32
    %1099 = vector.broadcast %cst_292 : f32 to vector<1x256xf32>
    %1100 = arith.cmpf ole, %1098, %1099 : vector<1x256xf32>
    %1101 = arith.andi %1096, %1100 : vector<1x256xi1>
    %cst_293 = arith.constant 0.000000e+00 : f32
    %1102 = vector.broadcast %cst_293 : f32 to vector<1x256xf32>
    %1103 = arith.addf %6, %1102 : vector<1x256xf32>
    %cst_294 = arith.constant 0.000000e+00 : f32
    %1104 = vector.broadcast %cst_294 : f32 to vector<1x256xf32>
    %1105 = arith.cmpf oge, %1103, %1104 : vector<1x256xf32>
    %1106 = arith.andi %1101, %1105 : vector<1x256xi1>
    %cst_295 = arith.constant 0.000000e+00 : f32
    %1107 = vector.broadcast %cst_295 : f32 to vector<1x256xf32>
    %1108 = arith.addf %6, %1107 : vector<1x256xf32>
    %cst_296 = arith.constant 1.500000e+01 : f32
    %1109 = vector.broadcast %cst_296 : f32 to vector<1x256xf32>
    %1110 = arith.cmpf ole, %1108, %1109 : vector<1x256xf32>
    %1111 = arith.andi %1106, %1110 : vector<1x256xi1>
    %c31 = arith.constant 31 : index
    %1112 = memref.load %arg1[%c31] : memref<98xf32, #tpu.memory_space<smem>>
    %c80 = arith.constant 80 : index
    %1113 = memref.load %arg1[%c80] : memref<98xf32, #tpu.memory_space<smem>>
    %1114 = vector.broadcast %1112 : f32 to vector<1x256xf32>
    %1115 = arith.mulf %1114, %1089 : vector<1x256xf32>
    %1116 = vector.broadcast %1113 : f32 to vector<1x256xf32>
    %1117 = arith.mulf %1116, %1092 : vector<1x256xf32>
    %1118 = arith.addf %1115, %1117 : vector<1x256xf32>
    %cst_297 = arith.constant 0.000000e+00 : f32
    %1119 = vector.broadcast %cst_297 : f32 to vector<1x256xf32>
    %1120 = arith.select %1111, %1118, %1119 : vector<1x256xi1>, vector<1x256xf32>
    %1121 = arith.addf %1086, %1120 : vector<1x256xf32>
    %1122 = vector.extract_strided_slice %1 {offsets = [0, 17], sizes = [1, 239], strides = [1, 1]} : vector<1x256xf32> to vector<1x239xf32>
    %1123 = vector.extract_strided_slice %1 {offsets = [0, 0], sizes = [1, 17], strides = [1, 1]} : vector<1x256xf32> to vector<1x17xf32>
    %1124 = tpu.concatenate %1122, %1123 in 1 : vector<1x239xf32>, vector<1x17xf32> -> vector<1x256xf32>
    %1125 = vector.extract_strided_slice %4 {offsets = [0, 17], sizes = [1, 239], strides = [1, 1]} : vector<1x256xf32> to vector<1x239xf32>
    %1126 = vector.extract_strided_slice %4 {offsets = [0, 0], sizes = [1, 17], strides = [1, 1]} : vector<1x256xf32> to vector<1x17xf32>
    %1127 = tpu.concatenate %1125, %1126 in 1 : vector<1x239xf32>, vector<1x17xf32> -> vector<1x256xf32>
    %cst_298 = arith.constant 1.000000e+00 : f32
    %1128 = vector.broadcast %cst_298 : f32 to vector<1x256xf32>
    %1129 = arith.addf %5, %1128 : vector<1x256xf32>
    %cst_299 = arith.constant 0.000000e+00 : f32
    %1130 = vector.broadcast %cst_299 : f32 to vector<1x256xf32>
    %1131 = arith.cmpf oge, %1129, %1130 : vector<1x256xf32>
    %cst_300 = arith.constant 1.000000e+00 : f32
    %1132 = vector.broadcast %cst_300 : f32 to vector<1x256xf32>
    %1133 = arith.addf %5, %1132 : vector<1x256xf32>
    %cst_301 = arith.constant 1.500000e+01 : f32
    %1134 = vector.broadcast %cst_301 : f32 to vector<1x256xf32>
    %1135 = arith.cmpf ole, %1133, %1134 : vector<1x256xf32>
    %1136 = arith.andi %1131, %1135 : vector<1x256xi1>
    %cst_302 = arith.constant 1.000000e+00 : f32
    %1137 = vector.broadcast %cst_302 : f32 to vector<1x256xf32>
    %1138 = arith.addf %6, %1137 : vector<1x256xf32>
    %cst_303 = arith.constant 0.000000e+00 : f32
    %1139 = vector.broadcast %cst_303 : f32 to vector<1x256xf32>
    %1140 = arith.cmpf oge, %1138, %1139 : vector<1x256xf32>
    %1141 = arith.andi %1136, %1140 : vector<1x256xi1>
    %cst_304 = arith.constant 1.000000e+00 : f32
    %1142 = vector.broadcast %cst_304 : f32 to vector<1x256xf32>
    %1143 = arith.addf %6, %1142 : vector<1x256xf32>
    %cst_305 = arith.constant 1.500000e+01 : f32
    %1144 = vector.broadcast %cst_305 : f32 to vector<1x256xf32>
    %1145 = arith.cmpf ole, %1143, %1144 : vector<1x256xf32>
    %1146 = arith.andi %1141, %1145 : vector<1x256xi1>
    %c32 = arith.constant 32 : index
    %1147 = memref.load %arg1[%c32] : memref<98xf32, #tpu.memory_space<smem>>
    %c81 = arith.constant 81 : index
    %1148 = memref.load %arg1[%c81] : memref<98xf32, #tpu.memory_space<smem>>
    %1149 = vector.broadcast %1147 : f32 to vector<1x256xf32>
    %1150 = arith.mulf %1149, %1124 : vector<1x256xf32>
    %1151 = vector.broadcast %1148 : f32 to vector<1x256xf32>
    %1152 = arith.mulf %1151, %1127 : vector<1x256xf32>
    %1153 = arith.addf %1150, %1152 : vector<1x256xf32>
    %cst_306 = arith.constant 0.000000e+00 : f32
    %1154 = vector.broadcast %cst_306 : f32 to vector<1x256xf32>
    %1155 = arith.select %1146, %1153, %1154 : vector<1x256xi1>, vector<1x256xf32>
    %1156 = arith.addf %1121, %1155 : vector<1x256xf32>
    %1157 = vector.extract_strided_slice %1 {offsets = [0, 18], sizes = [1, 238], strides = [1, 1]} : vector<1x256xf32> to vector<1x238xf32>
    %1158 = vector.extract_strided_slice %1 {offsets = [0, 0], sizes = [1, 18], strides = [1, 1]} : vector<1x256xf32> to vector<1x18xf32>
    %1159 = tpu.concatenate %1157, %1158 in 1 : vector<1x238xf32>, vector<1x18xf32> -> vector<1x256xf32>
    %1160 = vector.extract_strided_slice %4 {offsets = [0, 18], sizes = [1, 238], strides = [1, 1]} : vector<1x256xf32> to vector<1x238xf32>
    %1161 = vector.extract_strided_slice %4 {offsets = [0, 0], sizes = [1, 18], strides = [1, 1]} : vector<1x256xf32> to vector<1x18xf32>
    %1162 = tpu.concatenate %1160, %1161 in 1 : vector<1x238xf32>, vector<1x18xf32> -> vector<1x256xf32>
    %cst_307 = arith.constant 1.000000e+00 : f32
    %1163 = vector.broadcast %cst_307 : f32 to vector<1x256xf32>
    %1164 = arith.addf %5, %1163 : vector<1x256xf32>
    %cst_308 = arith.constant 0.000000e+00 : f32
    %1165 = vector.broadcast %cst_308 : f32 to vector<1x256xf32>
    %1166 = arith.cmpf oge, %1164, %1165 : vector<1x256xf32>
    %cst_309 = arith.constant 1.000000e+00 : f32
    %1167 = vector.broadcast %cst_309 : f32 to vector<1x256xf32>
    %1168 = arith.addf %5, %1167 : vector<1x256xf32>
    %cst_310 = arith.constant 1.500000e+01 : f32
    %1169 = vector.broadcast %cst_310 : f32 to vector<1x256xf32>
    %1170 = arith.cmpf ole, %1168, %1169 : vector<1x256xf32>
    %1171 = arith.andi %1166, %1170 : vector<1x256xi1>
    %cst_311 = arith.constant 2.000000e+00 : f32
    %1172 = vector.broadcast %cst_311 : f32 to vector<1x256xf32>
    %1173 = arith.addf %6, %1172 : vector<1x256xf32>
    %cst_312 = arith.constant 0.000000e+00 : f32
    %1174 = vector.broadcast %cst_312 : f32 to vector<1x256xf32>
    %1175 = arith.cmpf oge, %1173, %1174 : vector<1x256xf32>
    %1176 = arith.andi %1171, %1175 : vector<1x256xi1>
    %cst_313 = arith.constant 2.000000e+00 : f32
    %1177 = vector.broadcast %cst_313 : f32 to vector<1x256xf32>
    %1178 = arith.addf %6, %1177 : vector<1x256xf32>
    %cst_314 = arith.constant 1.500000e+01 : f32
    %1179 = vector.broadcast %cst_314 : f32 to vector<1x256xf32>
    %1180 = arith.cmpf ole, %1178, %1179 : vector<1x256xf32>
    %1181 = arith.andi %1176, %1180 : vector<1x256xi1>
    %c33 = arith.constant 33 : index
    %1182 = memref.load %arg1[%c33] : memref<98xf32, #tpu.memory_space<smem>>
    %c82 = arith.constant 82 : index
    %1183 = memref.load %arg1[%c82] : memref<98xf32, #tpu.memory_space<smem>>
    %1184 = vector.broadcast %1182 : f32 to vector<1x256xf32>
    %1185 = arith.mulf %1184, %1159 : vector<1x256xf32>
    %1186 = vector.broadcast %1183 : f32 to vector<1x256xf32>
    %1187 = arith.mulf %1186, %1162 : vector<1x256xf32>
    %1188 = arith.addf %1185, %1187 : vector<1x256xf32>
    %cst_315 = arith.constant 0.000000e+00 : f32
    %1189 = vector.broadcast %cst_315 : f32 to vector<1x256xf32>
    %1190 = arith.select %1181, %1188, %1189 : vector<1x256xi1>, vector<1x256xf32>
    %1191 = arith.addf %1156, %1190 : vector<1x256xf32>
    %1192 = vector.extract_strided_slice %1 {offsets = [0, 19], sizes = [1, 237], strides = [1, 1]} : vector<1x256xf32> to vector<1x237xf32>
    %1193 = vector.extract_strided_slice %1 {offsets = [0, 0], sizes = [1, 19], strides = [1, 1]} : vector<1x256xf32> to vector<1x19xf32>
    %1194 = tpu.concatenate %1192, %1193 in 1 : vector<1x237xf32>, vector<1x19xf32> -> vector<1x256xf32>
    %1195 = vector.extract_strided_slice %4 {offsets = [0, 19], sizes = [1, 237], strides = [1, 1]} : vector<1x256xf32> to vector<1x237xf32>
    %1196 = vector.extract_strided_slice %4 {offsets = [0, 0], sizes = [1, 19], strides = [1, 1]} : vector<1x256xf32> to vector<1x19xf32>
    %1197 = tpu.concatenate %1195, %1196 in 1 : vector<1x237xf32>, vector<1x19xf32> -> vector<1x256xf32>
    %cst_316 = arith.constant 1.000000e+00 : f32
    %1198 = vector.broadcast %cst_316 : f32 to vector<1x256xf32>
    %1199 = arith.addf %5, %1198 : vector<1x256xf32>
    %cst_317 = arith.constant 0.000000e+00 : f32
    %1200 = vector.broadcast %cst_317 : f32 to vector<1x256xf32>
    %1201 = arith.cmpf oge, %1199, %1200 : vector<1x256xf32>
    %cst_318 = arith.constant 1.000000e+00 : f32
    %1202 = vector.broadcast %cst_318 : f32 to vector<1x256xf32>
    %1203 = arith.addf %5, %1202 : vector<1x256xf32>
    %cst_319 = arith.constant 1.500000e+01 : f32
    %1204 = vector.broadcast %cst_319 : f32 to vector<1x256xf32>
    %1205 = arith.cmpf ole, %1203, %1204 : vector<1x256xf32>
    %1206 = arith.andi %1201, %1205 : vector<1x256xi1>
    %cst_320 = arith.constant 3.000000e+00 : f32
    %1207 = vector.broadcast %cst_320 : f32 to vector<1x256xf32>
    %1208 = arith.addf %6, %1207 : vector<1x256xf32>
    %cst_321 = arith.constant 0.000000e+00 : f32
    %1209 = vector.broadcast %cst_321 : f32 to vector<1x256xf32>
    %1210 = arith.cmpf oge, %1208, %1209 : vector<1x256xf32>
    %1211 = arith.andi %1206, %1210 : vector<1x256xi1>
    %cst_322 = arith.constant 3.000000e+00 : f32
    %1212 = vector.broadcast %cst_322 : f32 to vector<1x256xf32>
    %1213 = arith.addf %6, %1212 : vector<1x256xf32>
    %cst_323 = arith.constant 1.500000e+01 : f32
    %1214 = vector.broadcast %cst_323 : f32 to vector<1x256xf32>
    %1215 = arith.cmpf ole, %1213, %1214 : vector<1x256xf32>
    %1216 = arith.andi %1211, %1215 : vector<1x256xi1>
    %c34 = arith.constant 34 : index
    %1217 = memref.load %arg1[%c34] : memref<98xf32, #tpu.memory_space<smem>>
    %c83 = arith.constant 83 : index
    %1218 = memref.load %arg1[%c83] : memref<98xf32, #tpu.memory_space<smem>>
    %1219 = vector.broadcast %1217 : f32 to vector<1x256xf32>
    %1220 = arith.mulf %1219, %1194 : vector<1x256xf32>
    %1221 = vector.broadcast %1218 : f32 to vector<1x256xf32>
    %1222 = arith.mulf %1221, %1197 : vector<1x256xf32>
    %1223 = arith.addf %1220, %1222 : vector<1x256xf32>
    %cst_324 = arith.constant 0.000000e+00 : f32
    %1224 = vector.broadcast %cst_324 : f32 to vector<1x256xf32>
    %1225 = arith.select %1216, %1223, %1224 : vector<1x256xi1>, vector<1x256xf32>
    %1226 = arith.addf %1191, %1225 : vector<1x256xf32>
    %1227 = vector.extract_strided_slice %1 {offsets = [0, 29], sizes = [1, 227], strides = [1, 1]} : vector<1x256xf32> to vector<1x227xf32>
    %1228 = vector.extract_strided_slice %1 {offsets = [0, 0], sizes = [1, 29], strides = [1, 1]} : vector<1x256xf32> to vector<1x29xf32>
    %1229 = tpu.concatenate %1227, %1228 in 1 : vector<1x227xf32>, vector<1x29xf32> -> vector<1x256xf32>
    %1230 = vector.extract_strided_slice %4 {offsets = [0, 29], sizes = [1, 227], strides = [1, 1]} : vector<1x256xf32> to vector<1x227xf32>
    %1231 = vector.extract_strided_slice %4 {offsets = [0, 0], sizes = [1, 29], strides = [1, 1]} : vector<1x256xf32> to vector<1x29xf32>
    %1232 = tpu.concatenate %1230, %1231 in 1 : vector<1x227xf32>, vector<1x29xf32> -> vector<1x256xf32>
    %cst_325 = arith.constant 2.000000e+00 : f32
    %1233 = vector.broadcast %cst_325 : f32 to vector<1x256xf32>
    %1234 = arith.addf %5, %1233 : vector<1x256xf32>
    %cst_326 = arith.constant 0.000000e+00 : f32
    %1235 = vector.broadcast %cst_326 : f32 to vector<1x256xf32>
    %1236 = arith.cmpf oge, %1234, %1235 : vector<1x256xf32>
    %cst_327 = arith.constant 2.000000e+00 : f32
    %1237 = vector.broadcast %cst_327 : f32 to vector<1x256xf32>
    %1238 = arith.addf %5, %1237 : vector<1x256xf32>
    %cst_328 = arith.constant 1.500000e+01 : f32
    %1239 = vector.broadcast %cst_328 : f32 to vector<1x256xf32>
    %1240 = arith.cmpf ole, %1238, %1239 : vector<1x256xf32>
    %1241 = arith.andi %1236, %1240 : vector<1x256xi1>
    %cst_329 = arith.constant -3.000000e+00 : f32
    %1242 = vector.broadcast %cst_329 : f32 to vector<1x256xf32>
    %1243 = arith.addf %6, %1242 : vector<1x256xf32>
    %cst_330 = arith.constant 0.000000e+00 : f32
    %1244 = vector.broadcast %cst_330 : f32 to vector<1x256xf32>
    %1245 = arith.cmpf oge, %1243, %1244 : vector<1x256xf32>
    %1246 = arith.andi %1241, %1245 : vector<1x256xi1>
    %cst_331 = arith.constant -3.000000e+00 : f32
    %1247 = vector.broadcast %cst_331 : f32 to vector<1x256xf32>
    %1248 = arith.addf %6, %1247 : vector<1x256xf32>
    %cst_332 = arith.constant 1.500000e+01 : f32
    %1249 = vector.broadcast %cst_332 : f32 to vector<1x256xf32>
    %1250 = arith.cmpf ole, %1248, %1249 : vector<1x256xf32>
    %1251 = arith.andi %1246, %1250 : vector<1x256xi1>
    %c35 = arith.constant 35 : index
    %1252 = memref.load %arg1[%c35] : memref<98xf32, #tpu.memory_space<smem>>
    %c84 = arith.constant 84 : index
    %1253 = memref.load %arg1[%c84] : memref<98xf32, #tpu.memory_space<smem>>
    %1254 = vector.broadcast %1252 : f32 to vector<1x256xf32>
    %1255 = arith.mulf %1254, %1229 : vector<1x256xf32>
    %1256 = vector.broadcast %1253 : f32 to vector<1x256xf32>
    %1257 = arith.mulf %1256, %1232 : vector<1x256xf32>
    %1258 = arith.addf %1255, %1257 : vector<1x256xf32>
    %cst_333 = arith.constant 0.000000e+00 : f32
    %1259 = vector.broadcast %cst_333 : f32 to vector<1x256xf32>
    %1260 = arith.select %1251, %1258, %1259 : vector<1x256xi1>, vector<1x256xf32>
    %1261 = arith.addf %1226, %1260 : vector<1x256xf32>
    %1262 = vector.extract_strided_slice %1 {offsets = [0, 30], sizes = [1, 226], strides = [1, 1]} : vector<1x256xf32> to vector<1x226xf32>
    %1263 = vector.extract_strided_slice %1 {offsets = [0, 0], sizes = [1, 30], strides = [1, 1]} : vector<1x256xf32> to vector<1x30xf32>
    %1264 = tpu.concatenate %1262, %1263 in 1 : vector<1x226xf32>, vector<1x30xf32> -> vector<1x256xf32>
    %1265 = vector.extract_strided_slice %4 {offsets = [0, 30], sizes = [1, 226], strides = [1, 1]} : vector<1x256xf32> to vector<1x226xf32>
    %1266 = vector.extract_strided_slice %4 {offsets = [0, 0], sizes = [1, 30], strides = [1, 1]} : vector<1x256xf32> to vector<1x30xf32>
    %1267 = tpu.concatenate %1265, %1266 in 1 : vector<1x226xf32>, vector<1x30xf32> -> vector<1x256xf32>
    %cst_334 = arith.constant 2.000000e+00 : f32
    %1268 = vector.broadcast %cst_334 : f32 to vector<1x256xf32>
    %1269 = arith.addf %5, %1268 : vector<1x256xf32>
    %cst_335 = arith.constant 0.000000e+00 : f32
    %1270 = vector.broadcast %cst_335 : f32 to vector<1x256xf32>
    %1271 = arith.cmpf oge, %1269, %1270 : vector<1x256xf32>
    %cst_336 = arith.constant 2.000000e+00 : f32
    %1272 = vector.broadcast %cst_336 : f32 to vector<1x256xf32>
    %1273 = arith.addf %5, %1272 : vector<1x256xf32>
    %cst_337 = arith.constant 1.500000e+01 : f32
    %1274 = vector.broadcast %cst_337 : f32 to vector<1x256xf32>
    %1275 = arith.cmpf ole, %1273, %1274 : vector<1x256xf32>
    %1276 = arith.andi %1271, %1275 : vector<1x256xi1>
    %cst_338 = arith.constant -2.000000e+00 : f32
    %1277 = vector.broadcast %cst_338 : f32 to vector<1x256xf32>
    %1278 = arith.addf %6, %1277 : vector<1x256xf32>
    %cst_339 = arith.constant 0.000000e+00 : f32
    %1279 = vector.broadcast %cst_339 : f32 to vector<1x256xf32>
    %1280 = arith.cmpf oge, %1278, %1279 : vector<1x256xf32>
    %1281 = arith.andi %1276, %1280 : vector<1x256xi1>
    %cst_340 = arith.constant -2.000000e+00 : f32
    %1282 = vector.broadcast %cst_340 : f32 to vector<1x256xf32>
    %1283 = arith.addf %6, %1282 : vector<1x256xf32>
    %cst_341 = arith.constant 1.500000e+01 : f32
    %1284 = vector.broadcast %cst_341 : f32 to vector<1x256xf32>
    %1285 = arith.cmpf ole, %1283, %1284 : vector<1x256xf32>
    %1286 = arith.andi %1281, %1285 : vector<1x256xi1>
    %c36 = arith.constant 36 : index
    %1287 = memref.load %arg1[%c36] : memref<98xf32, #tpu.memory_space<smem>>
    %c85 = arith.constant 85 : index
    %1288 = memref.load %arg1[%c85] : memref<98xf32, #tpu.memory_space<smem>>
    %1289 = vector.broadcast %1287 : f32 to vector<1x256xf32>
    %1290 = arith.mulf %1289, %1264 : vector<1x256xf32>
    %1291 = vector.broadcast %1288 : f32 to vector<1x256xf32>
    %1292 = arith.mulf %1291, %1267 : vector<1x256xf32>
    %1293 = arith.addf %1290, %1292 : vector<1x256xf32>
    %cst_342 = arith.constant 0.000000e+00 : f32
    %1294 = vector.broadcast %cst_342 : f32 to vector<1x256xf32>
    %1295 = arith.select %1286, %1293, %1294 : vector<1x256xi1>, vector<1x256xf32>
    %1296 = arith.addf %1261, %1295 : vector<1x256xf32>
    %1297 = vector.extract_strided_slice %1 {offsets = [0, 31], sizes = [1, 225], strides = [1, 1]} : vector<1x256xf32> to vector<1x225xf32>
    %1298 = vector.extract_strided_slice %1 {offsets = [0, 0], sizes = [1, 31], strides = [1, 1]} : vector<1x256xf32> to vector<1x31xf32>
    %1299 = tpu.concatenate %1297, %1298 in 1 : vector<1x225xf32>, vector<1x31xf32> -> vector<1x256xf32>
    %1300 = vector.extract_strided_slice %4 {offsets = [0, 31], sizes = [1, 225], strides = [1, 1]} : vector<1x256xf32> to vector<1x225xf32>
    %1301 = vector.extract_strided_slice %4 {offsets = [0, 0], sizes = [1, 31], strides = [1, 1]} : vector<1x256xf32> to vector<1x31xf32>
    %1302 = tpu.concatenate %1300, %1301 in 1 : vector<1x225xf32>, vector<1x31xf32> -> vector<1x256xf32>
    %cst_343 = arith.constant 2.000000e+00 : f32
    %1303 = vector.broadcast %cst_343 : f32 to vector<1x256xf32>
    %1304 = arith.addf %5, %1303 : vector<1x256xf32>
    %cst_344 = arith.constant 0.000000e+00 : f32
    %1305 = vector.broadcast %cst_344 : f32 to vector<1x256xf32>
    %1306 = arith.cmpf oge, %1304, %1305 : vector<1x256xf32>
    %cst_345 = arith.constant 2.000000e+00 : f32
    %1307 = vector.broadcast %cst_345 : f32 to vector<1x256xf32>
    %1308 = arith.addf %5, %1307 : vector<1x256xf32>
    %cst_346 = arith.constant 1.500000e+01 : f32
    %1309 = vector.broadcast %cst_346 : f32 to vector<1x256xf32>
    %1310 = arith.cmpf ole, %1308, %1309 : vector<1x256xf32>
    %1311 = arith.andi %1306, %1310 : vector<1x256xi1>
    %cst_347 = arith.constant -1.000000e+00 : f32
    %1312 = vector.broadcast %cst_347 : f32 to vector<1x256xf32>
    %1313 = arith.addf %6, %1312 : vector<1x256xf32>
    %cst_348 = arith.constant 0.000000e+00 : f32
    %1314 = vector.broadcast %cst_348 : f32 to vector<1x256xf32>
    %1315 = arith.cmpf oge, %1313, %1314 : vector<1x256xf32>
    %1316 = arith.andi %1311, %1315 : vector<1x256xi1>
    %cst_349 = arith.constant -1.000000e+00 : f32
    %1317 = vector.broadcast %cst_349 : f32 to vector<1x256xf32>
    %1318 = arith.addf %6, %1317 : vector<1x256xf32>
    %cst_350 = arith.constant 1.500000e+01 : f32
    %1319 = vector.broadcast %cst_350 : f32 to vector<1x256xf32>
    %1320 = arith.cmpf ole, %1318, %1319 : vector<1x256xf32>
    %1321 = arith.andi %1316, %1320 : vector<1x256xi1>
    %c37 = arith.constant 37 : index
    %1322 = memref.load %arg1[%c37] : memref<98xf32, #tpu.memory_space<smem>>
    %c86 = arith.constant 86 : index
    %1323 = memref.load %arg1[%c86] : memref<98xf32, #tpu.memory_space<smem>>
    %1324 = vector.broadcast %1322 : f32 to vector<1x256xf32>
    %1325 = arith.mulf %1324, %1299 : vector<1x256xf32>
    %1326 = vector.broadcast %1323 : f32 to vector<1x256xf32>
    %1327 = arith.mulf %1326, %1302 : vector<1x256xf32>
    %1328 = arith.addf %1325, %1327 : vector<1x256xf32>
    %cst_351 = arith.constant 0.000000e+00 : f32
    %1329 = vector.broadcast %cst_351 : f32 to vector<1x256xf32>
    %1330 = arith.select %1321, %1328, %1329 : vector<1x256xi1>, vector<1x256xf32>
    %1331 = arith.addf %1296, %1330 : vector<1x256xf32>
    %1332 = vector.extract_strided_slice %1 {offsets = [0, 32], sizes = [1, 224], strides = [1, 1]} : vector<1x256xf32> to vector<1x224xf32>
    %1333 = vector.extract_strided_slice %1 {offsets = [0, 0], sizes = [1, 32], strides = [1, 1]} : vector<1x256xf32> to vector<1x32xf32>
    %1334 = tpu.concatenate %1332, %1333 in 1 : vector<1x224xf32>, vector<1x32xf32> -> vector<1x256xf32>
    %1335 = vector.extract_strided_slice %4 {offsets = [0, 32], sizes = [1, 224], strides = [1, 1]} : vector<1x256xf32> to vector<1x224xf32>
    %1336 = vector.extract_strided_slice %4 {offsets = [0, 0], sizes = [1, 32], strides = [1, 1]} : vector<1x256xf32> to vector<1x32xf32>
    %1337 = tpu.concatenate %1335, %1336 in 1 : vector<1x224xf32>, vector<1x32xf32> -> vector<1x256xf32>
    %cst_352 = arith.constant 2.000000e+00 : f32
    %1338 = vector.broadcast %cst_352 : f32 to vector<1x256xf32>
    %1339 = arith.addf %5, %1338 : vector<1x256xf32>
    %cst_353 = arith.constant 0.000000e+00 : f32
    %1340 = vector.broadcast %cst_353 : f32 to vector<1x256xf32>
    %1341 = arith.cmpf oge, %1339, %1340 : vector<1x256xf32>
    %cst_354 = arith.constant 2.000000e+00 : f32
    %1342 = vector.broadcast %cst_354 : f32 to vector<1x256xf32>
    %1343 = arith.addf %5, %1342 : vector<1x256xf32>
    %cst_355 = arith.constant 1.500000e+01 : f32
    %1344 = vector.broadcast %cst_355 : f32 to vector<1x256xf32>
    %1345 = arith.cmpf ole, %1343, %1344 : vector<1x256xf32>
    %1346 = arith.andi %1341, %1345 : vector<1x256xi1>
    %cst_356 = arith.constant 0.000000e+00 : f32
    %1347 = vector.broadcast %cst_356 : f32 to vector<1x256xf32>
    %1348 = arith.addf %6, %1347 : vector<1x256xf32>
    %cst_357 = arith.constant 0.000000e+00 : f32
    %1349 = vector.broadcast %cst_357 : f32 to vector<1x256xf32>
    %1350 = arith.cmpf oge, %1348, %1349 : vector<1x256xf32>
    %1351 = arith.andi %1346, %1350 : vector<1x256xi1>
    %cst_358 = arith.constant 0.000000e+00 : f32
    %1352 = vector.broadcast %cst_358 : f32 to vector<1x256xf32>
    %1353 = arith.addf %6, %1352 : vector<1x256xf32>
    %cst_359 = arith.constant 1.500000e+01 : f32
    %1354 = vector.broadcast %cst_359 : f32 to vector<1x256xf32>
    %1355 = arith.cmpf ole, %1353, %1354 : vector<1x256xf32>
    %1356 = arith.andi %1351, %1355 : vector<1x256xi1>
    %c38 = arith.constant 38 : index
    %1357 = memref.load %arg1[%c38] : memref<98xf32, #tpu.memory_space<smem>>
    %c87 = arith.constant 87 : index
    %1358 = memref.load %arg1[%c87] : memref<98xf32, #tpu.memory_space<smem>>
    %1359 = vector.broadcast %1357 : f32 to vector<1x256xf32>
    %1360 = arith.mulf %1359, %1334 : vector<1x256xf32>
    %1361 = vector.broadcast %1358 : f32 to vector<1x256xf32>
    %1362 = arith.mulf %1361, %1337 : vector<1x256xf32>
    %1363 = arith.addf %1360, %1362 : vector<1x256xf32>
    %cst_360 = arith.constant 0.000000e+00 : f32
    %1364 = vector.broadcast %cst_360 : f32 to vector<1x256xf32>
    %1365 = arith.select %1356, %1363, %1364 : vector<1x256xi1>, vector<1x256xf32>
    %1366 = arith.addf %1331, %1365 : vector<1x256xf32>
    %1367 = vector.extract_strided_slice %1 {offsets = [0, 33], sizes = [1, 223], strides = [1, 1]} : vector<1x256xf32> to vector<1x223xf32>
    %1368 = vector.extract_strided_slice %1 {offsets = [0, 0], sizes = [1, 33], strides = [1, 1]} : vector<1x256xf32> to vector<1x33xf32>
    %1369 = tpu.concatenate %1367, %1368 in 1 : vector<1x223xf32>, vector<1x33xf32> -> vector<1x256xf32>
    %1370 = vector.extract_strided_slice %4 {offsets = [0, 33], sizes = [1, 223], strides = [1, 1]} : vector<1x256xf32> to vector<1x223xf32>
    %1371 = vector.extract_strided_slice %4 {offsets = [0, 0], sizes = [1, 33], strides = [1, 1]} : vector<1x256xf32> to vector<1x33xf32>
    %1372 = tpu.concatenate %1370, %1371 in 1 : vector<1x223xf32>, vector<1x33xf32> -> vector<1x256xf32>
    %cst_361 = arith.constant 2.000000e+00 : f32
    %1373 = vector.broadcast %cst_361 : f32 to vector<1x256xf32>
    %1374 = arith.addf %5, %1373 : vector<1x256xf32>
    %cst_362 = arith.constant 0.000000e+00 : f32
    %1375 = vector.broadcast %cst_362 : f32 to vector<1x256xf32>
    %1376 = arith.cmpf oge, %1374, %1375 : vector<1x256xf32>
    %cst_363 = arith.constant 2.000000e+00 : f32
    %1377 = vector.broadcast %cst_363 : f32 to vector<1x256xf32>
    %1378 = arith.addf %5, %1377 : vector<1x256xf32>
    %cst_364 = arith.constant 1.500000e+01 : f32
    %1379 = vector.broadcast %cst_364 : f32 to vector<1x256xf32>
    %1380 = arith.cmpf ole, %1378, %1379 : vector<1x256xf32>
    %1381 = arith.andi %1376, %1380 : vector<1x256xi1>
    %cst_365 = arith.constant 1.000000e+00 : f32
    %1382 = vector.broadcast %cst_365 : f32 to vector<1x256xf32>
    %1383 = arith.addf %6, %1382 : vector<1x256xf32>
    %cst_366 = arith.constant 0.000000e+00 : f32
    %1384 = vector.broadcast %cst_366 : f32 to vector<1x256xf32>
    %1385 = arith.cmpf oge, %1383, %1384 : vector<1x256xf32>
    %1386 = arith.andi %1381, %1385 : vector<1x256xi1>
    %cst_367 = arith.constant 1.000000e+00 : f32
    %1387 = vector.broadcast %cst_367 : f32 to vector<1x256xf32>
    %1388 = arith.addf %6, %1387 : vector<1x256xf32>
    %cst_368 = arith.constant 1.500000e+01 : f32
    %1389 = vector.broadcast %cst_368 : f32 to vector<1x256xf32>
    %1390 = arith.cmpf ole, %1388, %1389 : vector<1x256xf32>
    %1391 = arith.andi %1386, %1390 : vector<1x256xi1>
    %c39 = arith.constant 39 : index
    %1392 = memref.load %arg1[%c39] : memref<98xf32, #tpu.memory_space<smem>>
    %c88 = arith.constant 88 : index
    %1393 = memref.load %arg1[%c88] : memref<98xf32, #tpu.memory_space<smem>>
    %1394 = vector.broadcast %1392 : f32 to vector<1x256xf32>
    %1395 = arith.mulf %1394, %1369 : vector<1x256xf32>
    %1396 = vector.broadcast %1393 : f32 to vector<1x256xf32>
    %1397 = arith.mulf %1396, %1372 : vector<1x256xf32>
    %1398 = arith.addf %1395, %1397 : vector<1x256xf32>
    %cst_369 = arith.constant 0.000000e+00 : f32
    %1399 = vector.broadcast %cst_369 : f32 to vector<1x256xf32>
    %1400 = arith.select %1391, %1398, %1399 : vector<1x256xi1>, vector<1x256xf32>
    %1401 = arith.addf %1366, %1400 : vector<1x256xf32>
    %1402 = vector.extract_strided_slice %1 {offsets = [0, 34], sizes = [1, 222], strides = [1, 1]} : vector<1x256xf32> to vector<1x222xf32>
    %1403 = vector.extract_strided_slice %1 {offsets = [0, 0], sizes = [1, 34], strides = [1, 1]} : vector<1x256xf32> to vector<1x34xf32>
    %1404 = tpu.concatenate %1402, %1403 in 1 : vector<1x222xf32>, vector<1x34xf32> -> vector<1x256xf32>
    %1405 = vector.extract_strided_slice %4 {offsets = [0, 34], sizes = [1, 222], strides = [1, 1]} : vector<1x256xf32> to vector<1x222xf32>
    %1406 = vector.extract_strided_slice %4 {offsets = [0, 0], sizes = [1, 34], strides = [1, 1]} : vector<1x256xf32> to vector<1x34xf32>
    %1407 = tpu.concatenate %1405, %1406 in 1 : vector<1x222xf32>, vector<1x34xf32> -> vector<1x256xf32>
    %cst_370 = arith.constant 2.000000e+00 : f32
    %1408 = vector.broadcast %cst_370 : f32 to vector<1x256xf32>
    %1409 = arith.addf %5, %1408 : vector<1x256xf32>
    %cst_371 = arith.constant 0.000000e+00 : f32
    %1410 = vector.broadcast %cst_371 : f32 to vector<1x256xf32>
    %1411 = arith.cmpf oge, %1409, %1410 : vector<1x256xf32>
    %cst_372 = arith.constant 2.000000e+00 : f32
    %1412 = vector.broadcast %cst_372 : f32 to vector<1x256xf32>
    %1413 = arith.addf %5, %1412 : vector<1x256xf32>
    %cst_373 = arith.constant 1.500000e+01 : f32
    %1414 = vector.broadcast %cst_373 : f32 to vector<1x256xf32>
    %1415 = arith.cmpf ole, %1413, %1414 : vector<1x256xf32>
    %1416 = arith.andi %1411, %1415 : vector<1x256xi1>
    %cst_374 = arith.constant 2.000000e+00 : f32
    %1417 = vector.broadcast %cst_374 : f32 to vector<1x256xf32>
    %1418 = arith.addf %6, %1417 : vector<1x256xf32>
    %cst_375 = arith.constant 0.000000e+00 : f32
    %1419 = vector.broadcast %cst_375 : f32 to vector<1x256xf32>
    %1420 = arith.cmpf oge, %1418, %1419 : vector<1x256xf32>
    %1421 = arith.andi %1416, %1420 : vector<1x256xi1>
    %cst_376 = arith.constant 2.000000e+00 : f32
    %1422 = vector.broadcast %cst_376 : f32 to vector<1x256xf32>
    %1423 = arith.addf %6, %1422 : vector<1x256xf32>
    %cst_377 = arith.constant 1.500000e+01 : f32
    %1424 = vector.broadcast %cst_377 : f32 to vector<1x256xf32>
    %1425 = arith.cmpf ole, %1423, %1424 : vector<1x256xf32>
    %1426 = arith.andi %1421, %1425 : vector<1x256xi1>
    %c40 = arith.constant 40 : index
    %1427 = memref.load %arg1[%c40] : memref<98xf32, #tpu.memory_space<smem>>
    %c89 = arith.constant 89 : index
    %1428 = memref.load %arg1[%c89] : memref<98xf32, #tpu.memory_space<smem>>
    %1429 = vector.broadcast %1427 : f32 to vector<1x256xf32>
    %1430 = arith.mulf %1429, %1404 : vector<1x256xf32>
    %1431 = vector.broadcast %1428 : f32 to vector<1x256xf32>
    %1432 = arith.mulf %1431, %1407 : vector<1x256xf32>
    %1433 = arith.addf %1430, %1432 : vector<1x256xf32>
    %cst_378 = arith.constant 0.000000e+00 : f32
    %1434 = vector.broadcast %cst_378 : f32 to vector<1x256xf32>
    %1435 = arith.select %1426, %1433, %1434 : vector<1x256xi1>, vector<1x256xf32>
    %1436 = arith.addf %1401, %1435 : vector<1x256xf32>
    %1437 = vector.extract_strided_slice %1 {offsets = [0, 35], sizes = [1, 221], strides = [1, 1]} : vector<1x256xf32> to vector<1x221xf32>
    %1438 = vector.extract_strided_slice %1 {offsets = [0, 0], sizes = [1, 35], strides = [1, 1]} : vector<1x256xf32> to vector<1x35xf32>
    %1439 = tpu.concatenate %1437, %1438 in 1 : vector<1x221xf32>, vector<1x35xf32> -> vector<1x256xf32>
    %1440 = vector.extract_strided_slice %4 {offsets = [0, 35], sizes = [1, 221], strides = [1, 1]} : vector<1x256xf32> to vector<1x221xf32>
    %1441 = vector.extract_strided_slice %4 {offsets = [0, 0], sizes = [1, 35], strides = [1, 1]} : vector<1x256xf32> to vector<1x35xf32>
    %1442 = tpu.concatenate %1440, %1441 in 1 : vector<1x221xf32>, vector<1x35xf32> -> vector<1x256xf32>
    %cst_379 = arith.constant 2.000000e+00 : f32
    %1443 = vector.broadcast %cst_379 : f32 to vector<1x256xf32>
    %1444 = arith.addf %5, %1443 : vector<1x256xf32>
    %cst_380 = arith.constant 0.000000e+00 : f32
    %1445 = vector.broadcast %cst_380 : f32 to vector<1x256xf32>
    %1446 = arith.cmpf oge, %1444, %1445 : vector<1x256xf32>
    %cst_381 = arith.constant 2.000000e+00 : f32
    %1447 = vector.broadcast %cst_381 : f32 to vector<1x256xf32>
    %1448 = arith.addf %5, %1447 : vector<1x256xf32>
    %cst_382 = arith.constant 1.500000e+01 : f32
    %1449 = vector.broadcast %cst_382 : f32 to vector<1x256xf32>
    %1450 = arith.cmpf ole, %1448, %1449 : vector<1x256xf32>
    %1451 = arith.andi %1446, %1450 : vector<1x256xi1>
    %cst_383 = arith.constant 3.000000e+00 : f32
    %1452 = vector.broadcast %cst_383 : f32 to vector<1x256xf32>
    %1453 = arith.addf %6, %1452 : vector<1x256xf32>
    %cst_384 = arith.constant 0.000000e+00 : f32
    %1454 = vector.broadcast %cst_384 : f32 to vector<1x256xf32>
    %1455 = arith.cmpf oge, %1453, %1454 : vector<1x256xf32>
    %1456 = arith.andi %1451, %1455 : vector<1x256xi1>
    %cst_385 = arith.constant 3.000000e+00 : f32
    %1457 = vector.broadcast %cst_385 : f32 to vector<1x256xf32>
    %1458 = arith.addf %6, %1457 : vector<1x256xf32>
    %cst_386 = arith.constant 1.500000e+01 : f32
    %1459 = vector.broadcast %cst_386 : f32 to vector<1x256xf32>
    %1460 = arith.cmpf ole, %1458, %1459 : vector<1x256xf32>
    %1461 = arith.andi %1456, %1460 : vector<1x256xi1>
    %c41 = arith.constant 41 : index
    %1462 = memref.load %arg1[%c41] : memref<98xf32, #tpu.memory_space<smem>>
    %c90 = arith.constant 90 : index
    %1463 = memref.load %arg1[%c90] : memref<98xf32, #tpu.memory_space<smem>>
    %1464 = vector.broadcast %1462 : f32 to vector<1x256xf32>
    %1465 = arith.mulf %1464, %1439 : vector<1x256xf32>
    %1466 = vector.broadcast %1463 : f32 to vector<1x256xf32>
    %1467 = arith.mulf %1466, %1442 : vector<1x256xf32>
    %1468 = arith.addf %1465, %1467 : vector<1x256xf32>
    %cst_387 = arith.constant 0.000000e+00 : f32
    %1469 = vector.broadcast %cst_387 : f32 to vector<1x256xf32>
    %1470 = arith.select %1461, %1468, %1469 : vector<1x256xi1>, vector<1x256xf32>
    %1471 = arith.addf %1436, %1470 : vector<1x256xf32>
    %1472 = vector.extract_strided_slice %1 {offsets = [0, 45], sizes = [1, 211], strides = [1, 1]} : vector<1x256xf32> to vector<1x211xf32>
    %1473 = vector.extract_strided_slice %1 {offsets = [0, 0], sizes = [1, 45], strides = [1, 1]} : vector<1x256xf32> to vector<1x45xf32>
    %1474 = tpu.concatenate %1472, %1473 in 1 : vector<1x211xf32>, vector<1x45xf32> -> vector<1x256xf32>
    %1475 = vector.extract_strided_slice %4 {offsets = [0, 45], sizes = [1, 211], strides = [1, 1]} : vector<1x256xf32> to vector<1x211xf32>
    %1476 = vector.extract_strided_slice %4 {offsets = [0, 0], sizes = [1, 45], strides = [1, 1]} : vector<1x256xf32> to vector<1x45xf32>
    %1477 = tpu.concatenate %1475, %1476 in 1 : vector<1x211xf32>, vector<1x45xf32> -> vector<1x256xf32>
    %cst_388 = arith.constant 3.000000e+00 : f32
    %1478 = vector.broadcast %cst_388 : f32 to vector<1x256xf32>
    %1479 = arith.addf %5, %1478 : vector<1x256xf32>
    %cst_389 = arith.constant 0.000000e+00 : f32
    %1480 = vector.broadcast %cst_389 : f32 to vector<1x256xf32>
    %1481 = arith.cmpf oge, %1479, %1480 : vector<1x256xf32>
    %cst_390 = arith.constant 3.000000e+00 : f32
    %1482 = vector.broadcast %cst_390 : f32 to vector<1x256xf32>
    %1483 = arith.addf %5, %1482 : vector<1x256xf32>
    %cst_391 = arith.constant 1.500000e+01 : f32
    %1484 = vector.broadcast %cst_391 : f32 to vector<1x256xf32>
    %1485 = arith.cmpf ole, %1483, %1484 : vector<1x256xf32>
    %1486 = arith.andi %1481, %1485 : vector<1x256xi1>
    %cst_392 = arith.constant -3.000000e+00 : f32
    %1487 = vector.broadcast %cst_392 : f32 to vector<1x256xf32>
    %1488 = arith.addf %6, %1487 : vector<1x256xf32>
    %cst_393 = arith.constant 0.000000e+00 : f32
    %1489 = vector.broadcast %cst_393 : f32 to vector<1x256xf32>
    %1490 = arith.cmpf oge, %1488, %1489 : vector<1x256xf32>
    %1491 = arith.andi %1486, %1490 : vector<1x256xi1>
    %cst_394 = arith.constant -3.000000e+00 : f32
    %1492 = vector.broadcast %cst_394 : f32 to vector<1x256xf32>
    %1493 = arith.addf %6, %1492 : vector<1x256xf32>
    %cst_395 = arith.constant 1.500000e+01 : f32
    %1494 = vector.broadcast %cst_395 : f32 to vector<1x256xf32>
    %1495 = arith.cmpf ole, %1493, %1494 : vector<1x256xf32>
    %1496 = arith.andi %1491, %1495 : vector<1x256xi1>
    %c42 = arith.constant 42 : index
    %1497 = memref.load %arg1[%c42] : memref<98xf32, #tpu.memory_space<smem>>
    %c91 = arith.constant 91 : index
    %1498 = memref.load %arg1[%c91] : memref<98xf32, #tpu.memory_space<smem>>
    %1499 = vector.broadcast %1497 : f32 to vector<1x256xf32>
    %1500 = arith.mulf %1499, %1474 : vector<1x256xf32>
    %1501 = vector.broadcast %1498 : f32 to vector<1x256xf32>
    %1502 = arith.mulf %1501, %1477 : vector<1x256xf32>
    %1503 = arith.addf %1500, %1502 : vector<1x256xf32>
    %cst_396 = arith.constant 0.000000e+00 : f32
    %1504 = vector.broadcast %cst_396 : f32 to vector<1x256xf32>
    %1505 = arith.select %1496, %1503, %1504 : vector<1x256xi1>, vector<1x256xf32>
    %1506 = arith.addf %1471, %1505 : vector<1x256xf32>
    %1507 = vector.extract_strided_slice %1 {offsets = [0, 46], sizes = [1, 210], strides = [1, 1]} : vector<1x256xf32> to vector<1x210xf32>
    %1508 = vector.extract_strided_slice %1 {offsets = [0, 0], sizes = [1, 46], strides = [1, 1]} : vector<1x256xf32> to vector<1x46xf32>
    %1509 = tpu.concatenate %1507, %1508 in 1 : vector<1x210xf32>, vector<1x46xf32> -> vector<1x256xf32>
    %1510 = vector.extract_strided_slice %4 {offsets = [0, 46], sizes = [1, 210], strides = [1, 1]} : vector<1x256xf32> to vector<1x210xf32>
    %1511 = vector.extract_strided_slice %4 {offsets = [0, 0], sizes = [1, 46], strides = [1, 1]} : vector<1x256xf32> to vector<1x46xf32>
    %1512 = tpu.concatenate %1510, %1511 in 1 : vector<1x210xf32>, vector<1x46xf32> -> vector<1x256xf32>
    %cst_397 = arith.constant 3.000000e+00 : f32
    %1513 = vector.broadcast %cst_397 : f32 to vector<1x256xf32>
    %1514 = arith.addf %5, %1513 : vector<1x256xf32>
    %cst_398 = arith.constant 0.000000e+00 : f32
    %1515 = vector.broadcast %cst_398 : f32 to vector<1x256xf32>
    %1516 = arith.cmpf oge, %1514, %1515 : vector<1x256xf32>
    %cst_399 = arith.constant 3.000000e+00 : f32
    %1517 = vector.broadcast %cst_399 : f32 to vector<1x256xf32>
    %1518 = arith.addf %5, %1517 : vector<1x256xf32>
    %cst_400 = arith.constant 1.500000e+01 : f32
    %1519 = vector.broadcast %cst_400 : f32 to vector<1x256xf32>
    %1520 = arith.cmpf ole, %1518, %1519 : vector<1x256xf32>
    %1521 = arith.andi %1516, %1520 : vector<1x256xi1>
    %cst_401 = arith.constant -2.000000e+00 : f32
    %1522 = vector.broadcast %cst_401 : f32 to vector<1x256xf32>
    %1523 = arith.addf %6, %1522 : vector<1x256xf32>
    %cst_402 = arith.constant 0.000000e+00 : f32
    %1524 = vector.broadcast %cst_402 : f32 to vector<1x256xf32>
    %1525 = arith.cmpf oge, %1523, %1524 : vector<1x256xf32>
    %1526 = arith.andi %1521, %1525 : vector<1x256xi1>
    %cst_403 = arith.constant -2.000000e+00 : f32
    %1527 = vector.broadcast %cst_403 : f32 to vector<1x256xf32>
    %1528 = arith.addf %6, %1527 : vector<1x256xf32>
    %cst_404 = arith.constant 1.500000e+01 : f32
    %1529 = vector.broadcast %cst_404 : f32 to vector<1x256xf32>
    %1530 = arith.cmpf ole, %1528, %1529 : vector<1x256xf32>
    %1531 = arith.andi %1526, %1530 : vector<1x256xi1>
    %c43 = arith.constant 43 : index
    %1532 = memref.load %arg1[%c43] : memref<98xf32, #tpu.memory_space<smem>>
    %c92 = arith.constant 92 : index
    %1533 = memref.load %arg1[%c92] : memref<98xf32, #tpu.memory_space<smem>>
    %1534 = vector.broadcast %1532 : f32 to vector<1x256xf32>
    %1535 = arith.mulf %1534, %1509 : vector<1x256xf32>
    %1536 = vector.broadcast %1533 : f32 to vector<1x256xf32>
    %1537 = arith.mulf %1536, %1512 : vector<1x256xf32>
    %1538 = arith.addf %1535, %1537 : vector<1x256xf32>
    %cst_405 = arith.constant 0.000000e+00 : f32
    %1539 = vector.broadcast %cst_405 : f32 to vector<1x256xf32>
    %1540 = arith.select %1531, %1538, %1539 : vector<1x256xi1>, vector<1x256xf32>
    %1541 = arith.addf %1506, %1540 : vector<1x256xf32>
    %1542 = vector.extract_strided_slice %1 {offsets = [0, 47], sizes = [1, 209], strides = [1, 1]} : vector<1x256xf32> to vector<1x209xf32>
    %1543 = vector.extract_strided_slice %1 {offsets = [0, 0], sizes = [1, 47], strides = [1, 1]} : vector<1x256xf32> to vector<1x47xf32>
    %1544 = tpu.concatenate %1542, %1543 in 1 : vector<1x209xf32>, vector<1x47xf32> -> vector<1x256xf32>
    %1545 = vector.extract_strided_slice %4 {offsets = [0, 47], sizes = [1, 209], strides = [1, 1]} : vector<1x256xf32> to vector<1x209xf32>
    %1546 = vector.extract_strided_slice %4 {offsets = [0, 0], sizes = [1, 47], strides = [1, 1]} : vector<1x256xf32> to vector<1x47xf32>
    %1547 = tpu.concatenate %1545, %1546 in 1 : vector<1x209xf32>, vector<1x47xf32> -> vector<1x256xf32>
    %cst_406 = arith.constant 3.000000e+00 : f32
    %1548 = vector.broadcast %cst_406 : f32 to vector<1x256xf32>
    %1549 = arith.addf %5, %1548 : vector<1x256xf32>
    %cst_407 = arith.constant 0.000000e+00 : f32
    %1550 = vector.broadcast %cst_407 : f32 to vector<1x256xf32>
    %1551 = arith.cmpf oge, %1549, %1550 : vector<1x256xf32>
    %cst_408 = arith.constant 3.000000e+00 : f32
    %1552 = vector.broadcast %cst_408 : f32 to vector<1x256xf32>
    %1553 = arith.addf %5, %1552 : vector<1x256xf32>
    %cst_409 = arith.constant 1.500000e+01 : f32
    %1554 = vector.broadcast %cst_409 : f32 to vector<1x256xf32>
    %1555 = arith.cmpf ole, %1553, %1554 : vector<1x256xf32>
    %1556 = arith.andi %1551, %1555 : vector<1x256xi1>
    %cst_410 = arith.constant -1.000000e+00 : f32
    %1557 = vector.broadcast %cst_410 : f32 to vector<1x256xf32>
    %1558 = arith.addf %6, %1557 : vector<1x256xf32>
    %cst_411 = arith.constant 0.000000e+00 : f32
    %1559 = vector.broadcast %cst_411 : f32 to vector<1x256xf32>
    %1560 = arith.cmpf oge, %1558, %1559 : vector<1x256xf32>
    %1561 = arith.andi %1556, %1560 : vector<1x256xi1>
    %cst_412 = arith.constant -1.000000e+00 : f32
    %1562 = vector.broadcast %cst_412 : f32 to vector<1x256xf32>
    %1563 = arith.addf %6, %1562 : vector<1x256xf32>
    %cst_413 = arith.constant 1.500000e+01 : f32
    %1564 = vector.broadcast %cst_413 : f32 to vector<1x256xf32>
    %1565 = arith.cmpf ole, %1563, %1564 : vector<1x256xf32>
    %1566 = arith.andi %1561, %1565 : vector<1x256xi1>
    %c44 = arith.constant 44 : index
    %1567 = memref.load %arg1[%c44] : memref<98xf32, #tpu.memory_space<smem>>
    %c93 = arith.constant 93 : index
    %1568 = memref.load %arg1[%c93] : memref<98xf32, #tpu.memory_space<smem>>
    %1569 = vector.broadcast %1567 : f32 to vector<1x256xf32>
    %1570 = arith.mulf %1569, %1544 : vector<1x256xf32>
    %1571 = vector.broadcast %1568 : f32 to vector<1x256xf32>
    %1572 = arith.mulf %1571, %1547 : vector<1x256xf32>
    %1573 = arith.addf %1570, %1572 : vector<1x256xf32>
    %cst_414 = arith.constant 0.000000e+00 : f32
    %1574 = vector.broadcast %cst_414 : f32 to vector<1x256xf32>
    %1575 = arith.select %1566, %1573, %1574 : vector<1x256xi1>, vector<1x256xf32>
    %1576 = arith.addf %1541, %1575 : vector<1x256xf32>
    %1577 = vector.extract_strided_slice %1 {offsets = [0, 48], sizes = [1, 208], strides = [1, 1]} : vector<1x256xf32> to vector<1x208xf32>
    %1578 = vector.extract_strided_slice %1 {offsets = [0, 0], sizes = [1, 48], strides = [1, 1]} : vector<1x256xf32> to vector<1x48xf32>
    %1579 = tpu.concatenate %1577, %1578 in 1 : vector<1x208xf32>, vector<1x48xf32> -> vector<1x256xf32>
    %1580 = vector.extract_strided_slice %4 {offsets = [0, 48], sizes = [1, 208], strides = [1, 1]} : vector<1x256xf32> to vector<1x208xf32>
    %1581 = vector.extract_strided_slice %4 {offsets = [0, 0], sizes = [1, 48], strides = [1, 1]} : vector<1x256xf32> to vector<1x48xf32>
    %1582 = tpu.concatenate %1580, %1581 in 1 : vector<1x208xf32>, vector<1x48xf32> -> vector<1x256xf32>
    %cst_415 = arith.constant 3.000000e+00 : f32
    %1583 = vector.broadcast %cst_415 : f32 to vector<1x256xf32>
    %1584 = arith.addf %5, %1583 : vector<1x256xf32>
    %cst_416 = arith.constant 0.000000e+00 : f32
    %1585 = vector.broadcast %cst_416 : f32 to vector<1x256xf32>
    %1586 = arith.cmpf oge, %1584, %1585 : vector<1x256xf32>
    %cst_417 = arith.constant 3.000000e+00 : f32
    %1587 = vector.broadcast %cst_417 : f32 to vector<1x256xf32>
    %1588 = arith.addf %5, %1587 : vector<1x256xf32>
    %cst_418 = arith.constant 1.500000e+01 : f32
    %1589 = vector.broadcast %cst_418 : f32 to vector<1x256xf32>
    %1590 = arith.cmpf ole, %1588, %1589 : vector<1x256xf32>
    %1591 = arith.andi %1586, %1590 : vector<1x256xi1>
    %cst_419 = arith.constant 0.000000e+00 : f32
    %1592 = vector.broadcast %cst_419 : f32 to vector<1x256xf32>
    %1593 = arith.addf %6, %1592 : vector<1x256xf32>
    %cst_420 = arith.constant 0.000000e+00 : f32
    %1594 = vector.broadcast %cst_420 : f32 to vector<1x256xf32>
    %1595 = arith.cmpf oge, %1593, %1594 : vector<1x256xf32>
    %1596 = arith.andi %1591, %1595 : vector<1x256xi1>
    %cst_421 = arith.constant 0.000000e+00 : f32
    %1597 = vector.broadcast %cst_421 : f32 to vector<1x256xf32>
    %1598 = arith.addf %6, %1597 : vector<1x256xf32>
    %cst_422 = arith.constant 1.500000e+01 : f32
    %1599 = vector.broadcast %cst_422 : f32 to vector<1x256xf32>
    %1600 = arith.cmpf ole, %1598, %1599 : vector<1x256xf32>
    %1601 = arith.andi %1596, %1600 : vector<1x256xi1>
    %c45 = arith.constant 45 : index
    %1602 = memref.load %arg1[%c45] : memref<98xf32, #tpu.memory_space<smem>>
    %c94 = arith.constant 94 : index
    %1603 = memref.load %arg1[%c94] : memref<98xf32, #tpu.memory_space<smem>>
    %1604 = vector.broadcast %1602 : f32 to vector<1x256xf32>
    %1605 = arith.mulf %1604, %1579 : vector<1x256xf32>
    %1606 = vector.broadcast %1603 : f32 to vector<1x256xf32>
    %1607 = arith.mulf %1606, %1582 : vector<1x256xf32>
    %1608 = arith.addf %1605, %1607 : vector<1x256xf32>
    %cst_423 = arith.constant 0.000000e+00 : f32
    %1609 = vector.broadcast %cst_423 : f32 to vector<1x256xf32>
    %1610 = arith.select %1601, %1608, %1609 : vector<1x256xi1>, vector<1x256xf32>
    %1611 = arith.addf %1576, %1610 : vector<1x256xf32>
    %1612 = vector.extract_strided_slice %1 {offsets = [0, 49], sizes = [1, 207], strides = [1, 1]} : vector<1x256xf32> to vector<1x207xf32>
    %1613 = vector.extract_strided_slice %1 {offsets = [0, 0], sizes = [1, 49], strides = [1, 1]} : vector<1x256xf32> to vector<1x49xf32>
    %1614 = tpu.concatenate %1612, %1613 in 1 : vector<1x207xf32>, vector<1x49xf32> -> vector<1x256xf32>
    %1615 = vector.extract_strided_slice %4 {offsets = [0, 49], sizes = [1, 207], strides = [1, 1]} : vector<1x256xf32> to vector<1x207xf32>
    %1616 = vector.extract_strided_slice %4 {offsets = [0, 0], sizes = [1, 49], strides = [1, 1]} : vector<1x256xf32> to vector<1x49xf32>
    %1617 = tpu.concatenate %1615, %1616 in 1 : vector<1x207xf32>, vector<1x49xf32> -> vector<1x256xf32>
    %cst_424 = arith.constant 3.000000e+00 : f32
    %1618 = vector.broadcast %cst_424 : f32 to vector<1x256xf32>
    %1619 = arith.addf %5, %1618 : vector<1x256xf32>
    %cst_425 = arith.constant 0.000000e+00 : f32
    %1620 = vector.broadcast %cst_425 : f32 to vector<1x256xf32>
    %1621 = arith.cmpf oge, %1619, %1620 : vector<1x256xf32>
    %cst_426 = arith.constant 3.000000e+00 : f32
    %1622 = vector.broadcast %cst_426 : f32 to vector<1x256xf32>
    %1623 = arith.addf %5, %1622 : vector<1x256xf32>
    %cst_427 = arith.constant 1.500000e+01 : f32
    %1624 = vector.broadcast %cst_427 : f32 to vector<1x256xf32>
    %1625 = arith.cmpf ole, %1623, %1624 : vector<1x256xf32>
    %1626 = arith.andi %1621, %1625 : vector<1x256xi1>
    %cst_428 = arith.constant 1.000000e+00 : f32
    %1627 = vector.broadcast %cst_428 : f32 to vector<1x256xf32>
    %1628 = arith.addf %6, %1627 : vector<1x256xf32>
    %cst_429 = arith.constant 0.000000e+00 : f32
    %1629 = vector.broadcast %cst_429 : f32 to vector<1x256xf32>
    %1630 = arith.cmpf oge, %1628, %1629 : vector<1x256xf32>
    %1631 = arith.andi %1626, %1630 : vector<1x256xi1>
    %cst_430 = arith.constant 1.000000e+00 : f32
    %1632 = vector.broadcast %cst_430 : f32 to vector<1x256xf32>
    %1633 = arith.addf %6, %1632 : vector<1x256xf32>
    %cst_431 = arith.constant 1.500000e+01 : f32
    %1634 = vector.broadcast %cst_431 : f32 to vector<1x256xf32>
    %1635 = arith.cmpf ole, %1633, %1634 : vector<1x256xf32>
    %1636 = arith.andi %1631, %1635 : vector<1x256xi1>
    %c46 = arith.constant 46 : index
    %1637 = memref.load %arg1[%c46] : memref<98xf32, #tpu.memory_space<smem>>
    %c95 = arith.constant 95 : index
    %1638 = memref.load %arg1[%c95] : memref<98xf32, #tpu.memory_space<smem>>
    %1639 = vector.broadcast %1637 : f32 to vector<1x256xf32>
    %1640 = arith.mulf %1639, %1614 : vector<1x256xf32>
    %1641 = vector.broadcast %1638 : f32 to vector<1x256xf32>
    %1642 = arith.mulf %1641, %1617 : vector<1x256xf32>
    %1643 = arith.addf %1640, %1642 : vector<1x256xf32>
    %cst_432 = arith.constant 0.000000e+00 : f32
    %1644 = vector.broadcast %cst_432 : f32 to vector<1x256xf32>
    %1645 = arith.select %1636, %1643, %1644 : vector<1x256xi1>, vector<1x256xf32>
    %1646 = arith.addf %1611, %1645 : vector<1x256xf32>
    %1647 = vector.extract_strided_slice %1 {offsets = [0, 50], sizes = [1, 206], strides = [1, 1]} : vector<1x256xf32> to vector<1x206xf32>
    %1648 = vector.extract_strided_slice %1 {offsets = [0, 0], sizes = [1, 50], strides = [1, 1]} : vector<1x256xf32> to vector<1x50xf32>
    %1649 = tpu.concatenate %1647, %1648 in 1 : vector<1x206xf32>, vector<1x50xf32> -> vector<1x256xf32>
    %1650 = vector.extract_strided_slice %4 {offsets = [0, 50], sizes = [1, 206], strides = [1, 1]} : vector<1x256xf32> to vector<1x206xf32>
    %1651 = vector.extract_strided_slice %4 {offsets = [0, 0], sizes = [1, 50], strides = [1, 1]} : vector<1x256xf32> to vector<1x50xf32>
    %1652 = tpu.concatenate %1650, %1651 in 1 : vector<1x206xf32>, vector<1x50xf32> -> vector<1x256xf32>
    %cst_433 = arith.constant 3.000000e+00 : f32
    %1653 = vector.broadcast %cst_433 : f32 to vector<1x256xf32>
    %1654 = arith.addf %5, %1653 : vector<1x256xf32>
    %cst_434 = arith.constant 0.000000e+00 : f32
    %1655 = vector.broadcast %cst_434 : f32 to vector<1x256xf32>
    %1656 = arith.cmpf oge, %1654, %1655 : vector<1x256xf32>
    %cst_435 = arith.constant 3.000000e+00 : f32
    %1657 = vector.broadcast %cst_435 : f32 to vector<1x256xf32>
    %1658 = arith.addf %5, %1657 : vector<1x256xf32>
    %cst_436 = arith.constant 1.500000e+01 : f32
    %1659 = vector.broadcast %cst_436 : f32 to vector<1x256xf32>
    %1660 = arith.cmpf ole, %1658, %1659 : vector<1x256xf32>
    %1661 = arith.andi %1656, %1660 : vector<1x256xi1>
    %cst_437 = arith.constant 2.000000e+00 : f32
    %1662 = vector.broadcast %cst_437 : f32 to vector<1x256xf32>
    %1663 = arith.addf %6, %1662 : vector<1x256xf32>
    %cst_438 = arith.constant 0.000000e+00 : f32
    %1664 = vector.broadcast %cst_438 : f32 to vector<1x256xf32>
    %1665 = arith.cmpf oge, %1663, %1664 : vector<1x256xf32>
    %1666 = arith.andi %1661, %1665 : vector<1x256xi1>
    %cst_439 = arith.constant 2.000000e+00 : f32
    %1667 = vector.broadcast %cst_439 : f32 to vector<1x256xf32>
    %1668 = arith.addf %6, %1667 : vector<1x256xf32>
    %cst_440 = arith.constant 1.500000e+01 : f32
    %1669 = vector.broadcast %cst_440 : f32 to vector<1x256xf32>
    %1670 = arith.cmpf ole, %1668, %1669 : vector<1x256xf32>
    %1671 = arith.andi %1666, %1670 : vector<1x256xi1>
    %c47 = arith.constant 47 : index
    %1672 = memref.load %arg1[%c47] : memref<98xf32, #tpu.memory_space<smem>>
    %c96 = arith.constant 96 : index
    %1673 = memref.load %arg1[%c96] : memref<98xf32, #tpu.memory_space<smem>>
    %1674 = vector.broadcast %1672 : f32 to vector<1x256xf32>
    %1675 = arith.mulf %1674, %1649 : vector<1x256xf32>
    %1676 = vector.broadcast %1673 : f32 to vector<1x256xf32>
    %1677 = arith.mulf %1676, %1652 : vector<1x256xf32>
    %1678 = arith.addf %1675, %1677 : vector<1x256xf32>
    %cst_441 = arith.constant 0.000000e+00 : f32
    %1679 = vector.broadcast %cst_441 : f32 to vector<1x256xf32>
    %1680 = arith.select %1671, %1678, %1679 : vector<1x256xi1>, vector<1x256xf32>
    %1681 = arith.addf %1646, %1680 : vector<1x256xf32>
    %1682 = vector.extract_strided_slice %1 {offsets = [0, 51], sizes = [1, 205], strides = [1, 1]} : vector<1x256xf32> to vector<1x205xf32>
    %1683 = vector.extract_strided_slice %1 {offsets = [0, 0], sizes = [1, 51], strides = [1, 1]} : vector<1x256xf32> to vector<1x51xf32>
    %1684 = tpu.concatenate %1682, %1683 in 1 : vector<1x205xf32>, vector<1x51xf32> -> vector<1x256xf32>
    %1685 = vector.extract_strided_slice %4 {offsets = [0, 51], sizes = [1, 205], strides = [1, 1]} : vector<1x256xf32> to vector<1x205xf32>
    %1686 = vector.extract_strided_slice %4 {offsets = [0, 0], sizes = [1, 51], strides = [1, 1]} : vector<1x256xf32> to vector<1x51xf32>
    %1687 = tpu.concatenate %1685, %1686 in 1 : vector<1x205xf32>, vector<1x51xf32> -> vector<1x256xf32>
    %cst_442 = arith.constant 3.000000e+00 : f32
    %1688 = vector.broadcast %cst_442 : f32 to vector<1x256xf32>
    %1689 = arith.addf %5, %1688 : vector<1x256xf32>
    %cst_443 = arith.constant 0.000000e+00 : f32
    %1690 = vector.broadcast %cst_443 : f32 to vector<1x256xf32>
    %1691 = arith.cmpf oge, %1689, %1690 : vector<1x256xf32>
    %cst_444 = arith.constant 3.000000e+00 : f32
    %1692 = vector.broadcast %cst_444 : f32 to vector<1x256xf32>
    %1693 = arith.addf %5, %1692 : vector<1x256xf32>
    %cst_445 = arith.constant 1.500000e+01 : f32
    %1694 = vector.broadcast %cst_445 : f32 to vector<1x256xf32>
    %1695 = arith.cmpf ole, %1693, %1694 : vector<1x256xf32>
    %1696 = arith.andi %1691, %1695 : vector<1x256xi1>
    %cst_446 = arith.constant 3.000000e+00 : f32
    %1697 = vector.broadcast %cst_446 : f32 to vector<1x256xf32>
    %1698 = arith.addf %6, %1697 : vector<1x256xf32>
    %cst_447 = arith.constant 0.000000e+00 : f32
    %1699 = vector.broadcast %cst_447 : f32 to vector<1x256xf32>
    %1700 = arith.cmpf oge, %1698, %1699 : vector<1x256xf32>
    %1701 = arith.andi %1696, %1700 : vector<1x256xi1>
    %cst_448 = arith.constant 3.000000e+00 : f32
    %1702 = vector.broadcast %cst_448 : f32 to vector<1x256xf32>
    %1703 = arith.addf %6, %1702 : vector<1x256xf32>
    %cst_449 = arith.constant 1.500000e+01 : f32
    %1704 = vector.broadcast %cst_449 : f32 to vector<1x256xf32>
    %1705 = arith.cmpf ole, %1703, %1704 : vector<1x256xf32>
    %1706 = arith.andi %1701, %1705 : vector<1x256xi1>
    %c48 = arith.constant 48 : index
    %1707 = memref.load %arg1[%c48] : memref<98xf32, #tpu.memory_space<smem>>
    %c97 = arith.constant 97 : index
    %1708 = memref.load %arg1[%c97] : memref<98xf32, #tpu.memory_space<smem>>
    %1709 = vector.broadcast %1707 : f32 to vector<1x256xf32>
    %1710 = arith.mulf %1709, %1684 : vector<1x256xf32>
    %1711 = vector.broadcast %1708 : f32 to vector<1x256xf32>
    %1712 = arith.mulf %1711, %1687 : vector<1x256xf32>
    %1713 = arith.addf %1710, %1712 : vector<1x256xf32>
    %cst_450 = arith.constant 0.000000e+00 : f32
    %1714 = vector.broadcast %cst_450 : f32 to vector<1x256xf32>
    %1715 = arith.select %1706, %1713, %1714 : vector<1x256xi1>, vector<1x256xf32>
    %1716 = arith.addf %1681, %1715 : vector<1x256xf32>
    %1717 = arith.negf %1716 : vector<1x256xf32>
    %1718 = math.exp %1717 : vector<1x256xf32>
    %cst_451 = arith.constant 1.000000e+00 : f32
    %1719 = vector.broadcast %cst_451 : f32 to vector<1x256xf32>
    %1720 = arith.addf %1719, %1718 : vector<1x256xf32>
    %1721 = arith.divf %1719, %1720 : vector<1x256xf32>
    %1722 = vector.shape_cast %1721 : vector<1x256xf32> to vector<1x1x256xf32>
    %1723 = vector.broadcast %1722 : vector<1x1x256xf32> to vector<1x32x256xf32>
    %1724 = arith.mulf %0, %1723 : vector<1x32x256xf32>
    %c0_452 = arith.constant 0 : index
    %c0_453 = arith.constant 0 : index
    %c0_454 = arith.constant 0 : index
    %1725 = vector.load %arg5[%c0_452, %c0_453, %c0_454] : memref<1x32x256xf32, #tpu.memory_space<vmem>>, vector<1x32x256xf32>
    tpu.vector_store %arg5[%c0_452, %c0_453, %c0_454], %1724 {strides = array<i32>} : memref<1x32x256xf32, #tpu.memory_space<vmem>>, vector<1x32x256xf32>,
    return
  }
  func.func @transform_0(%arg0: i32) -> i32 {
    %c0_i32 = arith.constant 0 : i32
    %c0_i32_0 = arith.constant 0 : i32
    return %c0_i32 : i32
  }
  func.func @transform_1(%arg0: i32) -> (i32, i32, i32) {
    %c0_i32 = arith.constant 0 : i32
    %c0_i32_0 = arith.constant 0 : i32
    %c0_i32_1 = arith.constant 0 : i32
    return %arg0, %c0_i32, %c0_i32_0 : i32, i32, i32
  }
  func.func @transform_2(%arg0: i32) -> (i32, i32) {
    %c0_i32 = arith.constant 0 : i32
    %c0_i32_0 = arith.constant 0 : i32
    %c0_i32_1 = arith.constant 0 : i32
    return %c0_i32, %c0_i32_0 : i32, i32
  }
  func.func @transform_3(%arg0: i32) -> (i32, i32) {
    %c0_i32 = arith.constant 0 : i32
    %c0_i32_0 = arith.constant 0 : i32
    %c0_i32_1 = arith.constant 0 : i32
    return %c0_i32, %c0_i32_0 : i32, i32
  }
  func.func @transform_4(%arg0: i32) -> (i32, i32, i32) {
    %c0_i32 = arith.constant 0 : i32
    %c0_i32_0 = arith.constant 0 : i32
    %c0_i32_1 = arith.constant 0 : i32
    return %arg0, %c0_i32, %c0_i32_0 : i32, i32, i32
  }
}

</mosaic_0001>

<llo_original>
// kernel: tpu_custom_call.1
$region0: #{tpu_custom_call.1}
  #allocation0 [shape = 'u32[]', space=smem, size = 0x4, offset = 0x4, fixed_abs, tag = 'smem constant byte address 0x4 - core index']
  #allocation1 [shape = 'u32[144,128]{1,0:T(1,128)}', space=vmem, size = 0x12000, scoped, tag = 'internal scratch']
  %s0 = inlined_call_operand.hbm [shape: f32[98], index: 0, kind: input, shape index: {}]
  %s1 = inlined_call_operand.hbm [shape: f32[2,32,256], index: 1, kind: input, shape index: {}]
  %s2 = inlined_call_operand.vmem [shape: f32[1,256], index: 2, kind: input, shape index: {}]
  %s3 = inlined_call_operand.vmem [shape: f32[1,256], index: 3, kind: input, shape index: {}]
  %s4 = inlined_call_operand.hbm [shape: f32[2,32,256], index: 4, kind: output, shape index: {}]
  %s5 = sld [smem:[#allocation0]]
  $region57: #{tpu_custom_call.1} parent=0
    _
  %s7 = ssub.s32 1, %s5
  %s8 = scalar_select 0, %s7, %s5
  $region1: #{tpu_custom_call.1} parent=0
    #allocation2 [shape = 'u8[512]{0}', space=smem, size = 0x200, scoped, tag = 'input window, operand 0, single buffered']
    #allocation3 [shape = 's32[2]{0}', space=sflag, size = 0x8, scoped, tag = 'scoped memory for tpu_custom_call.1']
    #allocation4 [shape = 's32[2]{0}', space=sflag, size = 0x8, scoped, tag = 'scoped memory for tpu_custom_call.1']
    #allocation5 [shape = 's32[2]{0}', space=sflag, size = 0x8, scoped, tag = 'scoped memory for tpu_custom_call.1']
    #allocation6 [shape = 'u8[65536]{0}', space=vmem, size = 0x10000, scoped, tag = 'input window, operand 1']
    #allocation7 [shape = 'u8[65536]{0}', space=vmem, size = 0x10000, scoped, tag = 'output window, operand 0']
    %9 = vsyncpa [#allocation5], 0
    %10 = vsyncpa [#allocation3], 0
    %s11 = scalar_lea.sflag [#allocation3], 1
    %12 = vsyncpa %s11, 0
    %13 = vsyncpa [#allocation4], 0
    %s14 = scalar_lea.sflag [#allocation4], 1
    %15 = vsyncpa %s14, 0
    loop: start=0, step=1, limit=4
    $region2: #{tpu_custom_call.1} parent=1 // loop_pre_header
      _
    $region3: #{tpu_custom_call.1} parent=1 // loop_header
      %s17 = sphi 0, %s21
      %p18 = scmp.ge.s32.totalorder %s17, 4
      %s25 = sphi 0, %s25
      %s27 = sphi 0, %s25
      %s28 = sphi 0, %s27
      %s42 = sphi 0, %s28
      %s48 = sphi 0, %s50
      %s51 = sphi 0, %s48
      %s52 = sphi 0, %s51
      %s68 = sphi 0, %s52
      %s72 = sphi 0, %s72
      %s74 = sphi 0, %s72
      %s75 = sphi 0, %s74
      %s89 = sphi 0, %s75
      %s93 = sphi 0, %s93
      %s95 = sphi 0, %s93
      %s96 = sphi 0, %s95
      %s110 = sphi 0, %s96
      %s116 = sphi 0, %s118
      %s119 = sphi 0, %s116
      %s120 = sphi 0, %s119
      %s136 = sphi 0, %s120
    $region4: #{tpu_custom_call.1} parent=1 // loop_header_branch
      %20 = sbr.rel (%p18) target = $region8
    $region5: #{tpu_custom_call.1} parent=1 // loop_body
      %s22 = ssub.s32 %s17, 1
      %s23 = ssub.s32 %s17, 2
      %s24 = sadd.s32 %s17, 1
      %s26 = sadd.s32 %s25, 1
      %p29 = scmp.eq.s32.totalorder %s17, 1
      %p30 = scmp.ne.s32.totalorder %s25, %s27
      %p31 = scmp.eq.s32.totalorder %s17, 0
      %p32 = por %p30, %p31
      %p33 = scmp.ne.s32.totalorder %s25, %s27
      %p34 = scmp.eq.s32.totalorder %s22, 1
      %p35 = por %p33, %p34
      %p36 = scmp.ne.s32.totalorder %s27, %s28
      %p37 = scmp.eq.s32.totalorder %s22, 0
      %p38 = por %p36, %p37
      %p39 = scmp.ne.s32.totalorder %s27, %s28
      %p40 = scmp.eq.s32.totalorder %s23, 1
      %p41 = por %p39, %p40
      %p43 = scmp.ne.s32.totalorder %s28, %s42
      %p44 = scmp.eq.s32.totalorder %s23, 0
      %p45 = por %p43, %p44
      %s46 = ssub.s32 %s17, %s24
      %p47 = scmp.eq.s32.totalorder %s46, 0
      %s49 = sadd.s32 %s48, 1
      %s50 = scalar_select %p47, %s48, %s49
      %p53 = pneg %p47
      %p54 = scmp.eq.s32.totalorder %s17, 1
      %p55 = por %p53, %p54
      %p56 = scmp.ne.s32.totalorder %s48, %s51
      %p57 = scmp.eq.s32.totalorder %s17, 0
      %p58 = por %p56, %p57
      %p59 = scmp.ne.s32.totalorder %s48, %s51
      %p60 = scmp.eq.s32.totalorder %s22, 1
      %p61 = por %p59, %p60
      %p62 = scmp.ne.s32.totalorder %s51, %s52
      %p63 = scmp.eq.s32.totalorder %s22, 0
      %p64 = por %p62, %p63
      %p65 = scmp.ne.s32.totalorder %s51, %s52
      %p66 = scmp.eq.s32.totalorder %s23, 1
      %p67 = por %p65, %p66
      %p69 = scmp.ne.s32.totalorder %s52, %s68
      %p70 = scmp.eq.s32.totalorder %s23, 0
      %p71 = por %p69, %p70
      %s73 = sadd.s32 %s72, 1
      %p76 = scmp.eq.s32.totalorder %s17, 1
      %p77 = scmp.ne.s32.totalorder %s72, %s74
      %p78 = scmp.eq.s32.totalorder %s17, 0
      %p79 = por %p77, %p78
      %p80 = scmp.ne.s32.totalorder %s72, %s74
      %p81 = scmp.eq.s32.totalorder %s22, 1
      %p82 = por %p80, %p81
      %p83 = scmp.ne.s32.totalorder %s74, %s75
      %p84 = scmp.eq.s32.totalorder %s22, 0
      %p85 = por %p83, %p84
      %p86 = scmp.ne.s32.totalorder %s74, %s75
      %p87 = scmp.eq.s32.totalorder %s23, 1
      %p88 = por %p86, %p87
      %p90 = scmp.ne.s32.totalorder %s75, %s89
      %p91 = scmp.eq.s32.totalorder %s23, 0
      %p92 = por %p90, %p91
      %s94 = sadd.s32 %s93, 1
      %p97 = scmp.eq.s32.totalorder %s17, 1
      %p98 = scmp.ne.s32.totalorder %s93, %s95
      %p99 = scmp.eq.s32.totalorder %s17, 0
      %p100 = por %p98, %p99
      %p101 = scmp.ne.s32.totalorder %s93, %s95
      %p102 = scmp.eq.s32.totalorder %s22, 1
      %p103 = por %p101, %p102
      %p104 = scmp.ne.s32.totalorder %s95, %s96
      %p105 = scmp.eq.s32.totalorder %s22, 0
      %p106 = por %p104, %p105
      %p107 = scmp.ne.s32.totalorder %s95, %s96
      %p108 = scmp.eq.s32.totalorder %s23, 1
      %p109 = por %p107, %p108
      %p111 = scmp.ne.s32.totalorder %s96, %s110
      %p112 = scmp.eq.s32.totalorder %s23, 0
      %p113 = por %p111, %p112
      %s114 = ssub.s32 %s17, %s24
      %p115 = scmp.eq.s32.totalorder %s114, 0
      %s117 = sadd.s32 %s116, 1
      %s118 = scalar_select %p115, %s116, %s117
      %p121 = pneg %p115
      %p122 = scmp.eq.s32.totalorder %s17, 1
      %p123 = por %p121, %p122
      %p124 = scmp.ne.s32.totalorder %s116, %s119
      %p125 = scmp.eq.s32.totalorder %s17, 0
      %p126 = por %p124, %p125
      %p127 = scmp.ne.s32.totalorder %s116, %s119
      %p128 = scmp.eq.s32.totalorder %s22, 1
      %p129 = por %p127, %p128
      %p130 = scmp.ne.s32.totalorder %s119, %s120
      %p131 = scmp.eq.s32.totalorder %s22, 0
      %p132 = por %p130, %p131
      %p133 = scmp.ne.s32.totalorder %s119, %s120
      %p134 = scmp.eq.s32.totalorder %s23, 1
      %p135 = por %p133, %p134
      %p137 = scmp.ne.s32.totalorder %s120, %s136
      %p138 = scmp.eq.s32.totalorder %s23, 0
      %p139 = por %p137, %p138
      %p140 = scmp.le.s32.totalorder 1, %s17
      %p141 = scmp.lt.s32.totalorder %s17, 3
      %p142 = pnand %p140, %p141
      %p143 = pneg %p142
      // Predicated region
      $region9: #{tpu_custom_call.1} parent=5 // pred_check
        _
      $region10: #{tpu_custom_call.1} parent=5 // pred_check_branch
        %145 = sbr.rel (%p142) target = $region12
      $region11: #{tpu_custom_call.1} parent=5 // pred_region
        %s146 = ssub.s32 %s17, 1
        // Predicated region
        $region13: #{tpu_custom_call.1} parent=11 // pred_check
          %p147 = pneg %p38
        $region14: #{tpu_custom_call.1} parent=11 // pred_check_branch
          %149 = sbr.rel (%p147) target = $region16
        $region15: #{tpu_custom_call.1} parent=11 // pred_region
          %s151 = ssub.s32 16, 16
          %152 = vsyncadd [#allocation5], %s151
          %155 = dma.hbm_to_smem %s0, 16, [#allocation2], [#allocation5]
        $region16: #{tpu_custom_call.1} parent=11 // pred_fallthru
          _
        // Predicated region
        $region17: #{tpu_custom_call.1} parent=11 // pred_check
          %p156 = pneg %p85
        $region18: #{tpu_custom_call.1} parent=11 // pred_check_branch
          %158 = sbr.rel (%p156) target = $region20
        $region19: #{tpu_custom_call.1} parent=11 // pred_region
          _
        $region20: #{tpu_custom_call.1} parent=11 // pred_fallthru
          _
        // Predicated region
        $region21: #{tpu_custom_call.1} parent=11 // pred_check
          %p159 = pneg %p106
        $region22: #{tpu_custom_call.1} parent=11 // pred_check_branch
          %161 = sbr.rel (%p159) target = $region24
        $region23: #{tpu_custom_call.1} parent=11 // pred_region
          _
        $region24: #{tpu_custom_call.1} parent=11 // pred_fallthru
          _
      $region12: #{tpu_custom_call.1} parent=5 // pred_fallthru
        _
      %p162 = scmp.lt.s32.totalorder %s17, 2
      // Predicated region
      $region25: #{tpu_custom_call.1} parent=5 // pred_check
        %p163 = pneg %p162
      $region26: #{tpu_custom_call.1} parent=5 // pred_check_branch
        %165 = sbr.rel (%p163) target = $region28
      $region27: #{tpu_custom_call.1} parent=5 // pred_region
        // Predicated region
        $region29: #{tpu_custom_call.1} parent=27 // pred_check
          %p166 = pneg %p58
        $region30: #{tpu_custom_call.1} parent=27 // pred_check_branch
          %168 = sbr.rel (%p166) target = $region32
        $region31: #{tpu_custom_call.1} parent=27 // pred_region
          %s169 = sand.u32 %s48, 1
          %s170 = scalar_lea.sflag [#allocation3], %s169
          %s171 = sand.u32 %s48, 1
          %s172 = smul.addr %s171, 64
          %s173 = scalar_lea.vmem [#allocation6], %s172
          %s175 = ssub.s32 1024, 1024
          %176 = vsyncadd %s170, %s175
          %s177 = smul.addr %s17, 8
          %s178 = smul.addr %s177, 128
          %s179 = scalar_lea.hbm %s1, %s178
          %s180 = sshll.u32 %s173, 4
          %s181 = int_to_ptr.vmem [resolvable:$true] %s180
          %186 = dma.hbm_to_vmem [thread:$0]  %s179, 1024, %s181, %s170, 256, 256, 16
        $region32: #{tpu_custom_call.1} parent=27 // pred_fallthru
          _
      $region28: #{tpu_custom_call.1} parent=5 // pred_fallthru
        _
      %p187 = scmp.le.s32.totalorder 1, %s17
      %p188 = scmp.lt.s32.totalorder %s17, 3
      %p189 = pnand %p187, %p188
      %p190 = pneg %p189
      // Predicated region
      $region33: #{tpu_custom_call.1} parent=5 // pred_check
        _
      $region34: #{tpu_custom_call.1} parent=5 // pred_check_branch
        %192 = sbr.rel (%p189) target = $region36
      $region35: #{tpu_custom_call.1} parent=5 // pred_region
        %s193 = ssub.s32 %s17, 1
        // Predicated region
        $region37: #{tpu_custom_call.1} parent=35 // pred_check
          %p194 = pneg %p38
        $region38: #{tpu_custom_call.1} parent=35 // pred_check_branch
          %196 = sbr.rel (%p194) target = $region40
        $region39: #{tpu_custom_call.1} parent=35 // pred_region
          %197 = dma.done [#allocation5], 16
        $region40: #{tpu_custom_call.1} parent=35 // pred_fallthru
          _
        %s198 = sand.u32 %s51, 1
        %s199 = scalar_lea.sflag [#allocation3], %s198
        %s200 = sand.u32 %s51, 1
        %s201 = smul.addr %s200, 64
        %s202 = scalar_lea.vmem [#allocation6], %s201
        // Predicated region
        $region41: #{tpu_custom_call.1} parent=35 // pred_check
          %p203 = pneg %p64
        $region42: #{tpu_custom_call.1} parent=35 // pred_check_branch
          %205 = sbr.rel (%p203) target = $region44
        $region43: #{tpu_custom_call.1} parent=35 // pred_region
          %206 = dma.done %s199, 1024
        $region44: #{tpu_custom_call.1} parent=35 // pred_fallthru
          _
        %207 = sfence
        %p208 = pneg %p38
        %p209 = pneg %p35
        %s210 = sand.u32 %s51, 1
        %s211 = scalar_lea.sflag [#allocation3], %s210
        %s212 = sand.u32 %s51, 1
        %s213 = smul.addr %s212, 64
        %s214 = scalar_lea.vmem [#allocation6], %s213
        %p215 = pneg %p64
        %p216 = pneg %p61
        %p217 = pneg %p85
        %p218 = pneg %p82
        %p219 = pneg %p106
        %p220 = pneg %p103
        %p221 = pneg %p132
        %p222 = pneg %p129
        %s223 = sand.u32 %s119, 1
        %s224 = scalar_lea.sflag [#allocation4], %s223
        %s225 = sand.u32 %s119, 1
        %s226 = smul.addr %s225, 64
        %s227 = scalar_lea.vmem [#allocation7], %s226
        %v228 = vld [vmem:[%s202] sm:$0xff]
        %v229 = vld [vmem:[%s202 + $0x8] sm:$0xff]
        %v230 = vld [vmem:[%s202 + $0x10] sm:$0xff]
        %v231 = vld [vmem:[%s202 + $0x18] sm:$0xff]
        %v232 = vld [vmem:[%s202 + $0x20] sm:$0xff]
        %v233 = vld [vmem:[%s202 + $0x28] sm:$0xff]
        %v234 = vld [vmem:[%s202 + $0x30] sm:$0xff]
        %v235 = vld [vmem:[%s202 + $0x38] sm:$0xff]
        %v236 = vmax.f32 %v228, %v232
        %v237 = vmax.f32 %v230, %v234
        %v238 = vmax.f32 %v236, %v237
        %v239 = vrot.slane %v238, 4
        %v240 = vmax.f32 %v238, %v239
        %v241 = vrot.slane %v240, 2
        %v242 = vmax.f32 %v240, %v241
        %v243 = vrot.slane %v242, 1
        %v244 = vmax.f32 %v242, %v243
        %v245 = vmax.f32 %v229, %v233
        %v246 = vmax.f32 %v231, %v235
        %v247 = vmax.f32 %v245, %v246
        %v248 = vrot.slane %v247, 4
        %v249 = vmax.f32 %v247, %v248
        %v250 = vrot.slane %v249, 2
        %v251 = vmax.f32 %v249, %v250
        %v252 = vrot.slane %v251, 1
        %v253 = vmax.f32 %v251, %v252
        %v254 = vadd.f32 %v228, %v230
        %v255 = vadd.f32 %v254, %v232
        %v256 = vadd.f32 %v255, %v234
        %v257 = vrot.slane %v256, 4
        %v258 = vadd.f32 %v256, %v257
        %v259 = vrot.slane %v258, 2
        %v260 = vadd.f32 %v258, %v259
        %v261 = vrot.slane %v260, 1
        %v262 = vadd.f32 %v260, %v261
        %v263 = vadd.f32 %v229, %v231
        %v264 = vadd.f32 %v263, %v233
        %v265 = vadd.f32 %v264, %v235
        %v266 = vrot.slane %v265, 4
        %v267 = vadd.f32 %v265, %v266
        %v268 = vrot.slane %v267, 2
        %v269 = vadd.f32 %v267, %v268
        %v270 = vrot.slane %v269, 1
        %v271 = vadd.f32 %v269, %v270
        %v272 = vmul.f32 %v262, 0.03125
        %v273 = vmul.f32 %v271, 0.03125
        %v274 = vld [vmem:[%s2] sm:$0x3]
        %v275 = vld [vmem:[%s3] sm:$0x3]
        %277 = vrot.lane.b32.xlu0 %v253, 51
        %v278 = vpop.permute.xlu0 %277
        %281 = vrot.lane.b32.xlu0 %v244, 51
        %v282 = vpop.permute.xlu0 %281
        %vm283 = vcmask 416768
        %v284 = vsel %vm283, %v282, %v278
        %v287 = vsel %vm283, %v278, %v282
        %289 = vrot.lane.b32.xlu0 %v273, 51
        %v290 = vpop.permute.xlu0 %289
        %293 = vrot.lane.b32.xlu0 %v272, 51
        %v294 = vpop.permute.xlu0 %293
        %v295 = vsel %vm283, %v294, %v290
        %v298 = vsel %vm283, %v290, %v294
        %v299 = vadd.f32 %v274, -3.0
        %vm300 = vcmp.ge.f32.partialorder %v299, 0.0
        %vm301 = vcmp.le.f32.partialorder %v299, 15.0
        %vm302 = vmand %vm300, %vm301
        %v303 = vadd.f32 %v275, -3.0
        %vm304 = vcmp.ge.f32.partialorder %v303, 0.0
        %vm305 = vmand %vm302, %vm304
        %vm306 = vcmp.le.f32.partialorder %v303, 15.0
        %vm307 = vmand %vm305, %vm306
        %s308 = sld [smem:[#allocation2]]
        %s309 = sld [smem:[#allocation2 + $0x31]]
        %v310 = vstv %s308
        %v311 = vmul.f32 %v310, %v287
        %v312 = vmul.f32 %v310, %v284
        %v313 = vstv %s309
        %v314 = vmul.f32 %v313, %v298
        %v315 = vmul.f32 %v313, %v295
        %v316 = vadd.f32 %v311, %v314
        %v317 = vadd.f32 %v312, %v315
        %v320 = vcombine.low %v316, %v317
        %v322 = vunpack.c.l.s4 1966171168
        %v323 = vunpack.c.0.s8 %v322
        %v324 = vlaneseq
        %v325 = vshrl.u32 %v324, 7
        %v326 = vsub.s32 %v323, %v325
        %v327 = vrot.slane %v320, %v326
        %v329 = vunpack.c.l.s4 1966171168
        %v330 = vunpack.c.0.s8 %v329
        %v331 = vlaneseq
        %v332 = vshrl.u32 %v331, 7
        %v333 = vsub.s32 %v330, %v332
        %v334 = vrot.slane %v327, %v333
        %v336 = vsel %vm307, %v334, 0.0
        %v337 = vadd.f32 %v336, 0.0
        %338 = vrot.lane.b32.xlu0 %v253, 50
        %v339 = vpop.permute.xlu0 %338
        %341 = vrot.lane.b32.xlu0 %v244, 50
        %v342 = vpop.permute.xlu0 %341
        %vm343 = vcmask 408576
        %v344 = vsel %vm343, %v342, %v339
        %v347 = vsel %vm343, %v339, %v342
        %348 = vrot.lane.b32.xlu0 %v273, 50
        %v349 = vpop.permute.xlu0 %348
        %351 = vrot.lane.b32.xlu0 %v272, 50
        %v352 = vpop.permute.xlu0 %351
        %v353 = vsel %vm343, %v352, %v349
        %v356 = vsel %vm343, %v349, %v352
        %v357 = vadd.f32 %v275, -2.0
        %vm358 = vcmp.ge.f32.partialorder %v357, 0.0
        %vm359 = vmand %vm302, %vm358
        %vm360 = vcmp.le.f32.partialorder %v357, 15.0
        %vm361 = vmand %vm359, %vm360
        %s362 = sld [smem:[#allocation2 + $0x1]]
        %s363 = sld [smem:[#allocation2 + $0x32]]
        %v364 = vstv %s362
        %v365 = vmul.f32 %v364, %v347
        %v366 = vmul.f32 %v364, %v344
        %v367 = vstv %s363
        %v368 = vmul.f32 %v367, %v356
        %v369 = vmul.f32 %v367, %v353
        %v370 = vadd.f32 %v365, %v368
        %v371 = vadd.f32 %v366, %v369
        %v374 = vcombine.low %v370, %v371
        %v376 = vunpack.c.l.s4 1966171168
        %v377 = vunpack.c.0.s8 %v376
        %v378 = vlaneseq
        %v379 = vshrl.u32 %v378, 7
        %v380 = vsub.s32 %v377, %v379
        %v381 = vrot.slane %v374, %v380
        %v383 = vunpack.c.l.s4 1966171168
        %v384 = vunpack.c.0.s8 %v383
        %v385 = vlaneseq
        %v386 = vshrl.u32 %v385, 7
        %v387 = vsub.s32 %v384, %v386
        %v388 = vrot.slane %v381, %v387
        %v390 = vsel %vm361, %v388, 0.0
        %v391 = vadd.f32 %v337, %v390
        %392 = vrot.lane.b32.xlu0 %v253, 49
        %v393 = vpop.permute.xlu0 %392
        %395 = vrot.lane.b32.xlu0 %v244, 49
        %v396 = vpop.permute.xlu0 %395
        %vm397 = vcmask 400384
        %v398 = vsel %vm397, %v396, %v393
        %v401 = vsel %vm397, %v393, %v396
        %402 = vrot.lane.b32.xlu0 %v273, 49
        %v403 = vpop.permute.xlu0 %402
        %405 = vrot.lane.b32.xlu0 %v272, 49
        %v406 = vpop.permute.xlu0 %405
        %v407 = vsel %vm397, %v406, %v403
        %v410 = vsel %vm397, %v403, %v406
        %v411 = vadd.f32 %v275, -1.0
        %vm412 = vcmp.ge.f32.partialorder %v411, 0.0
        %vm413 = vmand %vm302, %vm412
        %vm414 = vcmp.le.f32.partialorder %v411, 15.0
        %vm415 = vmand %vm413, %vm414
        %s416 = sld [smem:[#allocation2 + $0x2]]
        %s417 = sld [smem:[#allocation2 + $0x33]]
        %v418 = vstv %s416
        %v419 = vmul.f32 %v418, %v401
        %v420 = vmul.f32 %v418, %v398
        %v421 = vstv %s417
        %v422 = vmul.f32 %v421, %v410
        %v423 = vmul.f32 %v421, %v407
        %v424 = vadd.f32 %v419, %v422
        %v425 = vadd.f32 %v420, %v423
        %v428 = vcombine.low %v424, %v425
        %v430 = vunpack.c.l.s4 1966171168
        %v431 = vunpack.c.0.s8 %v430
        %v432 = vlaneseq
        %v433 = vshrl.u32 %v432, 7
        %v434 = vsub.s32 %v431, %v433
        %v435 = vrot.slane %v428, %v434
        %v437 = vunpack.c.l.s4 1966171168
        %v438 = vunpack.c.0.s8 %v437
        %v439 = vlaneseq
        %v440 = vshrl.u32 %v439, 7
        %v441 = vsub.s32 %v438, %v440
        %v442 = vrot.slane %v435, %v441
        %v444 = vsel %vm415, %v442, 0.0
        %v445 = vadd.f32 %v391, %v444
        %446 = vrot.lane.b32.xlu0 %v253, 48
        %v447 = vpop.permute.xlu0 %446
        %449 = vrot.lane.b32.xlu0 %v244, 48
        %v450 = vpop.permute.xlu0 %449
        %vm451 = vcmask 392192
        %v452 = vsel %vm451, %v450, %v447
        %v455 = vsel %vm451, %v447, %v450
        %456 = vrot.lane.b32.xlu0 %v273, 48
        %v457 = vpop.permute.xlu0 %456
        %459 = vrot.lane.b32.xlu0 %v272, 48
        %v460 = vpop.permute.xlu0 %459
        %v461 = vsel %vm451, %v460, %v457
        %v464 = vsel %vm451, %v457, %v460
        %v465 = vadd.f32 %v275, 0.0
        %vm466 = vcmp.ge.f32.partialorder %v465, 0.0
        %vm467 = vmand %vm302, %vm466
        %vm468 = vcmp.le.f32.partialorder %v465, 15.0
        %vm469 = vmand %vm467, %vm468
        %s470 = sld [smem:[#allocation2 + $0x3]]
        %s471 = sld [smem:[#allocation2 + $0x34]]
        %v472 = vstv %s470
        %v473 = vmul.f32 %v472, %v455
        %v474 = vmul.f32 %v472, %v452
        %v475 = vstv %s471
        %v476 = vmul.f32 %v475, %v464
        %v477 = vmul.f32 %v475, %v461
        %v478 = vadd.f32 %v473, %v476
        %v479 = vadd.f32 %v474, %v477
        %v482 = vcombine.low %v478, %v479
        %v484 = vunpack.c.l.s4 1966171168
        %v485 = vunpack.c.0.s8 %v484
        %v486 = vlaneseq
        %v487 = vshrl.u32 %v486, 7
        %v488 = vsub.s32 %v485, %v487
        %v489 = vrot.slane %v482, %v488
        %v491 = vunpack.c.l.s4 1966171168
        %v492 = vunpack.c.0.s8 %v491
        %v493 = vlaneseq
        %v494 = vshrl.u32 %v493, 7
        %v495 = vsub.s32 %v492, %v494
        %v496 = vrot.slane %v489, %v495
        %v498 = vsel %vm469, %v496, 0.0
        %v499 = vadd.f32 %v445, %v498
        %500 = vrot.lane.b32.xlu0 %v253, 47
        %v501 = vpop.permute.xlu0 %500
        %503 = vrot.lane.b32.xlu0 %v244, 47
        %v504 = vpop.permute.xlu0 %503
        %vm505 = vcmask 384000
        %v506 = vsel %vm505, %v504, %v501
        %v509 = vsel %vm505, %v501, %v504
        %510 = vrot.lane.b32.xlu0 %v273, 47
        %v511 = vpop.permute.xlu0 %510
        %513 = vrot.lane.b32.xlu0 %v272, 47
        %v514 = vpop.permute.xlu0 %513
        %v515 = vsel %vm505, %v514, %v511
        %v518 = vsel %vm505, %v511, %v514
        %v519 = vadd.f32 %v275, 1.0
        %vm520 = vcmp.ge.f32.partialorder %v519, 0.0
        %vm521 = vmand %vm302, %vm520
        %vm522 = vcmp.le.f32.partialorder %v519, 15.0
        %vm523 = vmand %vm521, %vm522
        %s524 = sld [smem:[#allocation2 + $0x4]]
        %s525 = sld [smem:[#allocation2 + $0x35]]
        %v526 = vstv %s524
        %v527 = vmul.f32 %v526, %v509
        %v528 = vmul.f32 %v526, %v506
        %v529 = vstv %s525
        %v530 = vmul.f32 %v529, %v518
        %v531 = vmul.f32 %v529, %v515
        %v532 = vadd.f32 %v527, %v530
        %v533 = vadd.f32 %v528, %v531
        %v536 = vcombine.low %v532, %v533
        %v538 = vunpack.c.l.s4 1966171168
        %v539 = vunpack.c.0.s8 %v538
        %v540 = vlaneseq
        %v541 = vshrl.u32 %v540, 7
        %v542 = vsub.s32 %v539, %v541
        %v543 = vrot.slane %v536, %v542
        %v545 = vunpack.c.l.s4 1966171168
        %v546 = vunpack.c.0.s8 %v545
        %v547 = vlaneseq
        %v548 = vshrl.u32 %v547, 7
        %v549 = vsub.s32 %v546, %v548
        %v550 = vrot.slane %v543, %v549
        %v552 = vsel %vm523, %v550, 0.0
        %v553 = vadd.f32 %v499, %v552
        %554 = vrot.lane.b32.xlu0 %v253, 46
        %v555 = vpop.permute.xlu0 %554
        %557 = vrot.lane.b32.xlu0 %v244, 46
        %v558 = vpop.permute.xlu0 %557
        %vm559 = vcmask 375808
        %v560 = vsel %vm559, %v558, %v555
        %v563 = vsel %vm559, %v555, %v558
        %564 = vrot.lane.b32.xlu0 %v273, 46
        %v565 = vpop.permute.xlu0 %564
        %567 = vrot.lane.b32.xlu0 %v272, 46
        %v568 = vpop.permute.xlu0 %567
        %v569 = vsel %vm559, %v568, %v565
        %v572 = vsel %vm559, %v565, %v568
        %v573 = vadd.f32 %v275, 2.0
        %vm574 = vcmp.ge.f32.partialorder %v573, 0.0
        %vm575 = vmand %vm302, %vm574
        %vm576 = vcmp.le.f32.partialorder %v573, 15.0
        %vm577 = vmand %vm575, %vm576
        %s578 = sld [smem:[#allocation2 + $0x5]]
        %s579 = sld [smem:[#allocation2 + $0x36]]
        %v580 = vstv %s578
        %v581 = vmul.f32 %v580, %v563
        %v582 = vmul.f32 %v580, %v560
        %v583 = vstv %s579
        %v584 = vmul.f32 %v583, %v572
        %v585 = vmul.f32 %v583, %v569
        %v586 = vadd.f32 %v581, %v584
        %v587 = vadd.f32 %v582, %v585
        %v590 = vcombine.low %v586, %v587
        %v592 = vunpack.c.l.s4 1966171168
        %v593 = vunpack.c.0.s8 %v592
        %v594 = vlaneseq
        %v595 = vshrl.u32 %v594, 7
        %v596 = vsub.s32 %v593, %v595
        %v597 = vrot.slane %v590, %v596
        %v599 = vunpack.c.l.s4 1966171168
        %v600 = vunpack.c.0.s8 %v599
        %v601 = vlaneseq
        %v602 = vshrl.u32 %v601, 7
        %v603 = vsub.s32 %v600, %v602
        %v604 = vrot.slane %v597, %v603
        %v606 = vsel %vm577, %v604, 0.0
        %v607 = vadd.f32 %v553, %v606
        %608 = vrot.lane.b32.xlu0 %v253, 45
        %v609 = vpop.permute.xlu0 %608
        %611 = vrot.lane.b32.xlu0 %v244, 45
        %v612 = vpop.permute.xlu0 %611
        %vm613 = vcmask 367616
        %v614 = vsel %vm613, %v612, %v609
        %v617 = vsel %vm613, %v609, %v612
        %618 = vrot.lane.b32.xlu0 %v273, 45
        %v619 = vpop.permute.xlu0 %618
        %621 = vrot.lane.b32.xlu0 %v272, 45
        %v622 = vpop.permute.xlu0 %621
        %v623 = vsel %vm613, %v622, %v619
        %v626 = vsel %vm613, %v619, %v622
        %v627 = vadd.f32 %v275, 3.0
        %vm628 = vcmp.ge.f32.partialorder %v627, 0.0
        %vm629 = vmand %vm302, %vm628
        %vm630 = vcmp.le.f32.partialorder %v627, 15.0
        %vm631 = vmand %vm629, %vm630
        %s632 = sld [smem:[#allocation2 + $0x6]]
        %s633 = sld [smem:[#allocation2 + $0x37]]
        %v634 = vstv %s632
        %v635 = vmul.f32 %v634, %v617
        %v636 = vmul.f32 %v634, %v614
        %v637 = vstv %s633
        %v638 = vmul.f32 %v637, %v626
        %v639 = vmul.f32 %v637, %v623
        %v640 = vadd.f32 %v635, %v638
        %v641 = vadd.f32 %v636, %v639
        %v644 = vcombine.low %v640, %v641
        %v646 = vunpack.c.l.s4 1966171168
        %v647 = vunpack.c.0.s8 %v646
        %v648 = vlaneseq
        %v649 = vshrl.u32 %v648, 7
        %v650 = vsub.s32 %v647, %v649
        %v651 = vrot.slane %v644, %v650
        %v653 = vunpack.c.l.s4 1966171168
        %v654 = vunpack.c.0.s8 %v653
        %v655 = vlaneseq
        %v656 = vshrl.u32 %v655, 7
        %v657 = vsub.s32 %v654, %v656
        %v658 = vrot.slane %v651, %v657
        %v660 = vsel %vm631, %v658, 0.0
        %v661 = vadd.f32 %v607, %v660
        %662 = vrot.lane.b32.xlu0 %v253, 35
        %v663 = vpop.permute.xlu0 %662
        %665 = vrot.lane.b32.xlu0 %v244, 35
        %v666 = vpop.permute.xlu0 %665
        %vm667 = vcmask 285696
        %v668 = vsel %vm667, %v666, %v663
        %v671 = vsel %vm667, %v663, %v666
        %672 = vrot.lane.b32.xlu0 %v273, 35
        %v673 = vpop.permute.xlu0 %672
        %675 = vrot.lane.b32.xlu0 %v272, 35
        %v676 = vpop.permute.xlu0 %675
        %v677 = vsel %vm667, %v676, %v673
        %v680 = vsel %vm667, %v673, %v676
        %v681 = vadd.f32 %v274, -2.0
        %vm682 = vcmp.ge.f32.partialorder %v681, 0.0
        %vm683 = vcmp.le.f32.partialorder %v681, 15.0
        %vm684 = vmand %vm682, %vm683
        %vm685 = vmand %vm684, %vm304
        %vm686 = vmand %vm685, %vm306
        %s687 = sld [smem:[#allocation2 + $0x7]]
        %s688 = sld [smem:[#allocation2 + $0x38]]
        %v689 = vstv %s687
        %v690 = vmul.f32 %v689, %v671
        %v691 = vmul.f32 %v689, %v668
        %v692 = vstv %s688
        %v693 = vmul.f32 %v692, %v680
        %v694 = vmul.f32 %v692, %v677
        %v695 = vadd.f32 %v690, %v693
        %v696 = vadd.f32 %v691, %v694
        %v699 = vcombine.low %v695, %v696
        %v701 = vunpack.c.l.s4 1966171168
        %v702 = vunpack.c.0.s8 %v701
        %v703 = vlaneseq
        %v704 = vshrl.u32 %v703, 7
        %v705 = vsub.s32 %v702, %v704
        %v706 = vrot.slane %v699, %v705
        %v708 = vunpack.c.l.s4 1966171168
        %v709 = vunpack.c.0.s8 %v708
        %v710 = vlaneseq
        %v711 = vshrl.u32 %v710, 7
        %v712 = vsub.s32 %v709, %v711
        %v713 = vrot.slane %v706, %v712
        %v715 = vsel %vm686, %v713, 0.0
        %v716 = vadd.f32 %v661, %v715
        %717 = vrot.lane.b32.xlu0 %v253, 34
        %v718 = vpop.permute.xlu0 %717
        %720 = vrot.lane.b32.xlu0 %v244, 34
        %v721 = vpop.permute.xlu0 %720
        %vm722 = vcmask 277504
        %v723 = vsel %vm722, %v721, %v718
        %v726 = vsel %vm722, %v718, %v721
        %727 = vrot.lane.b32.xlu0 %v273, 34
        %v728 = vpop.permute.xlu0 %727
        %730 = vrot.lane.b32.xlu0 %v272, 34
        %v731 = vpop.permute.xlu0 %730
        %v732 = vsel %vm722, %v731, %v728
        %v735 = vsel %vm722, %v728, %v731
        %vm736 = vmand %vm684, %vm358
        %vm737 = vmand %vm736, %vm360
        %s738 = sld [smem:[#allocation2 + $0x8]]
        %s739 = sld [smem:[#allocation2 + $0x39]]
        %v740 = vstv %s738
        %v741 = vmul.f32 %v740, %v726
        %v742 = vmul.f32 %v740, %v723
        %v743 = vstv %s739
        %v744 = vmul.f32 %v743, %v735
        %v745 = vmul.f32 %v743, %v732
        %v746 = vadd.f32 %v741, %v744
        %v747 = vadd.f32 %v742, %v745
        %v750 = vcombine.low %v746, %v747
        %v752 = vunpack.c.l.s4 1966171168
        %v753 = vunpack.c.0.s8 %v752
        %v754 = vlaneseq
        %v755 = vshrl.u32 %v754, 7
        %v756 = vsub.s32 %v753, %v755
        %v757 = vrot.slane %v750, %v756
        %v759 = vunpack.c.l.s4 1966171168
        %v760 = vunpack.c.0.s8 %v759
        %v761 = vlaneseq
        %v762 = vshrl.u32 %v761, 7
        %v763 = vsub.s32 %v760, %v762
        %v764 = vrot.slane %v757, %v763
        %v766 = vsel %vm737, %v764, 0.0
        %v767 = vadd.f32 %v716, %v766
        %768 = vrot.lane.b32.xlu0 %v253, 33
        %v769 = vpop.permute.xlu0 %768
        %771 = vrot.lane.b32.xlu0 %v244, 33
        %v772 = vpop.permute.xlu0 %771
        %vm773 = vcmask 269312
        %v774 = vsel %vm773, %v772, %v769
        %v777 = vsel %vm773, %v769, %v772
        %778 = vrot.lane.b32.xlu0 %v273, 33
        %v779 = vpop.permute.xlu0 %778
        %781 = vrot.lane.b32.xlu0 %v272, 33
        %v782 = vpop.permute.xlu0 %781
        %v783 = vsel %vm773, %v782, %v779
        %v786 = vsel %vm773, %v779, %v782
        %vm787 = vmand %vm684, %vm412
        %vm788 = vmand %vm787, %vm414
        %s789 = sld [smem:[#allocation2 + $0x9]]
        %s790 = sld [smem:[#allocation2 + $0x3a]]
        %v791 = vstv %s789
        %v792 = vmul.f32 %v791, %v777
        %v793 = vmul.f32 %v791, %v774
        %v794 = vstv %s790
        %v795 = vmul.f32 %v794, %v786
        %v796 = vmul.f32 %v794, %v783
        %v797 = vadd.f32 %v792, %v795
        %v798 = vadd.f32 %v793, %v796
        %v801 = vcombine.low %v797, %v798
        %v803 = vunpack.c.l.s4 1966171168
        %v804 = vunpack.c.0.s8 %v803
        %v805 = vlaneseq
        %v806 = vshrl.u32 %v805, 7
        %v807 = vsub.s32 %v804, %v806
        %v808 = vrot.slane %v801, %v807
        %v810 = vunpack.c.l.s4 1966171168
        %v811 = vunpack.c.0.s8 %v810
        %v812 = vlaneseq
        %v813 = vshrl.u32 %v812, 7
        %v814 = vsub.s32 %v811, %v813
        %v815 = vrot.slane %v808, %v814
        %v817 = vsel %vm788, %v815, 0.0
        %v818 = vadd.f32 %v767, %v817
        %819 = vrot.lane.b32.xlu0 %v253, 32
        %v820 = vpop.permute.xlu0 %819
        %822 = vrot.lane.b32.xlu0 %v244, 32
        %v823 = vpop.permute.xlu0 %822
        %vm824 = vcmask 261120
        %v825 = vsel %vm824, %v823, %v820
        %v828 = vsel %vm824, %v820, %v823
        %829 = vrot.lane.b32.xlu0 %v273, 32
        %v830 = vpop.permute.xlu0 %829
        %832 = vrot.lane.b32.xlu0 %v272, 32
        %v833 = vpop.permute.xlu0 %832
        %v834 = vsel %vm824, %v833, %v830
        %v837 = vsel %vm824, %v830, %v833
        %vm838 = vmand %vm684, %vm466
        %vm839 = vmand %vm838, %vm468
        %s840 = sld [smem:[#allocation2 + $0xa]]
        %s841 = sld [smem:[#allocation2 + $0x3b]]
        %v842 = vstv %s840
        %v843 = vmul.f32 %v842, %v828
        %v844 = vmul.f32 %v842, %v825
        %v845 = vstv %s841
        %v846 = vmul.f32 %v845, %v837
        %v847 = vmul.f32 %v845, %v834
        %v848 = vadd.f32 %v843, %v846
        %v849 = vadd.f32 %v844, %v847
        %v852 = vcombine.low %v848, %v849
        %v854 = vunpack.c.l.s4 1966171168
        %v855 = vunpack.c.0.s8 %v854
        %v856 = vlaneseq
        %v857 = vshrl.u32 %v856, 7
        %v858 = vsub.s32 %v855, %v857
        %v859 = vrot.slane %v852, %v858
        %v861 = vunpack.c.l.s4 1966171168
        %v862 = vunpack.c.0.s8 %v861
        %v863 = vlaneseq
        %v864 = vshrl.u32 %v863, 7
        %v865 = vsub.s32 %v862, %v864
        %v866 = vrot.slane %v859, %v865
        %v868 = vsel %vm839, %v866, 0.0
        %v869 = vadd.f32 %v818, %v868
        %870 = vrot.lane.b32.xlu0 %v253, 31
        %v871 = vpop.permute.xlu0 %870
        %873 = vrot.lane.b32.xlu0 %v244, 31
        %v874 = vpop.permute.xlu0 %873
        %vm875 = vcmask 252928
        %v876 = vsel %vm875, %v874, %v871
        %v879 = vsel %vm875, %v871, %v874
        %880 = vrot.lane.b32.xlu0 %v273, 31
        %v881 = vpop.permute.xlu0 %880
        %883 = vrot.lane.b32.xlu0 %v272, 31
        %v884 = vpop.permute.xlu0 %883
        %v885 = vsel %vm875, %v884, %v881
        %v888 = vsel %vm875, %v881, %v884
        %vm889 = vmand %vm684, %vm520
        %vm890 = vmand %vm889, %vm522
        %s891 = sld [smem:[#allocation2 + $0xb]]
        %s892 = sld [smem:[#allocation2 + $0x3c]]
        %v893 = vstv %s891
        %v894 = vmul.f32 %v893, %v879
        %v895 = vmul.f32 %v893, %v876
        %v896 = vstv %s892
        %v897 = vmul.f32 %v896, %v888
        %v898 = vmul.f32 %v896, %v885
        %v899 = vadd.f32 %v894, %v897
        %v900 = vadd.f32 %v895, %v898
        %v903 = vcombine.low %v899, %v900
        %v905 = vunpack.c.l.s4 1966171168
        %v906 = vunpack.c.0.s8 %v905
        %v907 = vlaneseq
        %v908 = vshrl.u32 %v907, 7
        %v909 = vsub.s32 %v906, %v908
        %v910 = vrot.slane %v903, %v909
        %v912 = vunpack.c.l.s4 1966171168
        %v913 = vunpack.c.0.s8 %v912
        %v914 = vlaneseq
        %v915 = vshrl.u32 %v914, 7
        %v916 = vsub.s32 %v913, %v915
        %v917 = vrot.slane %v910, %v916
        %v919 = vsel %vm890, %v917, 0.0
        %v920 = vadd.f32 %v869, %v919
        %921 = vrot.lane.b32.xlu0 %v253, 30
        %v922 = vpop.permute.xlu0 %921
        %924 = vrot.lane.b32.xlu0 %v244, 30
        %v925 = vpop.permute.xlu0 %924
        %vm926 = vcmask 244736
        %v927 = vsel %vm926, %v925, %v922
        %v930 = vsel %vm926, %v922, %v925
        %931 = vrot.lane.b32.xlu0 %v273, 30
        %v932 = vpop.permute.xlu0 %931
        %934 = vrot.lane.b32.xlu0 %v272, 30
        %v935 = vpop.permute.xlu0 %934
        %v936 = vsel %vm926, %v935, %v932
        %v939 = vsel %vm926, %v932, %v935
        %vm940 = vmand %vm684, %vm574
        %vm941 = vmand %vm940, %vm576
        %s942 = sld [smem:[#allocation2 + $0xc]]
        %s943 = sld [smem:[#allocation2 + $0x3d]]
        %v944 = vstv %s942
        %v945 = vmul.f32 %v944, %v930
        %v946 = vmul.f32 %v944, %v927
        %v947 = vstv %s943
        %v948 = vmul.f32 %v947, %v939
        %v949 = vmul.f32 %v947, %v936
        %v950 = vadd.f32 %v945, %v948
        %v951 = vadd.f32 %v946, %v949
        %v954 = vcombine.low %v950, %v951
        %v956 = vunpack.c.l.s4 1966171168
        %v957 = vunpack.c.0.s8 %v956
        %v958 = vlaneseq
        %v959 = vshrl.u32 %v958, 7
        %v960 = vsub.s32 %v957, %v959
        %v961 = vrot.slane %v954, %v960
        %v963 = vunpack.c.l.s4 1966171168
        %v964 = vunpack.c.0.s8 %v963
        %v965 = vlaneseq
        %v966 = vshrl.u32 %v965, 7
        %v967 = vsub.s32 %v964, %v966
        %v968 = vrot.slane %v961, %v967
        %v970 = vsel %vm941, %v968, 0.0
        %v971 = vadd.f32 %v920, %v970
        %972 = vrot.lane.b32.xlu0 %v253, 29
        %v973 = vpop.permute.xlu0 %972
        %975 = vrot.lane.b32.xlu0 %v244, 29
        %v976 = vpop.permute.xlu0 %975
        %vm977 = vcmask 236544
        %v978 = vsel %vm977, %v976, %v973
        %v981 = vsel %vm977, %v973, %v976
        %982 = vrot.lane.b32.xlu0 %v273, 29
        %v983 = vpop.permute.xlu0 %982
        %985 = vrot.lane.b32.xlu0 %v272, 29
        %v986 = vpop.permute.xlu0 %985
        %v987 = vsel %vm977, %v986, %v983
        %v990 = vsel %vm977, %v983, %v986
        %vm991 = vmand %vm684, %vm628
        %vm992 = vmand %vm991, %vm630
        %s993 = sld [smem:[#allocation2 + $0xd]]
        %s994 = sld [smem:[#allocation2 + $0x3e]]
        %v995 = vstv %s993
        %v996 = vmul.f32 %v995, %v981
        %v997 = vmul.f32 %v995, %v978
        %v998 = vstv %s994
        %v999 = vmul.f32 %v998, %v990
        %v1000 = vmul.f32 %v998, %v987
        %v1001 = vadd.f32 %v996, %v999
        %v1002 = vadd.f32 %v997, %v1000
        %v1005 = vcombine.low %v1001, %v1002
        %v1007 = vunpack.c.l.s4 1966171168
        %v1008 = vunpack.c.0.s8 %v1007
        %v1009 = vlaneseq
        %v1010 = vshrl.u32 %v1009, 7
        %v1011 = vsub.s32 %v1008, %v1010
        %v1012 = vrot.slane %v1005, %v1011
        %v1014 = vunpack.c.l.s4 1966171168
        %v1015 = vunpack.c.0.s8 %v1014
        %v1016 = vlaneseq
        %v1017 = vshrl.u32 %v1016, 7
        %v1018 = vsub.s32 %v1015, %v1017
        %v1019 = vrot.slane %v1012, %v1018
        %v1021 = vsel %vm992, %v1019, 0.0
        %v1022 = vadd.f32 %v971, %v1021
        %1023 = vrot.lane.b32.xlu0 %v253, 19
        %v1024 = vpop.permute.xlu0 %1023
        %1026 = vrot.lane.b32.xlu0 %v244, 19
        %v1027 = vpop.permute.xlu0 %1026
        %vm1028 = vcmask 154624
        %v1029 = vsel %vm1028, %v1027, %v1024
        %v1032 = vsel %vm1028, %v1024, %v1027
        %1033 = vrot.lane.b32.xlu0 %v273, 19
        %v1034 = vpop.permute.xlu0 %1033
        %1036 = vrot.lane.b32.xlu0 %v272, 19
        %v1037 = vpop.permute.xlu0 %1036
        %v1038 = vsel %vm1028, %v1037, %v1034
        %v1041 = vsel %vm1028, %v1034, %v1037
        %v1042 = vadd.f32 %v274, -1.0
        %vm1043 = vcmp.ge.f32.partialorder %v1042, 0.0
        %vm1044 = vcmp.le.f32.partialorder %v1042, 15.0
        %vm1045 = vmand %vm1043, %vm1044
        %vm1046 = vmand %vm1045, %vm304
        %vm1047 = vmand %vm1046, %vm306
        %s1048 = sld [smem:[#allocation2 + $0xe]]
        %s1049 = sld [smem:[#allocation2 + $0x3f]]
        %v1050 = vstv %s1048
        %v1051 = vmul.f32 %v1050, %v1032
        %v1052 = vmul.f32 %v1050, %v1029
        %v1053 = vstv %s1049
        %v1054 = vmul.f32 %v1053, %v1041
        %v1055 = vmul.f32 %v1053, %v1038
        %v1056 = vadd.f32 %v1051, %v1054
        %v1057 = vadd.f32 %v1052, %v1055
        %v1060 = vcombine.low %v1056, %v1057
        %v1062 = vunpack.c.l.s4 1966171168
        %v1063 = vunpack.c.0.s8 %v1062
        %v1064 = vlaneseq
        %v1065 = vshrl.u32 %v1064, 7
        %v1066 = vsub.s32 %v1063, %v1065
        %v1067 = vrot.slane %v1060, %v1066
        %v1069 = vunpack.c.l.s4 1966171168
        %v1070 = vunpack.c.0.s8 %v1069
        %v1071 = vlaneseq
        %v1072 = vshrl.u32 %v1071, 7
        %v1073 = vsub.s32 %v1070, %v1072
        %v1074 = vrot.slane %v1067, %v1073
        %v1076 = vsel %vm1047, %v1074, 0.0
        %v1077 = vadd.f32 %v1022, %v1076
        %1078 = vrot.lane.b32.xlu0 %v253, 18
        %v1079 = vpop.permute.xlu0 %1078
        %1081 = vrot.lane.b32.xlu0 %v244, 18
        %v1082 = vpop.permute.xlu0 %1081
        %vm1083 = vcmask 146432
        %v1084 = vsel %vm1083, %v1082, %v1079
        %v1087 = vsel %vm1083, %v1079, %v1082
        %1088 = vrot.lane.b32.xlu0 %v273, 18
        %v1089 = vpop.permute.xlu0 %1088
        %1091 = vrot.lane.b32.xlu0 %v272, 18
        %v1092 = vpop.permute.xlu0 %1091
        %v1093 = vsel %vm1083, %v1092, %v1089
        %v1096 = vsel %vm1083, %v1089, %v1092
        %vm1097 = vmand %vm1045, %vm358
        %vm1098 = vmand %vm1097, %vm360
        %s1099 = sld [smem:[#allocation2 + $0xf]]
        %s1100 = sld [smem:[#allocation2 + $0x40]]
        %v1101 = vstv %s1099
        %v1102 = vmul.f32 %v1101, %v1087
        %v1103 = vmul.f32 %v1101, %v1084
        %v1104 = vstv %s1100
        %v1105 = vmul.f32 %v1104, %v1096
        %v1106 = vmul.f32 %v1104, %v1093
        %v1107 = vadd.f32 %v1102, %v1105
        %v1108 = vadd.f32 %v1103, %v1106
        %v1111 = vcombine.low %v1107, %v1108
        %v1113 = vunpack.c.l.s4 1966171168
        %v1114 = vunpack.c.0.s8 %v1113
        %v1115 = vlaneseq
        %v1116 = vshrl.u32 %v1115, 7
        %v1117 = vsub.s32 %v1114, %v1116
        %v1118 = vrot.slane %v1111, %v1117
        %v1120 = vunpack.c.l.s4 1966171168
        %v1121 = vunpack.c.0.s8 %v1120
        %v1122 = vlaneseq
        %v1123 = vshrl.u32 %v1122, 7
        %v1124 = vsub.s32 %v1121, %v1123
        %v1125 = vrot.slane %v1118, %v1124
        %v1127 = vsel %vm1098, %v1125, 0.0
        %v1128 = vadd.f32 %v1077, %v1127
        %1129 = vrot.lane.b32.xlu0 %v253, 17
        %v1130 = vpop.permute.xlu0 %1129
        %1132 = vrot.lane.b32.xlu0 %v244, 17
        %v1133 = vpop.permute.xlu0 %1132
        %vm1134 = vcmask 138240
        %v1135 = vsel %vm1134, %v1133, %v1130
        %v1138 = vsel %vm1134, %v1130, %v1133
        %1139 = vrot.lane.b32.xlu0 %v273, 17
        %v1140 = vpop.permute.xlu0 %1139
        %1142 = vrot.lane.b32.xlu0 %v272, 17
        %v1143 = vpop.permute.xlu0 %1142
        %v1144 = vsel %vm1134, %v1143, %v1140
        %v1147 = vsel %vm1134, %v1140, %v1143
        %vm1148 = vmand %vm1045, %vm412
        %vm1149 = vmand %vm1148, %vm414
        %s1150 = sld [smem:[#allocation2 + $0x10]]
        %s1151 = sld [smem:[#allocation2 + $0x41]]
        %v1152 = vstv %s1150
        %v1153 = vmul.f32 %v1152, %v1138
        %v1154 = vmul.f32 %v1152, %v1135
        %v1155 = vstv %s1151
        %v1156 = vmul.f32 %v1155, %v1147
        %v1157 = vmul.f32 %v1155, %v1144
        %v1158 = vadd.f32 %v1153, %v1156
        %v1159 = vadd.f32 %v1154, %v1157
        %v1162 = vcombine.low %v1158, %v1159
        %v1164 = vunpack.c.l.s4 1966171168
        %v1165 = vunpack.c.0.s8 %v1164
        %v1166 = vlaneseq
        %v1167 = vshrl.u32 %v1166, 7
        %v1168 = vsub.s32 %v1165, %v1167
        %v1169 = vrot.slane %v1162, %v1168
        %v1171 = vunpack.c.l.s4 1966171168
        %v1172 = vunpack.c.0.s8 %v1171
        %v1173 = vlaneseq
        %v1174 = vshrl.u32 %v1173, 7
        %v1175 = vsub.s32 %v1172, %v1174
        %v1176 = vrot.slane %v1169, %v1175
        %v1178 = vsel %vm1149, %v1176, 0.0
        %v1179 = vadd.f32 %v1128, %v1178
        %1180 = vrot.lane.b32.xlu0 %v253, 16
        %v1181 = vpop.permute.xlu0 %1180
        %1183 = vrot.lane.b32.xlu0 %v244, 16
        %v1184 = vpop.permute.xlu0 %1183
        %vm1185 = vcmask 130048
        %v1186 = vsel %vm1185, %v1184, %v1181
        %v1189 = vsel %vm1185, %v1181, %v1184
        %1190 = vrot.lane.b32.xlu0 %v273, 16
        %v1191 = vpop.permute.xlu0 %1190
        %1193 = vrot.lane.b32.xlu0 %v272, 16
        %v1194 = vpop.permute.xlu0 %1193
        %v1195 = vsel %vm1185, %v1194, %v1191
        %v1198 = vsel %vm1185, %v1191, %v1194
        %vm1199 = vmand %vm1045, %vm466
        %vm1200 = vmand %vm1199, %vm468
        %s1201 = sld [smem:[#allocation2 + $0x11]]
        %s1202 = sld [smem:[#allocation2 + $0x42]]
        %v1203 = vstv %s1201
        %v1204 = vmul.f32 %v1203, %v1189
        %v1205 = vmul.f32 %v1203, %v1186
        %v1206 = vstv %s1202
        %v1207 = vmul.f32 %v1206, %v1198
        %v1208 = vmul.f32 %v1206, %v1195
        %v1209 = vadd.f32 %v1204, %v1207
        %v1210 = vadd.f32 %v1205, %v1208
        %v1213 = vcombine.low %v1209, %v1210
        %v1215 = vunpack.c.l.s4 1966171168
        %v1216 = vunpack.c.0.s8 %v1215
        %v1217 = vlaneseq
        %v1218 = vshrl.u32 %v1217, 7
        %v1219 = vsub.s32 %v1216, %v1218
        %v1220 = vrot.slane %v1213, %v1219
        %v1222 = vunpack.c.l.s4 1966171168
        %v1223 = vunpack.c.0.s8 %v1222
        %v1224 = vlaneseq
        %v1225 = vshrl.u32 %v1224, 7
        %v1226 = vsub.s32 %v1223, %v1225
        %v1227 = vrot.slane %v1220, %v1226
        %v1229 = vsel %vm1200, %v1227, 0.0
        %v1230 = vadd.f32 %v1179, %v1229
        %1231 = vrot.lane.b32.xlu0 %v253, 15
        %v1232 = vpop.permute.xlu0 %1231
        %1234 = vrot.lane.b32.xlu0 %v244, 15
        %v1235 = vpop.permute.xlu0 %1234
        %vm1236 = vcmask 121856
        %v1237 = vsel %vm1236, %v1235, %v1232
        %v1240 = vsel %vm1236, %v1232, %v1235
        %1241 = vrot.lane.b32.xlu0 %v273, 15
        %v1242 = vpop.permute.xlu0 %1241
        %1244 = vrot.lane.b32.xlu0 %v272, 15
        %v1245 = vpop.permute.xlu0 %1244
        %v1246 = vsel %vm1236, %v1245, %v1242
        %v1249 = vsel %vm1236, %v1242, %v1245
        %vm1250 = vmand %vm1045, %vm520
        %vm1251 = vmand %vm1250, %vm522
        %s1252 = sld [smem:[#allocation2 + $0x12]]
        %s1253 = sld [smem:[#allocation2 + $0x43]]
        %v1254 = vstv %s1252
        %v1255 = vmul.f32 %v1254, %v1240
        %v1256 = vmul.f32 %v1254, %v1237
        %v1257 = vstv %s1253
        %v1258 = vmul.f32 %v1257, %v1249
        %v1259 = vmul.f32 %v1257, %v1246
        %v1260 = vadd.f32 %v1255, %v1258
        %v1261 = vadd.f32 %v1256, %v1259
        %v1264 = vcombine.low %v1260, %v1261
        %v1266 = vunpack.c.l.s4 1966171168
        %v1267 = vunpack.c.0.s8 %v1266
        %v1268 = vlaneseq
        %v1269 = vshrl.u32 %v1268, 7
        %v1270 = vsub.s32 %v1267, %v1269
        %v1271 = vrot.slane %v1264, %v1270
        %v1273 = vunpack.c.l.s4 1966171168
        %v1274 = vunpack.c.0.s8 %v1273
        %v1275 = vlaneseq
        %v1276 = vshrl.u32 %v1275, 7
        %v1277 = vsub.s32 %v1274, %v1276
        %v1278 = vrot.slane %v1271, %v1277
        %v1280 = vsel %vm1251, %v1278, 0.0
        %v1281 = vadd.f32 %v1230, %v1280
        %1282 = vrot.lane.b32.xlu0 %v253, 14
        %v1283 = vpop.permute.xlu0 %1282
        %1285 = vrot.lane.b32.xlu0 %v244, 14
        %v1286 = vpop.permute.xlu0 %1285
        %vm1287 = vcmask 113664
        %v1288 = vsel %vm1287, %v1286, %v1283
        %v1291 = vsel %vm1287, %v1283, %v1286
        %1292 = vrot.lane.b32.xlu0 %v273, 14
        %v1293 = vpop.permute.xlu0 %1292
        %1295 = vrot.lane.b32.xlu0 %v272, 14
        %v1296 = vpop.permute.xlu0 %1295
        %v1297 = vsel %vm1287, %v1296, %v1293
        %v1300 = vsel %vm1287, %v1293, %v1296
        %vm1301 = vmand %vm1045, %vm574
        %vm1302 = vmand %vm1301, %vm576
        %s1303 = sld [smem:[#allocation2 + $0x13]]
        %s1304 = sld [smem:[#allocation2 + $0x44]]
        %v1305 = vstv %s1303
        %v1306 = vmul.f32 %v1305, %v1291
        %v1307 = vmul.f32 %v1305, %v1288
        %v1308 = vstv %s1304
        %v1309 = vmul.f32 %v1308, %v1300
        %v1310 = vmul.f32 %v1308, %v1297
        %v1311 = vadd.f32 %v1306, %v1309
        %v1312 = vadd.f32 %v1307, %v1310
        %v1315 = vcombine.low %v1311, %v1312
        %v1317 = vunpack.c.l.s4 1966171168
        %v1318 = vunpack.c.0.s8 %v1317
        %v1319 = vlaneseq
        %v1320 = vshrl.u32 %v1319, 7
        %v1321 = vsub.s32 %v1318, %v1320
        %v1322 = vrot.slane %v1315, %v1321
        %v1324 = vunpack.c.l.s4 1966171168
        %v1325 = vunpack.c.0.s8 %v1324
        %v1326 = vlaneseq
        %v1327 = vshrl.u32 %v1326, 7
        %v1328 = vsub.s32 %v1325, %v1327
        %v1329 = vrot.slane %v1322, %v1328
        %v1331 = vsel %vm1302, %v1329, 0.0
        %v1332 = vadd.f32 %v1281, %v1331
        %1333 = vrot.lane.b32.xlu0 %v253, 13
        %v1334 = vpop.permute.xlu0 %1333
        %1336 = vrot.lane.b32.xlu0 %v244, 13
        %v1337 = vpop.permute.xlu0 %1336
        %vm1338 = vcmask 105472
        %v1339 = vsel %vm1338, %v1337, %v1334
        %v1342 = vsel %vm1338, %v1334, %v1337
        %1343 = vrot.lane.b32.xlu0 %v273, 13
        %v1344 = vpop.permute.xlu0 %1343
        %1346 = vrot.lane.b32.xlu0 %v272, 13
        %v1347 = vpop.permute.xlu0 %1346
        %v1348 = vsel %vm1338, %v1347, %v1344
        %v1351 = vsel %vm1338, %v1344, %v1347
        %vm1352 = vmand %vm1045, %vm628
        %vm1353 = vmand %vm1352, %vm630
        %s1354 = sld [smem:[#allocation2 + $0x14]]
        %s1355 = sld [smem:[#allocation2 + $0x45]]
        %v1356 = vstv %s1354
        %v1357 = vmul.f32 %v1356, %v1342
        %v1358 = vmul.f32 %v1356, %v1339
        %v1359 = vstv %s1355
        %v1360 = vmul.f32 %v1359, %v1351
        %v1361 = vmul.f32 %v1359, %v1348
        %v1362 = vadd.f32 %v1357, %v1360
        %v1363 = vadd.f32 %v1358, %v1361
        %v1366 = vcombine.low %v1362, %v1363
        %v1368 = vunpack.c.l.s4 1966171168
        %v1369 = vunpack.c.0.s8 %v1368
        %v1370 = vlaneseq
        %v1371 = vshrl.u32 %v1370, 7
        %v1372 = vsub.s32 %v1369, %v1371
        %v1373 = vrot.slane %v1366, %v1372
        %v1375 = vunpack.c.l.s4 1966171168
        %v1376 = vunpack.c.0.s8 %v1375
        %v1377 = vlaneseq
        %v1378 = vshrl.u32 %v1377, 7
        %v1379 = vsub.s32 %v1376, %v1378
        %v1380 = vrot.slane %v1373, %v1379
        %v1382 = vsel %vm1353, %v1380, 0.0
        %v1383 = vadd.f32 %v1332, %v1382
        %1384 = vrot.lane.b32.xlu0 %v253, 3
        %v1385 = vpop.permute.xlu0 %1384
        %1387 = vrot.lane.b32.xlu0 %v244, 3
        %v1388 = vpop.permute.xlu0 %1387
        %vm1389 = vcmask 23552
        %v1390 = vsel %vm1389, %v1388, %v1385
        %v1393 = vsel %vm1389, %v1385, %v1388
        %1394 = vrot.lane.b32.xlu0 %v273, 3
        %v1395 = vpop.permute.xlu0 %1394
        %1397 = vrot.lane.b32.xlu0 %v272, 3
        %v1398 = vpop.permute.xlu0 %1397
        %v1399 = vsel %vm1389, %v1398, %v1395
        %v1402 = vsel %vm1389, %v1395, %v1398
        %v1403 = vadd.f32 %v274, 0.0
        %vm1404 = vcmp.ge.f32.partialorder %v1403, 0.0
        %vm1405 = vcmp.le.f32.partialorder %v1403, 15.0
        %vm1406 = vmand %vm1404, %vm1405
        %vm1407 = vmand %vm1406, %vm304
        %vm1408 = vmand %vm1407, %vm306
        %s1409 = sld [smem:[#allocation2 + $0x15]]
        %s1410 = sld [smem:[#allocation2 + $0x46]]
        %v1411 = vstv %s1409
        %v1412 = vmul.f32 %v1411, %v1393
        %v1413 = vmul.f32 %v1411, %v1390
        %v1414 = vstv %s1410
        %v1415 = vmul.f32 %v1414, %v1402
        %v1416 = vmul.f32 %v1414, %v1399
        %v1417 = vadd.f32 %v1412, %v1415
        %v1418 = vadd.f32 %v1413, %v1416
        %v1421 = vcombine.low %v1417, %v1418
        %v1423 = vunpack.c.l.s4 1966171168
        %v1424 = vunpack.c.0.s8 %v1423
        %v1425 = vlaneseq
        %v1426 = vshrl.u32 %v1425, 7
        %v1427 = vsub.s32 %v1424, %v1426
        %v1428 = vrot.slane %v1421, %v1427
        %v1430 = vunpack.c.l.s4 1966171168
        %v1431 = vunpack.c.0.s8 %v1430
        %v1432 = vlaneseq
        %v1433 = vshrl.u32 %v1432, 7
        %v1434 = vsub.s32 %v1431, %v1433
        %v1435 = vrot.slane %v1428, %v1434
        %v1437 = vsel %vm1408, %v1435, 0.0
        %v1438 = vadd.f32 %v1383, %v1437
        %1439 = vrot.lane.b32.xlu0 %v253, 2
        %v1440 = vpop.permute.xlu0 %1439
        %1442 = vrot.lane.b32.xlu0 %v244, 2
        %v1443 = vpop.permute.xlu0 %1442
        %vm1444 = vcmask 15360
        %v1445 = vsel %vm1444, %v1443, %v1440
        %v1448 = vsel %vm1444, %v1440, %v1443
        %1449 = vrot.lane.b32.xlu0 %v273, 2
        %v1450 = vpop.permute.xlu0 %1449
        %1452 = vrot.lane.b32.xlu0 %v272, 2
        %v1453 = vpop.permute.xlu0 %1452
        %v1454 = vsel %vm1444, %v1453, %v1450
        %v1457 = vsel %vm1444, %v1450, %v1453
        %vm1458 = vmand %vm1406, %vm358
        %vm1459 = vmand %vm1458, %vm360
        %s1460 = sld [smem:[#allocation2 + $0x16]]
        %s1461 = sld [smem:[#allocation2 + $0x47]]
        %v1462 = vstv %s1460
        %v1463 = vmul.f32 %v1462, %v1448
        %v1464 = vmul.f32 %v1462, %v1445
        %v1465 = vstv %s1461
        %v1466 = vmul.f32 %v1465, %v1457
        %v1467 = vmul.f32 %v1465, %v1454
        %v1468 = vadd.f32 %v1463, %v1466
        %v1469 = vadd.f32 %v1464, %v1467
        %v1472 = vcombine.low %v1468, %v1469
        %v1474 = vunpack.c.l.s4 1966171168
        %v1475 = vunpack.c.0.s8 %v1474
        %v1476 = vlaneseq
        %v1477 = vshrl.u32 %v1476, 7
        %v1478 = vsub.s32 %v1475, %v1477
        %v1479 = vrot.slane %v1472, %v1478
        %v1481 = vunpack.c.l.s4 1966171168
        %v1482 = vunpack.c.0.s8 %v1481
        %v1483 = vlaneseq
        %v1484 = vshrl.u32 %v1483, 7
        %v1485 = vsub.s32 %v1482, %v1484
        %v1486 = vrot.slane %v1479, %v1485
        %v1488 = vsel %vm1459, %v1486, 0.0
        %v1489 = vadd.f32 %v1438, %v1488
        %1490 = vrot.lane.b32.xlu0 %v253, 1
        %v1491 = vpop.permute.xlu0 %1490
        %1493 = vrot.lane.b32.xlu0 %v244, 1
        %v1494 = vpop.permute.xlu0 %1493
        %vm1495 = vcmask 7168
        %v1496 = vsel %vm1495, %v1494, %v1491
        %v1499 = vsel %vm1495, %v1491, %v1494
        %1500 = vrot.lane.b32.xlu0 %v273, 1
        %v1501 = vpop.permute.xlu0 %1500
        %1503 = vrot.lane.b32.xlu0 %v272, 1
        %v1504 = vpop.permute.xlu0 %1503
        %v1505 = vsel %vm1495, %v1504, %v1501
        %v1508 = vsel %vm1495, %v1501, %v1504
        %vm1509 = vmand %vm1406, %vm412
        %vm1510 = vmand %vm1509, %vm414
        %s1511 = sld [smem:[#allocation2 + $0x17]]
        %s1512 = sld [smem:[#allocation2 + $0x48]]
        %v1513 = vstv %s1511
        %v1514 = vmul.f32 %v1513, %v1499
        %v1515 = vmul.f32 %v1513, %v1496
        %v1516 = vstv %s1512
        %v1517 = vmul.f32 %v1516, %v1508
        %v1518 = vmul.f32 %v1516, %v1505
        %v1519 = vadd.f32 %v1514, %v1517
        %v1520 = vadd.f32 %v1515, %v1518
        %v1523 = vcombine.low %v1519, %v1520
        %v1525 = vunpack.c.l.s4 1966171168
        %v1526 = vunpack.c.0.s8 %v1525
        %v1527 = vlaneseq
        %v1528 = vshrl.u32 %v1527, 7
        %v1529 = vsub.s32 %v1526, %v1528
        %v1530 = vrot.slane %v1523, %v1529
        %v1532 = vunpack.c.l.s4 1966171168
        %v1533 = vunpack.c.0.s8 %v1532
        %v1534 = vlaneseq
        %v1535 = vshrl.u32 %v1534, 7
        %v1536 = vsub.s32 %v1533, %v1535
        %v1537 = vrot.slane %v1530, %v1536
        %v1539 = vsel %vm1510, %v1537, 0.0
        %v1540 = vadd.f32 %v1489, %v1539
        %vm1541 = vmand %vm1406, %vm466
        %vm1542 = vmand %vm1541, %vm468
        %s1543 = sld [smem:[#allocation2 + $0x18]]
        %s1544 = sld [smem:[#allocation2 + $0x49]]
        %v1545 = vstv %s1543
        %v1546 = vmul.f32 %v1545, %v244
        %v1547 = vmul.f32 %v1545, %v253
        %v1548 = vstv %s1544
        %v1549 = vmul.f32 %v1548, %v272
        %v1550 = vmul.f32 %v1548, %v273
        %v1551 = vadd.f32 %v1546, %v1549
        %v1552 = vadd.f32 %v1547, %v1550
        %v1555 = vcombine.low %v1551, %v1552
        %v1557 = vunpack.c.l.s4 1966171168
        %v1558 = vunpack.c.0.s8 %v1557
        %v1559 = vlaneseq
        %v1560 = vshrl.u32 %v1559, 7
        %v1561 = vsub.s32 %v1558, %v1560
        %v1562 = vrot.slane %v1555, %v1561
        %v1564 = vunpack.c.l.s4 1966171168
        %v1565 = vunpack.c.0.s8 %v1564
        %v1566 = vlaneseq
        %v1567 = vshrl.u32 %v1566, 7
        %v1568 = vsub.s32 %v1565, %v1567
        %v1569 = vrot.slane %v1562, %v1568
        %v1571 = vsel %vm1542, %v1569, 0.0
        %v1572 = vadd.f32 %v1540, %v1571
        %1573 = vrot.lane.b32.xlu0 %v244, 127
        %v1574 = vpop.permute.xlu0 %1573
        %1575 = vrot.lane.b32.xlu0 %v253, 127
        %v1576 = vpop.permute.xlu0 %1575
        %vm1577 = vcmask 1039360
        %v1578 = vsel %vm1577, %v1574, %v1576
        %v1582 = vsel %vm1577, %v1576, %v1574
        %1583 = vrot.lane.b32.xlu0 %v272, 127
        %v1584 = vpop.permute.xlu0 %1583
        %1585 = vrot.lane.b32.xlu0 %v273, 127
        %v1586 = vpop.permute.xlu0 %1585
        %v1587 = vsel %vm1577, %v1584, %v1586
        %v1591 = vsel %vm1577, %v1586, %v1584
        %vm1592 = vmand %vm1406, %vm520
        %vm1593 = vmand %vm1592, %vm522
        %s1594 = sld [smem:[#allocation2 + $0x19]]
        %s1595 = sld [smem:[#allocation2 + $0x4a]]
        %v1596 = vstv %s1594
        %v1597 = vmul.f32 %v1596, %v1578
        %v1598 = vmul.f32 %v1596, %v1582
        %v1599 = vstv %s1595
        %v1600 = vmul.f32 %v1599, %v1587
        %v1601 = vmul.f32 %v1599, %v1591
        %v1602 = vadd.f32 %v1597, %v1600
        %v1603 = vadd.f32 %v1598, %v1601
        %v1606 = vcombine.low %v1602, %v1603
        %v1608 = vunpack.c.l.s4 1966171168
        %v1609 = vunpack.c.0.s8 %v1608
        %v1610 = vlaneseq
        %v1611 = vshrl.u32 %v1610, 7
        %v1612 = vsub.s32 %v1609, %v1611
        %v1613 = vrot.slane %v1606, %v1612
        %v1615 = vunpack.c.l.s4 1966171168
        %v1616 = vunpack.c.0.s8 %v1615
        %v1617 = vlaneseq
        %v1618 = vshrl.u32 %v1617, 7
        %v1619 = vsub.s32 %v1616, %v1618
        %v1620 = vrot.slane %v1613, %v1619
        %v1622 = vsel %vm1593, %v1620, 0.0
        %v1623 = vadd.f32 %v1572, %v1622
        %1624 = vrot.lane.b32.xlu0 %v244, 126
        %v1625 = vpop.permute.xlu0 %1624
        %1626 = vrot.lane.b32.xlu0 %v253, 126
        %v1627 = vpop.permute.xlu0 %1626
        %vm1628 = vcmask 1031168
        %v1629 = vsel %vm1628, %v1625, %v1627
        %v1633 = vsel %vm1628, %v1627, %v1625
        %1634 = vrot.lane.b32.xlu0 %v272, 126
        %v1635 = vpop.permute.xlu0 %1634
        %1636 = vrot.lane.b32.xlu0 %v273, 126
        %v1637 = vpop.permute.xlu0 %1636
        %v1638 = vsel %vm1628, %v1635, %v1637
        %v1642 = vsel %vm1628, %v1637, %v1635
        %vm1643 = vmand %vm1406, %vm574
        %vm1644 = vmand %vm1643, %vm576
        %s1645 = sld [smem:[#allocation2 + $0x1a]]
        %s1646 = sld [smem:[#allocation2 + $0x4b]]
        %v1647 = vstv %s1645
        %v1648 = vmul.f32 %v1647, %v1629
        %v1649 = vmul.f32 %v1647, %v1633
        %v1650 = vstv %s1646
        %v1651 = vmul.f32 %v1650, %v1638
        %v1652 = vmul.f32 %v1650, %v1642
        %v1653 = vadd.f32 %v1648, %v1651
        %v1654 = vadd.f32 %v1649, %v1652
        %v1657 = vcombine.low %v1653, %v1654
        %v1659 = vunpack.c.l.s4 1966171168
        %v1660 = vunpack.c.0.s8 %v1659
        %v1661 = vlaneseq
        %v1662 = vshrl.u32 %v1661, 7
        %v1663 = vsub.s32 %v1660, %v1662
        %v1664 = vrot.slane %v1657, %v1663
        %v1666 = vunpack.c.l.s4 1966171168
        %v1667 = vunpack.c.0.s8 %v1666
        %v1668 = vlaneseq
        %v1669 = vshrl.u32 %v1668, 7
        %v1670 = vsub.s32 %v1667, %v1669
        %v1671 = vrot.slane %v1664, %v1670
        %v1673 = vsel %vm1644, %v1671, 0.0
        %v1674 = vadd.f32 %v1623, %v1673
        %1675 = vrot.lane.b32.xlu0 %v244, 125
        %v1676 = vpop.permute.xlu0 %1675
        %1677 = vrot.lane.b32.xlu0 %v253, 125
        %v1678 = vpop.permute.xlu0 %1677
        %vm1679 = vcmask 1022976
        %v1680 = vsel %vm1679, %v1676, %v1678
        %v1684 = vsel %vm1679, %v1678, %v1676
        %1685 = vrot.lane.b32.xlu0 %v272, 125
        %v1686 = vpop.permute.xlu0 %1685
        %1687 = vrot.lane.b32.xlu0 %v273, 125
        %v1688 = vpop.permute.xlu0 %1687
        %v1689 = vsel %vm1679, %v1686, %v1688
        %v1693 = vsel %vm1679, %v1688, %v1686
        %vm1694 = vmand %vm1406, %vm628
        %vm1695 = vmand %vm1694, %vm630
        %s1696 = sld [smem:[#allocation2 + $0x1b]]
        %s1697 = sld [smem:[#allocation2 + $0x4c]]
        %v1698 = vstv %s1696
        %v1699 = vmul.f32 %v1698, %v1680
        %v1700 = vmul.f32 %v1698, %v1684
        %v1701 = vstv %s1697
        %v1702 = vmul.f32 %v1701, %v1689
        %v1703 = vmul.f32 %v1701, %v1693
        %v1704 = vadd.f32 %v1699, %v1702
        %v1705 = vadd.f32 %v1700, %v1703
        %v1708 = vcombine.low %v1704, %v1705
        %v1710 = vunpack.c.l.s4 1966171168
        %v1711 = vunpack.c.0.s8 %v1710
        %v1712 = vlaneseq
        %v1713 = vshrl.u32 %v1712, 7
        %v1714 = vsub.s32 %v1711, %v1713
        %v1715 = vrot.slane %v1708, %v1714
        %v1717 = vunpack.c.l.s4 1966171168
        %v1718 = vunpack.c.0.s8 %v1717
        %v1719 = vlaneseq
        %v1720 = vshrl.u32 %v1719, 7
        %v1721 = vsub.s32 %v1718, %v1720
        %v1722 = vrot.slane %v1715, %v1721
        %v1724 = vsel %vm1695, %v1722, 0.0
        %v1725 = vadd.f32 %v1674, %v1724
        %1726 = vrot.lane.b32.xlu0 %v244, 115
        %v1727 = vpop.permute.xlu0 %1726
        %1728 = vrot.lane.b32.xlu0 %v253, 115
        %v1729 = vpop.permute.xlu0 %1728
        %vm1730 = vcmask 941056
        %v1731 = vsel %vm1730, %v1727, %v1729
        %v1735 = vsel %vm1730, %v1729, %v1727
        %1736 = vrot.lane.b32.xlu0 %v272, 115
        %v1737 = vpop.permute.xlu0 %1736
        %1738 = vrot.lane.b32.xlu0 %v273, 115
        %v1739 = vpop.permute.xlu0 %1738
        %v1740 = vsel %vm1730, %v1737, %v1739
        %v1744 = vsel %vm1730, %v1739, %v1737
        %v1745 = vadd.f32 %v274, 1.0
        %vm1746 = vcmp.ge.f32.partialorder %v1745, 0.0
        %vm1747 = vcmp.le.f32.partialorder %v1745, 15.0
        %vm1748 = vmand %vm1746, %vm1747
        %vm1749 = vmand %vm1748, %vm304
        %vm1750 = vmand %vm1749, %vm306
        %s1751 = sld [smem:[#allocation2 + $0x1c]]
        %s1752 = sld [smem:[#allocation2 + $0x4d]]
        %v1753 = vstv %s1751
        %v1754 = vmul.f32 %v1753, %v1731
        %v1755 = vmul.f32 %v1753, %v1735
        %v1756 = vstv %s1752
        %v1757 = vmul.f32 %v1756, %v1740
        %v1758 = vmul.f32 %v1756, %v1744
        %v1759 = vadd.f32 %v1754, %v1757
        %v1760 = vadd.f32 %v1755, %v1758
        %v1763 = vcombine.low %v1759, %v1760
        %v1765 = vunpack.c.l.s4 1966171168
        %v1766 = vunpack.c.0.s8 %v1765
        %v1767 = vlaneseq
        %v1768 = vshrl.u32 %v1767, 7
        %v1769 = vsub.s32 %v1766, %v1768
        %v1770 = vrot.slane %v1763, %v1769
        %v1772 = vunpack.c.l.s4 1966171168
        %v1773 = vunpack.c.0.s8 %v1772
        %v1774 = vlaneseq
        %v1775 = vshrl.u32 %v1774, 7
        %v1776 = vsub.s32 %v1773, %v1775
        %v1777 = vrot.slane %v1770, %v1776
        %v1779 = vsel %vm1750, %v1777, 0.0
        %v1780 = vadd.f32 %v1725, %v1779
        %1781 = vrot.lane.b32.xlu0 %v244, 114
        %v1782 = vpop.permute.xlu0 %1781
        %1783 = vrot.lane.b32.xlu0 %v253, 114
        %v1784 = vpop.permute.xlu0 %1783
        %vm1785 = vcmask 932864
        %v1786 = vsel %vm1785, %v1782, %v1784
        %v1790 = vsel %vm1785, %v1784, %v1782
        %1791 = vrot.lane.b32.xlu0 %v272, 114
        %v1792 = vpop.permute.xlu0 %1791
        %1793 = vrot.lane.b32.xlu0 %v273, 114
        %v1794 = vpop.permute.xlu0 %1793
        %v1795 = vsel %vm1785, %v1792, %v1794
        %v1799 = vsel %vm1785, %v1794, %v1792
        %vm1800 = vmand %vm1748, %vm358
        %vm1801 = vmand %vm1800, %vm360
        %s1802 = sld [smem:[#allocation2 + $0x1d]]
        %s1803 = sld [smem:[#allocation2 + $0x4e]]
        %v1804 = vstv %s1802
        %v1805 = vmul.f32 %v1804, %v1786
        %v1806 = vmul.f32 %v1804, %v1790
        %v1807 = vstv %s1803
        %v1808 = vmul.f32 %v1807, %v1795
        %v1809 = vmul.f32 %v1807, %v1799
        %v1810 = vadd.f32 %v1805, %v1808
        %v1811 = vadd.f32 %v1806, %v1809
        %v1814 = vcombine.low %v1810, %v1811
        %v1816 = vunpack.c.l.s4 1966171168
        %v1817 = vunpack.c.0.s8 %v1816
        %v1818 = vlaneseq
        %v1819 = vshrl.u32 %v1818, 7
        %v1820 = vsub.s32 %v1817, %v1819
        %v1821 = vrot.slane %v1814, %v1820
        %v1823 = vunpack.c.l.s4 1966171168
        %v1824 = vunpack.c.0.s8 %v1823
        %v1825 = vlaneseq
        %v1826 = vshrl.u32 %v1825, 7
        %v1827 = vsub.s32 %v1824, %v1826
        %v1828 = vrot.slane %v1821, %v1827
        %v1830 = vsel %vm1801, %v1828, 0.0
        %v1831 = vadd.f32 %v1780, %v1830
        %1832 = vrot.lane.b32.xlu0 %v244, 113
        %v1833 = vpop.permute.xlu0 %1832
        %1834 = vrot.lane.b32.xlu0 %v253, 113
        %v1835 = vpop.permute.xlu0 %1834
        %vm1836 = vcmask 924672
        %v1837 = vsel %vm1836, %v1833, %v1835
        %v1841 = vsel %vm1836, %v1835, %v1833
        %1842 = vrot.lane.b32.xlu0 %v272, 113
        %v1843 = vpop.permute.xlu0 %1842
        %1844 = vrot.lane.b32.xlu0 %v273, 113
        %v1845 = vpop.permute.xlu0 %1844
        %v1846 = vsel %vm1836, %v1843, %v1845
        %v1850 = vsel %vm1836, %v1845, %v1843
        %vm1851 = vmand %vm1748, %vm412
        %vm1852 = vmand %vm1851, %vm414
        %s1853 = sld [smem:[#allocation2 + $0x1e]]
        %s1854 = sld [smem:[#allocation2 + $0x4f]]
        %v1855 = vstv %s1853
        %v1856 = vmul.f32 %v1855, %v1837
        %v1857 = vmul.f32 %v1855, %v1841
        %v1858 = vstv %s1854
        %v1859 = vmul.f32 %v1858, %v1846
        %v1860 = vmul.f32 %v1858, %v1850
        %v1861 = vadd.f32 %v1856, %v1859
        %v1862 = vadd.f32 %v1857, %v1860
        %v1865 = vcombine.low %v1861, %v1862
        %v1867 = vunpack.c.l.s4 1966171168
        %v1868 = vunpack.c.0.s8 %v1867
        %v1869 = vlaneseq
        %v1870 = vshrl.u32 %v1869, 7
        %v1871 = vsub.s32 %v1868, %v1870
        %v1872 = vrot.slane %v1865, %v1871
        %v1874 = vunpack.c.l.s4 1966171168
        %v1875 = vunpack.c.0.s8 %v1874
        %v1876 = vlaneseq
        %v1877 = vshrl.u32 %v1876, 7
        %v1878 = vsub.s32 %v1875, %v1877
        %v1879 = vrot.slane %v1872, %v1878
        %v1881 = vsel %vm1852, %v1879, 0.0
        %v1882 = vadd.f32 %v1831, %v1881
        %1883 = vrot.lane.b32.xlu0 %v244, 112
        %v1884 = vpop.permute.xlu0 %1883
        %1885 = vrot.lane.b32.xlu0 %v253, 112
        %v1886 = vpop.permute.xlu0 %1885
        %vm1887 = vcmask 916480
        %v1888 = vsel %vm1887, %v1884, %v1886
        %v1892 = vsel %vm1887, %v1886, %v1884
        %1893 = vrot.lane.b32.xlu0 %v272, 112
        %v1894 = vpop.permute.xlu0 %1893
        %1895 = vrot.lane.b32.xlu0 %v273, 112
        %v1896 = vpop.permute.xlu0 %1895
        %v1897 = vsel %vm1887, %v1894, %v1896
        %v1901 = vsel %vm1887, %v1896, %v1894
        %vm1902 = vmand %vm1748, %vm466
        %vm1903 = vmand %vm1902, %vm468
        %s1904 = sld [smem:[#allocation2 + $0x1f]]
        %s1905 = sld [smem:[#allocation2 + $0x50]]
        %v1906 = vstv %s1904
        %v1907 = vmul.f32 %v1906, %v1888
        %v1908 = vmul.f32 %v1906, %v1892
        %v1909 = vstv %s1905
        %v1910 = vmul.f32 %v1909, %v1897
        %v1911 = vmul.f32 %v1909, %v1901
        %v1912 = vadd.f32 %v1907, %v1910
        %v1913 = vadd.f32 %v1908, %v1911
        %v1916 = vcombine.low %v1912, %v1913
        %v1918 = vunpack.c.l.s4 1966171168
        %v1919 = vunpack.c.0.s8 %v1918
        %v1920 = vlaneseq
        %v1921 = vshrl.u32 %v1920, 7
        %v1922 = vsub.s32 %v1919, %v1921
        %v1923 = vrot.slane %v1916, %v1922
        %v1925 = vunpack.c.l.s4 1966171168
        %v1926 = vunpack.c.0.s8 %v1925
        %v1927 = vlaneseq
        %v1928 = vshrl.u32 %v1927, 7
        %v1929 = vsub.s32 %v1926, %v1928
        %v1930 = vrot.slane %v1923, %v1929
        %v1932 = vsel %vm1903, %v1930, 0.0
        %v1933 = vadd.f32 %v1882, %v1932
        %1934 = vrot.lane.b32.xlu0 %v244, 111
        %v1935 = vpop.permute.xlu0 %1934
        %1936 = vrot.lane.b32.xlu0 %v253, 111
        %v1937 = vpop.permute.xlu0 %1936
        %vm1938 = vcmask 908288
        %v1939 = vsel %vm1938, %v1935, %v1937
        %v1943 = vsel %vm1938, %v1937, %v1935
        %1944 = vrot.lane.b32.xlu0 %v272, 111
        %v1945 = vpop.permute.xlu0 %1944
        %1946 = vrot.lane.b32.xlu0 %v273, 111
        %v1947 = vpop.permute.xlu0 %1946
        %v1948 = vsel %vm1938, %v1945, %v1947
        %v1952 = vsel %vm1938, %v1947, %v1945
        %vm1953 = vmand %vm1748, %vm520
        %vm1954 = vmand %vm1953, %vm522
        %s1955 = sld [smem:[#allocation2 + $0x20]]
        %s1956 = sld [smem:[#allocation2 + $0x51]]
        %v1957 = vstv %s1955
        %v1958 = vmul.f32 %v1957, %v1939
        %v1959 = vmul.f32 %v1957, %v1943
        %v1960 = vstv %s1956
        %v1961 = vmul.f32 %v1960, %v1948
        %v1962 = vmul.f32 %v1960, %v1952
        %v1963 = vadd.f32 %v1958, %v1961
        %v1964 = vadd.f32 %v1959, %v1962
        %v1967 = vcombine.low %v1963, %v1964
        %v1969 = vunpack.c.l.s4 1966171168
        %v1970 = vunpack.c.0.s8 %v1969
        %v1971 = vlaneseq
        %v1972 = vshrl.u32 %v1971, 7
        %v1973 = vsub.s32 %v1970, %v1972
        %v1974 = vrot.slane %v1967, %v1973
        %v1976 = vunpack.c.l.s4 1966171168
        %v1977 = vunpack.c.0.s8 %v1976
        %v1978 = vlaneseq
        %v1979 = vshrl.u32 %v1978, 7
        %v1980 = vsub.s32 %v1977, %v1979
        %v1981 = vrot.slane %v1974, %v1980
        %v1983 = vsel %vm1954, %v1981, 0.0
        %v1984 = vadd.f32 %v1933, %v1983
        %1985 = vrot.lane.b32.xlu0 %v244, 110
        %v1986 = vpop.permute.xlu0 %1985
        %1987 = vrot.lane.b32.xlu0 %v253, 110
        %v1988 = vpop.permute.xlu0 %1987
        %vm1989 = vcmask 900096
        %v1990 = vsel %vm1989, %v1986, %v1988
        %v1994 = vsel %vm1989, %v1988, %v1986
        %1995 = vrot.lane.b32.xlu0 %v272, 110
        %v1996 = vpop.permute.xlu0 %1995
        %1997 = vrot.lane.b32.xlu0 %v273, 110
        %v1998 = vpop.permute.xlu0 %1997
        %v1999 = vsel %vm1989, %v1996, %v1998
        %v2003 = vsel %vm1989, %v1998, %v1996
        %vm2004 = vmand %vm1748, %vm574
        %vm2005 = vmand %vm2004, %vm576
        %s2006 = sld [smem:[#allocation2 + $0x21]]
        %s2007 = sld [smem:[#allocation2 + $0x52]]
        %v2008 = vstv %s2006
        %v2009 = vmul.f32 %v2008, %v1990
        %v2010 = vmul.f32 %v2008, %v1994
        %v2011 = vstv %s2007
        %v2012 = vmul.f32 %v2011, %v1999
        %v2013 = vmul.f32 %v2011, %v2003
        %v2014 = vadd.f32 %v2009, %v2012
        %v2015 = vadd.f32 %v2010, %v2013
        %v2018 = vcombine.low %v2014, %v2015
        %v2020 = vunpack.c.l.s4 1966171168
        %v2021 = vunpack.c.0.s8 %v2020
        %v2022 = vlaneseq
        %v2023 = vshrl.u32 %v2022, 7
        %v2024 = vsub.s32 %v2021, %v2023
        %v2025 = vrot.slane %v2018, %v2024
        %v2027 = vunpack.c.l.s4 1966171168
        %v2028 = vunpack.c.0.s8 %v2027
        %v2029 = vlaneseq
        %v2030 = vshrl.u32 %v2029, 7
        %v2031 = vsub.s32 %v2028, %v2030
        %v2032 = vrot.slane %v2025, %v2031
        %v2034 = vsel %vm2005, %v2032, 0.0
        %v2035 = vadd.f32 %v1984, %v2034
        %2036 = vrot.lane.b32.xlu0 %v244, 109
        %v2037 = vpop.permute.xlu0 %2036
        %2038 = vrot.lane.b32.xlu0 %v253, 109
        %v2039 = vpop.permute.xlu0 %2038
        %vm2040 = vcmask 891904
        %v2041 = vsel %vm2040, %v2037, %v2039
        %v2045 = vsel %vm2040, %v2039, %v2037
        %2046 = vrot.lane.b32.xlu0 %v272, 109
        %v2047 = vpop.permute.xlu0 %2046
        %2048 = vrot.lane.b32.xlu0 %v273, 109
        %v2049 = vpop.permute.xlu0 %2048
        %v2050 = vsel %vm2040, %v2047, %v2049
        %v2054 = vsel %vm2040, %v2049, %v2047
        %vm2055 = vmand %vm1748, %vm628
        %vm2056 = vmand %vm2055, %vm630
        %s2057 = sld [smem:[#allocation2 + $0x22]]
        %s2058 = sld [smem:[#allocation2 + $0x53]]
        %v2059 = vstv %s2057
        %v2060 = vmul.f32 %v2059, %v2041
        %v2061 = vmul.f32 %v2059, %v2045
        %v2062 = vstv %s2058
        %v2063 = vmul.f32 %v2062, %v2050
        %v2064 = vmul.f32 %v2062, %v2054
        %v2065 = vadd.f32 %v2060, %v2063
        %v2066 = vadd.f32 %v2061, %v2064
        %v2069 = vcombine.low %v2065, %v2066
        %v2071 = vunpack.c.l.s4 1966171168
        %v2072 = vunpack.c.0.s8 %v2071
        %v2073 = vlaneseq
        %v2074 = vshrl.u32 %v2073, 7
        %v2075 = vsub.s32 %v2072, %v2074
        %v2076 = vrot.slane %v2069, %v2075
        %v2078 = vunpack.c.l.s4 1966171168
        %v2079 = vunpack.c.0.s8 %v2078
        %v2080 = vlaneseq
        %v2081 = vshrl.u32 %v2080, 7
        %v2082 = vsub.s32 %v2079, %v2081
        %v2083 = vrot.slane %v2076, %v2082
        %v2085 = vsel %vm2056, %v2083, 0.0
        %v2086 = vadd.f32 %v2035, %v2085
        %2087 = vrot.lane.b32.xlu0 %v244, 99
        %v2088 = vpop.permute.xlu0 %2087
        %2089 = vrot.lane.b32.xlu0 %v253, 99
        %v2090 = vpop.permute.xlu0 %2089
        %vm2091 = vcmask 809984
        %v2092 = vsel %vm2091, %v2088, %v2090
        %v2096 = vsel %vm2091, %v2090, %v2088
        %2097 = vrot.lane.b32.xlu0 %v272, 99
        %v2098 = vpop.permute.xlu0 %2097
        %2099 = vrot.lane.b32.xlu0 %v273, 99
        %v2100 = vpop.permute.xlu0 %2099
        %v2101 = vsel %vm2091, %v2098, %v2100
        %v2105 = vsel %vm2091, %v2100, %v2098
        %v2106 = vadd.f32 %v274, 2.0
        %vm2107 = vcmp.ge.f32.partialorder %v2106, 0.0
        %vm2108 = vcmp.le.f32.partialorder %v2106, 15.0
        %vm2109 = vmand %vm2107, %vm2108
        %vm2110 = vmand %vm2109, %vm304
        %vm2111 = vmand %vm2110, %vm306
        %s2112 = sld [smem:[#allocation2 + $0x23]]
        %s2113 = sld [smem:[#allocation2 + $0x54]]
        %v2114 = vstv %s2112
        %v2115 = vmul.f32 %v2114, %v2092
        %v2116 = vmul.f32 %v2114, %v2096
        %v2117 = vstv %s2113
        %v2118 = vmul.f32 %v2117, %v2101
        %v2119 = vmul.f32 %v2117, %v2105
        %v2120 = vadd.f32 %v2115, %v2118
        %v2121 = vadd.f32 %v2116, %v2119
        %v2124 = vcombine.low %v2120, %v2121
        %v2126 = vunpack.c.l.s4 1966171168
        %v2127 = vunpack.c.0.s8 %v2126
        %v2128 = vlaneseq
        %v2129 = vshrl.u32 %v2128, 7
        %v2130 = vsub.s32 %v2127, %v2129
        %v2131 = vrot.slane %v2124, %v2130
        %v2133 = vunpack.c.l.s4 1966171168
        %v2134 = vunpack.c.0.s8 %v2133
        %v2135 = vlaneseq
        %v2136 = vshrl.u32 %v2135, 7
        %v2137 = vsub.s32 %v2134, %v2136
        %v2138 = vrot.slane %v2131, %v2137
        %v2140 = vsel %vm2111, %v2138, 0.0
        %v2141 = vadd.f32 %v2086, %v2140
        %2142 = vrot.lane.b32.xlu0 %v244, 98
        %v2143 = vpop.permute.xlu0 %2142
        %2144 = vrot.lane.b32.xlu0 %v253, 98
        %v2145 = vpop.permute.xlu0 %2144
        %vm2146 = vcmask 801792
        %v2147 = vsel %vm2146, %v2143, %v2145
        %v2151 = vsel %vm2146, %v2145, %v2143
        %2152 = vrot.lane.b32.xlu0 %v272, 98
        %v2153 = vpop.permute.xlu0 %2152
        %2154 = vrot.lane.b32.xlu0 %v273, 98
        %v2155 = vpop.permute.xlu0 %2154
        %v2156 = vsel %vm2146, %v2153, %v2155
        %v2160 = vsel %vm2146, %v2155, %v2153
        %vm2161 = vmand %vm2109, %vm358
        %vm2162 = vmand %vm2161, %vm360
        %s2163 = sld [smem:[#allocation2 + $0x24]]
        %s2164 = sld [smem:[#allocation2 + $0x55]]
        %v2165 = vstv %s2163
        %v2166 = vmul.f32 %v2165, %v2147
        %v2167 = vmul.f32 %v2165, %v2151
        %v2168 = vstv %s2164
        %v2169 = vmul.f32 %v2168, %v2156
        %v2170 = vmul.f32 %v2168, %v2160
        %v2171 = vadd.f32 %v2166, %v2169
        %v2172 = vadd.f32 %v2167, %v2170
        %v2175 = vcombine.low %v2171, %v2172
        %v2177 = vunpack.c.l.s4 1966171168
        %v2178 = vunpack.c.0.s8 %v2177
        %v2179 = vlaneseq
        %v2180 = vshrl.u32 %v2179, 7
        %v2181 = vsub.s32 %v2178, %v2180
        %v2182 = vrot.slane %v2175, %v2181
        %v2184 = vunpack.c.l.s4 1966171168
        %v2185 = vunpack.c.0.s8 %v2184
        %v2186 = vlaneseq
        %v2187 = vshrl.u32 %v2186, 7
        %v2188 = vsub.s32 %v2185, %v2187
        %v2189 = vrot.slane %v2182, %v2188
        %v2191 = vsel %vm2162, %v2189, 0.0
        %v2192 = vadd.f32 %v2141, %v2191
        %2193 = vrot.lane.b32.xlu0 %v244, 97
        %v2194 = vpop.permute.xlu0 %2193
        %2195 = vrot.lane.b32.xlu0 %v253, 97
        %v2196 = vpop.permute.xlu0 %2195
        %vm2197 = vcmask 793600
        %v2198 = vsel %vm2197, %v2194, %v2196
        %v2202 = vsel %vm2197, %v2196, %v2194
        %2203 = vrot.lane.b32.xlu0 %v272, 97
        %v2204 = vpop.permute.xlu0 %2203
        %2205 = vrot.lane.b32.xlu0 %v273, 97
        %v2206 = vpop.permute.xlu0 %2205
        %v2207 = vsel %vm2197, %v2204, %v2206
        %v2211 = vsel %vm2197, %v2206, %v2204
        %vm2212 = vmand %vm2109, %vm412
        %vm2213 = vmand %vm2212, %vm414
        %s2214 = sld [smem:[#allocation2 + $0x25]]
        %s2215 = sld [smem:[#allocation2 + $0x56]]
        %v2216 = vstv %s2214
        %v2217 = vmul.f32 %v2216, %v2198
        %v2218 = vmul.f32 %v2216, %v2202
        %v2219 = vstv %s2215
        %v2220 = vmul.f32 %v2219, %v2207
        %v2221 = vmul.f32 %v2219, %v2211
        %v2222 = vadd.f32 %v2217, %v2220
        %v2223 = vadd.f32 %v2218, %v2221
        %v2226 = vcombine.low %v2222, %v2223
        %v2228 = vunpack.c.l.s4 1966171168
        %v2229 = vunpack.c.0.s8 %v2228
        %v2230 = vlaneseq
        %v2231 = vshrl.u32 %v2230, 7
        %v2232 = vsub.s32 %v2229, %v2231
        %v2233 = vrot.slane %v2226, %v2232
        %v2235 = vunpack.c.l.s4 1966171168
        %v2236 = vunpack.c.0.s8 %v2235
        %v2237 = vlaneseq
        %v2238 = vshrl.u32 %v2237, 7
        %v2239 = vsub.s32 %v2236, %v2238
        %v2240 = vrot.slane %v2233, %v2239
        %v2242 = vsel %vm2213, %v2240, 0.0
        %v2243 = vadd.f32 %v2192, %v2242
        %2244 = vrot.lane.b32.xlu0 %v244, 96
        %v2245 = vpop.permute.xlu0 %2244
        %2246 = vrot.lane.b32.xlu0 %v253, 96
        %v2247 = vpop.permute.xlu0 %2246
        %vm2248 = vcmask 785408
        %v2249 = vsel %vm2248, %v2245, %v2247
        %v2253 = vsel %vm2248, %v2247, %v2245
        %2254 = vrot.lane.b32.xlu0 %v272, 96
        %v2255 = vpop.permute.xlu0 %2254
        %2256 = vrot.lane.b32.xlu0 %v273, 96
        %v2257 = vpop.permute.xlu0 %2256
        %v2258 = vsel %vm2248, %v2255, %v2257
        %v2262 = vsel %vm2248, %v2257, %v2255
        %vm2263 = vmand %vm2109, %vm466
        %vm2264 = vmand %vm2263, %vm468
        %s2265 = sld [smem:[#allocation2 + $0x26]]
        %s2266 = sld [smem:[#allocation2 + $0x57]]
        %v2267 = vstv %s2265
        %v2268 = vmul.f32 %v2267, %v2249
        %v2269 = vmul.f32 %v2267, %v2253
        %v2270 = vstv %s2266
        %v2271 = vmul.f32 %v2270, %v2258
        %v2272 = vmul.f32 %v2270, %v2262
        %v2273 = vadd.f32 %v2268, %v2271
        %v2274 = vadd.f32 %v2269, %v2272
        %v2277 = vcombine.low %v2273, %v2274
        %v2279 = vunpack.c.l.s4 1966171168
        %v2280 = vunpack.c.0.s8 %v2279
        %v2281 = vlaneseq
        %v2282 = vshrl.u32 %v2281, 7
        %v2283 = vsub.s32 %v2280, %v2282
        %v2284 = vrot.slane %v2277, %v2283
        %v2286 = vunpack.c.l.s4 1966171168
        %v2287 = vunpack.c.0.s8 %v2286
        %v2288 = vlaneseq
        %v2289 = vshrl.u32 %v2288, 7
        %v2290 = vsub.s32 %v2287, %v2289
        %v2291 = vrot.slane %v2284, %v2290
        %v2293 = vsel %vm2264, %v2291, 0.0
        %v2294 = vadd.f32 %v2243, %v2293
        %2295 = vrot.lane.b32.xlu0 %v244, 95
        %v2296 = vpop.permute.xlu0 %2295
        %2297 = vrot.lane.b32.xlu0 %v253, 95
        %v2298 = vpop.permute.xlu0 %2297
        %vm2299 = vcmask 777216
        %v2300 = vsel %vm2299, %v2296, %v2298
        %v2304 = vsel %vm2299, %v2298, %v2296
        %2305 = vrot.lane.b32.xlu0 %v272, 95
        %v2306 = vpop.permute.xlu0 %2305
        %2307 = vrot.lane.b32.xlu0 %v273, 95
        %v2308 = vpop.permute.xlu0 %2307
        %v2309 = vsel %vm2299, %v2306, %v2308
        %v2313 = vsel %vm2299, %v2308, %v2306
        %vm2314 = vmand %vm2109, %vm520
        %vm2315 = vmand %vm2314, %vm522
        %s2316 = sld [smem:[#allocation2 + $0x27]]
        %s2317 = sld [smem:[#allocation2 + $0x58]]
        %v2318 = vstv %s2316
        %v2319 = vmul.f32 %v2318, %v2300
        %v2320 = vmul.f32 %v2318, %v2304
        %v2321 = vstv %s2317
        %v2322 = vmul.f32 %v2321, %v2309
        %v2323 = vmul.f32 %v2321, %v2313
        %v2324 = vadd.f32 %v2319, %v2322
        %v2325 = vadd.f32 %v2320, %v2323
        %v2328 = vcombine.low %v2324, %v2325
        %v2330 = vunpack.c.l.s4 1966171168
        %v2331 = vunpack.c.0.s8 %v2330
        %v2332 = vlaneseq
        %v2333 = vshrl.u32 %v2332, 7
        %v2334 = vsub.s32 %v2331, %v2333
        %v2335 = vrot.slane %v2328, %v2334
        %v2337 = vunpack.c.l.s4 1966171168
        %v2338 = vunpack.c.0.s8 %v2337
        %v2339 = vlaneseq
        %v2340 = vshrl.u32 %v2339, 7
        %v2341 = vsub.s32 %v2338, %v2340
        %v2342 = vrot.slane %v2335, %v2341
        %v2344 = vsel %vm2315, %v2342, 0.0
        %v2345 = vadd.f32 %v2294, %v2344
        %2346 = vrot.lane.b32.xlu0 %v244, 94
        %v2347 = vpop.permute.xlu0 %2346
        %2348 = vrot.lane.b32.xlu0 %v253, 94
        %v2349 = vpop.permute.xlu0 %2348
        %vm2350 = vcmask 769024
        %v2351 = vsel %vm2350, %v2347, %v2349
        %v2355 = vsel %vm2350, %v2349, %v2347
        %2356 = vrot.lane.b32.xlu0 %v272, 94
        %v2357 = vpop.permute.xlu0 %2356
        %2358 = vrot.lane.b32.xlu0 %v273, 94
        %v2359 = vpop.permute.xlu0 %2358
        %v2360 = vsel %vm2350, %v2357, %v2359
        %v2364 = vsel %vm2350, %v2359, %v2357
        %vm2365 = vmand %vm2109, %vm574
        %vm2366 = vmand %vm2365, %vm576
        %s2367 = sld [smem:[#allocation2 + $0x28]]
        %s2368 = sld [smem:[#allocation2 + $0x59]]
        %v2369 = vstv %s2367
        %v2370 = vmul.f32 %v2369, %v2351
        %v2371 = vmul.f32 %v2369, %v2355
        %v2372 = vstv %s2368
        %v2373 = vmul.f32 %v2372, %v2360
        %v2374 = vmul.f32 %v2372, %v2364
        %v2375 = vadd.f32 %v2370, %v2373
        %v2376 = vadd.f32 %v2371, %v2374
        %v2379 = vcombine.low %v2375, %v2376
        %v2381 = vunpack.c.l.s4 1966171168
        %v2382 = vunpack.c.0.s8 %v2381
        %v2383 = vlaneseq
        %v2384 = vshrl.u32 %v2383, 7
        %v2385 = vsub.s32 %v2382, %v2384
        %v2386 = vrot.slane %v2379, %v2385
        %v2388 = vunpack.c.l.s4 1966171168
        %v2389 = vunpack.c.0.s8 %v2388
        %v2390 = vlaneseq
        %v2391 = vshrl.u32 %v2390, 7
        %v2392 = vsub.s32 %v2389, %v2391
        %v2393 = vrot.slane %v2386, %v2392
        %v2395 = vsel %vm2366, %v2393, 0.0
        %v2396 = vadd.f32 %v2345, %v2395
        %2397 = vrot.lane.b32.xlu0 %v244, 93
        %v2398 = vpop.permute.xlu0 %2397
        %2399 = vrot.lane.b32.xlu0 %v253, 93
        %v2400 = vpop.permute.xlu0 %2399
        %vm2401 = vcmask 760832
        %v2402 = vsel %vm2401, %v2398, %v2400
        %v2406 = vsel %vm2401, %v2400, %v2398
        %2407 = vrot.lane.b32.xlu0 %v272, 93
        %v2408 = vpop.permute.xlu0 %2407
        %2409 = vrot.lane.b32.xlu0 %v273, 93
        %v2410 = vpop.permute.xlu0 %2409
        %v2411 = vsel %vm2401, %v2408, %v2410
        %v2415 = vsel %vm2401, %v2410, %v2408
        %vm2416 = vmand %vm2109, %vm628
        %vm2417 = vmand %vm2416, %vm630
        %s2418 = sld [smem:[#allocation2 + $0x29]]
        %s2419 = sld [smem:[#allocation2 + $0x5a]]
        %v2420 = vstv %s2418
        %v2421 = vmul.f32 %v2420, %v2402
        %v2422 = vmul.f32 %v2420, %v2406
        %v2423 = vstv %s2419
        %v2424 = vmul.f32 %v2423, %v2411
        %v2425 = vmul.f32 %v2423, %v2415
        %v2426 = vadd.f32 %v2421, %v2424
        %v2427 = vadd.f32 %v2422, %v2425
        %v2430 = vcombine.low %v2426, %v2427
        %v2432 = vunpack.c.l.s4 1966171168
        %v2433 = vunpack.c.0.s8 %v2432
        %v2434 = vlaneseq
        %v2435 = vshrl.u32 %v2434, 7
        %v2436 = vsub.s32 %v2433, %v2435
        %v2437 = vrot.slane %v2430, %v2436
        %v2439 = vunpack.c.l.s4 1966171168
        %v2440 = vunpack.c.0.s8 %v2439
        %v2441 = vlaneseq
        %v2442 = vshrl.u32 %v2441, 7
        %v2443 = vsub.s32 %v2440, %v2442
        %v2444 = vrot.slane %v2437, %v2443
        %v2446 = vsel %vm2417, %v2444, 0.0
        %v2447 = vadd.f32 %v2396, %v2446
        %2448 = vrot.lane.b32.xlu0 %v244, 83
        %v2449 = vpop.permute.xlu0 %2448
        %2450 = vrot.lane.b32.xlu0 %v253, 83
        %v2451 = vpop.permute.xlu0 %2450
        %vm2452 = vcmask 678912
        %v2453 = vsel %vm2452, %v2449, %v2451
        %v2457 = vsel %vm2452, %v2451, %v2449
        %2458 = vrot.lane.b32.xlu0 %v272, 83
        %v2459 = vpop.permute.xlu0 %2458
        %2460 = vrot.lane.b32.xlu0 %v273, 83
        %v2461 = vpop.permute.xlu0 %2460
        %v2462 = vsel %vm2452, %v2459, %v2461
        %v2466 = vsel %vm2452, %v2461, %v2459
        %v2467 = vadd.f32 %v274, 3.0
        %vm2468 = vcmp.ge.f32.partialorder %v2467, 0.0
        %vm2469 = vcmp.le.f32.partialorder %v2467, 15.0
        %vm2470 = vmand %vm2468, %vm2469
        %vm2471 = vmand %vm2470, %vm304
        %vm2472 = vmand %vm2471, %vm306
        %s2473 = sld [smem:[#allocation2 + $0x2a]]
        %s2474 = sld [smem:[#allocation2 + $0x5b]]
        %v2475 = vstv %s2473
        %v2476 = vmul.f32 %v2475, %v2453
        %v2477 = vmul.f32 %v2475, %v2457
        %v2478 = vstv %s2474
        %v2479 = vmul.f32 %v2478, %v2462
        %v2480 = vmul.f32 %v2478, %v2466
        %v2481 = vadd.f32 %v2476, %v2479
        %v2482 = vadd.f32 %v2477, %v2480
        %v2485 = vcombine.low %v2481, %v2482
        %v2487 = vunpack.c.l.s4 1966171168
        %v2488 = vunpack.c.0.s8 %v2487
        %v2489 = vlaneseq
        %v2490 = vshrl.u32 %v2489, 7
        %v2491 = vsub.s32 %v2488, %v2490
        %v2492 = vrot.slane %v2485, %v2491
        %v2494 = vunpack.c.l.s4 1966171168
        %v2495 = vunpack.c.0.s8 %v2494
        %v2496 = vlaneseq
        %v2497 = vshrl.u32 %v2496, 7
        %v2498 = vsub.s32 %v2495, %v2497
        %v2499 = vrot.slane %v2492, %v2498
        %v2501 = vsel %vm2472, %v2499, 0.0
        %v2502 = vadd.f32 %v2447, %v2501
        %2503 = vrot.lane.b32.xlu0 %v244, 82
        %v2504 = vpop.permute.xlu0 %2503
        %2505 = vrot.lane.b32.xlu0 %v253, 82
        %v2506 = vpop.permute.xlu0 %2505
        %vm2507 = vcmask 670720
        %v2508 = vsel %vm2507, %v2504, %v2506
        %v2512 = vsel %vm2507, %v2506, %v2504
        %2513 = vrot.lane.b32.xlu0 %v272, 82
        %v2514 = vpop.permute.xlu0 %2513
        %2515 = vrot.lane.b32.xlu0 %v273, 82
        %v2516 = vpop.permute.xlu0 %2515
        %v2517 = vsel %vm2507, %v2514, %v2516
        %v2521 = vsel %vm2507, %v2516, %v2514
        %vm2522 = vmand %vm2470, %vm358
        %vm2523 = vmand %vm2522, %vm360
        %s2524 = sld [smem:[#allocation2 + $0x2b]]
        %s2525 = sld [smem:[#allocation2 + $0x5c]]
        %v2526 = vstv %s2524
        %v2527 = vmul.f32 %v2526, %v2508
        %v2528 = vmul.f32 %v2526, %v2512
        %v2529 = vstv %s2525
        %v2530 = vmul.f32 %v2529, %v2517
        %v2531 = vmul.f32 %v2529, %v2521
        %v2532 = vadd.f32 %v2527, %v2530
        %v2533 = vadd.f32 %v2528, %v2531
        %v2536 = vcombine.low %v2532, %v2533
        %v2538 = vunpack.c.l.s4 1966171168
        %v2539 = vunpack.c.0.s8 %v2538
        %v2540 = vlaneseq
        %v2541 = vshrl.u32 %v2540, 7
        %v2542 = vsub.s32 %v2539, %v2541
        %v2543 = vrot.slane %v2536, %v2542
        %v2545 = vunpack.c.l.s4 1966171168
        %v2546 = vunpack.c.0.s8 %v2545
        %v2547 = vlaneseq
        %v2548 = vshrl.u32 %v2547, 7
        %v2549 = vsub.s32 %v2546, %v2548
        %v2550 = vrot.slane %v2543, %v2549
        %v2552 = vsel %vm2523, %v2550, 0.0
        %v2553 = vadd.f32 %v2502, %v2552
        %2554 = vrot.lane.b32.xlu0 %v244, 81
        %v2555 = vpop.permute.xlu0 %2554
        %2556 = vrot.lane.b32.xlu0 %v253, 81
        %v2557 = vpop.permute.xlu0 %2556
        %vm2558 = vcmask 662528
        %v2559 = vsel %vm2558, %v2555, %v2557
        %v2563 = vsel %vm2558, %v2557, %v2555
        %2564 = vrot.lane.b32.xlu0 %v272, 81
        %v2565 = vpop.permute.xlu0 %2564
        %2566 = vrot.lane.b32.xlu0 %v273, 81
        %v2567 = vpop.permute.xlu0 %2566
        %v2568 = vsel %vm2558, %v2565, %v2567
        %v2572 = vsel %vm2558, %v2567, %v2565
        %vm2573 = vmand %vm2470, %vm412
        %vm2574 = vmand %vm2573, %vm414
        %s2575 = sld [smem:[#allocation2 + $0x2c]]
        %s2576 = sld [smem:[#allocation2 + $0x5d]]
        %v2577 = vstv %s2575
        %v2578 = vmul.f32 %v2577, %v2559
        %v2579 = vmul.f32 %v2577, %v2563
        %v2580 = vstv %s2576
        %v2581 = vmul.f32 %v2580, %v2568
        %v2582 = vmul.f32 %v2580, %v2572
        %v2583 = vadd.f32 %v2578, %v2581
        %v2584 = vadd.f32 %v2579, %v2582
        %v2587 = vcombine.low %v2583, %v2584
        %v2589 = vunpack.c.l.s4 1966171168
        %v2590 = vunpack.c.0.s8 %v2589
        %v2591 = vlaneseq
        %v2592 = vshrl.u32 %v2591, 7
        %v2593 = vsub.s32 %v2590, %v2592
        %v2594 = vrot.slane %v2587, %v2593
        %v2596 = vunpack.c.l.s4 1966171168
        %v2597 = vunpack.c.0.s8 %v2596
        %v2598 = vlaneseq
        %v2599 = vshrl.u32 %v2598, 7
        %v2600 = vsub.s32 %v2597, %v2599
        %v2601 = vrot.slane %v2594, %v2600
        %v2603 = vsel %vm2574, %v2601, 0.0
        %v2604 = vadd.f32 %v2553, %v2603
        %2605 = vrot.lane.b32.xlu0 %v244, 80
        %v2606 = vpop.permute.xlu0 %2605
        %2607 = vrot.lane.b32.xlu0 %v253, 80
        %v2608 = vpop.permute.xlu0 %2607
        %vm2609 = vcmask 654336
        %v2610 = vsel %vm2609, %v2606, %v2608
        %v2614 = vsel %vm2609, %v2608, %v2606
        %2615 = vrot.lane.b32.xlu0 %v272, 80
        %v2616 = vpop.permute.xlu0 %2615
        %2617 = vrot.lane.b32.xlu0 %v273, 80
        %v2618 = vpop.permute.xlu0 %2617
        %v2619 = vsel %vm2609, %v2616, %v2618
        %v2623 = vsel %vm2609, %v2618, %v2616
        %vm2624 = vmand %vm2470, %vm466
        %vm2625 = vmand %vm2624, %vm468
        %s2626 = sld [smem:[#allocation2 + $0x2d]]
        %s2627 = sld [smem:[#allocation2 + $0x5e]]
        %v2628 = vstv %s2626
        %v2629 = vmul.f32 %v2628, %v2610
        %v2630 = vmul.f32 %v2628, %v2614
        %v2631 = vstv %s2627
        %v2632 = vmul.f32 %v2631, %v2619
        %v2633 = vmul.f32 %v2631, %v2623
        %v2634 = vadd.f32 %v2629, %v2632
        %v2635 = vadd.f32 %v2630, %v2633
        %v2638 = vcombine.low %v2634, %v2635
        %v2640 = vunpack.c.l.s4 1966171168
        %v2641 = vunpack.c.0.s8 %v2640
        %v2642 = vlaneseq
        %v2643 = vshrl.u32 %v2642, 7
        %v2644 = vsub.s32 %v2641, %v2643
        %v2645 = vrot.slane %v2638, %v2644
        %v2647 = vunpack.c.l.s4 1966171168
        %v2648 = vunpack.c.0.s8 %v2647
        %v2649 = vlaneseq
        %v2650 = vshrl.u32 %v2649, 7
        %v2651 = vsub.s32 %v2648, %v2650
        %v2652 = vrot.slane %v2645, %v2651
        %v2654 = vsel %vm2625, %v2652, 0.0
        %v2655 = vadd.f32 %v2604, %v2654
        %2656 = vrot.lane.b32.xlu0 %v244, 79
        %v2657 = vpop.permute.xlu0 %2656
        %2658 = vrot.lane.b32.xlu0 %v253, 79
        %v2659 = vpop.permute.xlu0 %2658
        %vm2660 = vcmask 646144
        %v2661 = vsel %vm2660, %v2657, %v2659
        %v2665 = vsel %vm2660, %v2659, %v2657
        %2666 = vrot.lane.b32.xlu0 %v272, 79
        %v2667 = vpop.permute.xlu0 %2666
        %2668 = vrot.lane.b32.xlu0 %v273, 79
        %v2669 = vpop.permute.xlu0 %2668
        %v2670 = vsel %vm2660, %v2667, %v2669
        %v2674 = vsel %vm2660, %v2669, %v2667
        %vm2675 = vmand %vm2470, %vm520
        %vm2676 = vmand %vm2675, %vm522
        %s2677 = sld [smem:[#allocation2 + $0x2e]]
        %s2678 = sld [smem:[#allocation2 + $0x5f]]
        %v2679 = vstv %s2677
        %v2680 = vmul.f32 %v2679, %v2661
        %v2681 = vmul.f32 %v2679, %v2665
        %v2682 = vstv %s2678
        %v2683 = vmul.f32 %v2682, %v2670
        %v2684 = vmul.f32 %v2682, %v2674
        %v2685 = vadd.f32 %v2680, %v2683
        %v2686 = vadd.f32 %v2681, %v2684
        %v2689 = vcombine.low %v2685, %v2686
        %v2691 = vunpack.c.l.s4 1966171168
        %v2692 = vunpack.c.0.s8 %v2691
        %v2693 = vlaneseq
        %v2694 = vshrl.u32 %v2693, 7
        %v2695 = vsub.s32 %v2692, %v2694
        %v2696 = vrot.slane %v2689, %v2695
        %v2698 = vunpack.c.l.s4 1966171168
        %v2699 = vunpack.c.0.s8 %v2698
        %v2700 = vlaneseq
        %v2701 = vshrl.u32 %v2700, 7
        %v2702 = vsub.s32 %v2699, %v2701
        %v2703 = vrot.slane %v2696, %v2702
        %v2705 = vsel %vm2676, %v2703, 0.0
        %v2706 = vadd.f32 %v2655, %v2705
        %2707 = vrot.lane.b32.xlu0 %v244, 78
        %v2708 = vpop.permute.xlu0 %2707
        %2709 = vrot.lane.b32.xlu0 %v253, 78
        %v2710 = vpop.permute.xlu0 %2709
        %vm2711 = vcmask 637952
        %v2712 = vsel %vm2711, %v2708, %v2710
        %v2716 = vsel %vm2711, %v2710, %v2708
        %2717 = vrot.lane.b32.xlu0 %v272, 78
        %v2718 = vpop.permute.xlu0 %2717
        %2719 = vrot.lane.b32.xlu0 %v273, 78
        %v2720 = vpop.permute.xlu0 %2719
        %v2721 = vsel %vm2711, %v2718, %v2720
        %v2725 = vsel %vm2711, %v2720, %v2718
        %vm2726 = vmand %vm2470, %vm574
        %vm2727 = vmand %vm2726, %vm576
        %s2728 = sld [smem:[#allocation2 + $0x2f]]
        %s2729 = sld [smem:[#allocation2 + $0x60]]
        %v2730 = vstv %s2728
        %v2731 = vmul.f32 %v2730, %v2712
        %v2732 = vmul.f32 %v2730, %v2716
        %v2733 = vstv %s2729
        %v2734 = vmul.f32 %v2733, %v2721
        %v2735 = vmul.f32 %v2733, %v2725
        %v2736 = vadd.f32 %v2731, %v2734
        %v2737 = vadd.f32 %v2732, %v2735
        %v2740 = vcombine.low %v2736, %v2737
        %v2742 = vunpack.c.l.s4 1966171168
        %v2743 = vunpack.c.0.s8 %v2742
        %v2744 = vlaneseq
        %v2745 = vshrl.u32 %v2744, 7
        %v2746 = vsub.s32 %v2743, %v2745
        %v2747 = vrot.slane %v2740, %v2746
        %v2749 = vunpack.c.l.s4 1966171168
        %v2750 = vunpack.c.0.s8 %v2749
        %v2751 = vlaneseq
        %v2752 = vshrl.u32 %v2751, 7
        %v2753 = vsub.s32 %v2750, %v2752
        %v2754 = vrot.slane %v2747, %v2753
        %v2756 = vsel %vm2727, %v2754, 0.0
        %v2757 = vadd.f32 %v2706, %v2756
        %2758 = vrot.lane.b32.xlu0 %v244, 77
        %v2759 = vpop.permute.xlu0 %2758
        %2760 = vrot.lane.b32.xlu0 %v253, 77
        %v2761 = vpop.permute.xlu0 %2760
        %vm2762 = vcmask 629760
        %v2763 = vsel %vm2762, %v2759, %v2761
        %v2767 = vsel %vm2762, %v2761, %v2759
        %2768 = vrot.lane.b32.xlu0 %v272, 77
        %v2769 = vpop.permute.xlu0 %2768
        %2770 = vrot.lane.b32.xlu0 %v273, 77
        %v2771 = vpop.permute.xlu0 %2770
        %v2772 = vsel %vm2762, %v2769, %v2771
        %v2776 = vsel %vm2762, %v2771, %v2769
        %vm2777 = vmand %vm2470, %vm628
        %vm2778 = vmand %vm2777, %vm630
        %s2779 = sld [smem:[#allocation2 + $0x30]]
        %s2780 = sld [smem:[#allocation2 + $0x61]]
        %v2781 = vstv %s2779
        %v2782 = vmul.f32 %v2781, %v2763
        %v2783 = vmul.f32 %v2781, %v2767
        %v2784 = vstv %s2780
        %v2785 = vmul.f32 %v2784, %v2772
        %v2786 = vmul.f32 %v2784, %v2776
        %v2787 = vadd.f32 %v2782, %v2785
        %v2788 = vadd.f32 %v2783, %v2786
        %v2791 = vcombine.low %v2787, %v2788
        %v2793 = vunpack.c.l.s4 1966171168
        %v2794 = vunpack.c.0.s8 %v2793
        %v2795 = vlaneseq
        %v2796 = vshrl.u32 %v2795, 7
        %v2797 = vsub.s32 %v2794, %v2796
        %v2798 = vrot.slane %v2791, %v2797
        %v2800 = vunpack.c.l.s4 1966171168
        %v2801 = vunpack.c.0.s8 %v2800
        %v2802 = vlaneseq
        %v2803 = vshrl.u32 %v2802, 7
        %v2804 = vsub.s32 %v2801, %v2803
        %v2805 = vrot.slane %v2798, %v2804
        %v2807 = vsel %vm2778, %v2805, 0.0
        %v2808 = vadd.f32 %v2757, %v2807
        %v2809 = vxor.u32 %v2808, 2147483648
        %v2810 = vmul.f32 %v2809, 1.442695
        %v2811 = vpow.pop %v2810
        %v2812 = vadd.f32 %v2811, 1.0
        %v2813 = vrcp.pop %v2812
        %v2814 = vmul.f32 1.0, %v2813
        %v2816 = vlaneseq
        %v2817 = vshrl.u32 %v2816, 7
        %v2818 = vsub.s32 0, %v2817
        %v2819 = vrot.slane %v2814, %v2818
        %v2820 = vlaneseq
        %v2821 = vshrl.u32 %v2820, 7
        %v2822 = vsub.s32 1, %v2821
        %v2823 = vrot.slane %v2814, %v2822
        %v2826 = vmul.f32 %v228, %v2819
        %v2827 = vmul.f32 %v229, %v2823
        %v2828 = vmul.f32 %v230, %v2819
        %v2829 = vmul.f32 %v231, %v2823
        %v2830 = vmul.f32 %v232, %v2819
        %v2831 = vmul.f32 %v233, %v2823
        %v2832 = vmul.f32 %v234, %v2819
        %v2833 = vmul.f32 %v235, %v2823
        %2834 = vst [vmem:[%s227] sm:$0xff] %v2826
        %2835 = vst [vmem:[%s227 + $0x8] sm:$0xff] %v2827
        %2836 = vst [vmem:[%s227 + $0x10] sm:$0xff] %v2828
        %2837 = vst [vmem:[%s227 + $0x18] sm:$0xff] %v2829
        %2838 = vst [vmem:[%s227 + $0x20] sm:$0xff] %v2830
        %2839 = vst [vmem:[%s227 + $0x28] sm:$0xff] %v2831
        %2840 = vst [vmem:[%s227 + $0x30] sm:$0xff] %v2832
        %2841 = vst [vmem:[%s227 + $0x38] sm:$0xff] %v2833
        %s2842 = sand.u32 %s119, 1
        %s2843 = scalar_lea.sflag [#allocation4], %s2842
        %s2844 = sand.u32 %s119, 1
        %s2845 = smul.addr %s2844, 64
        %s2846 = scalar_lea.vmem [#allocation7], %s2845
        // Predicated region
        $region45: #{tpu_custom_call.1} parent=35 // pred_check
          %p2847 = pneg %p129
        $region46: #{tpu_custom_call.1} parent=35 // pred_check_branch
          %2849 = sbr.rel (%p2847) target = $region48
        $region47: #{tpu_custom_call.1} parent=35 // pred_region
          %s2851 = ssub.s32 1024, 1024
          %2852 = vsyncadd %s2843, %s2851
          %s2853 = smul.addr %s22, 8
          %s2854 = smul.addr %s2853, 128
          %s2855 = scalar_lea.hbm %s4, %s2854
          %s2856 = sshll.u32 %s2846, 4
          %s2857 = int_to_ptr.vmem [resolvable:$true] %s2856
          %2862 = dma.vmem_to_hbm [thread:$0]  %s2857, 1024, %s2855, %s2843, 256, 256, 16
        $region48: #{tpu_custom_call.1} parent=35 // pred_fallthru
          _
      $region36: #{tpu_custom_call.1} parent=5 // pred_fallthru
        _
      %p2863 = scmp.le.s32.totalorder 2, %s17
      // Predicated region
      $region49: #{tpu_custom_call.1} parent=5 // pred_check
        %p2864 = pneg %p2863
      $region50: #{tpu_custom_call.1} parent=5 // pred_check_branch
        %2866 = sbr.rel (%p2864) target = $region52
      $region51: #{tpu_custom_call.1} parent=5 // pred_region
        %s2867 = ssub.s32 %s17, 2
        // Predicated region
        $region53: #{tpu_custom_call.1} parent=51 // pred_check
          %p2868 = pneg %p135
        $region54: #{tpu_custom_call.1} parent=51 // pred_check_branch
          %2870 = sbr.rel (%p2868) target = $region56
        $region55: #{tpu_custom_call.1} parent=51 // pred_region
          %s2871 = sand.u32 %s120, 1
          %s2872 = scalar_lea.sflag [#allocation4], %s2871
          %s2873 = sand.u32 %s120, 1
          %s2874 = smul.addr %s2873, 64
          %s2875 = scalar_lea.vmem [#allocation7], %s2874
          %2876 = dma.done %s2872, 1024
        $region56: #{tpu_custom_call.1} parent=51 // pred_fallthru
          _
      $region52: #{tpu_custom_call.1} parent=5 // pred_fallthru
        _
    $region6: #{tpu_custom_call.1} parent=1 // loop_footer
      %s21 = sadd.s32 1, %s17
    $region7: #{tpu_custom_call.1} parent=1 // loop_footer_branch
      %16 = sbr.rel target = $region3
    $region8: #{tpu_custom_call.1} parent=1 // loop_exit
      _
    %2877 = vsyncpa [#allocation3], 1
    %s2878 = scalar_lea.sflag [#allocation3], 1
    %2879 = vsyncpa %s2878, 1
    %2880 = vsyncpa [#allocation4], 1
    %s2881 = scalar_lea.sflag [#allocation4], 1
    %2882 = vsyncpa %s2881, 1
    %2883 = vsyncpa [#allocation5], 1
    %s2884 = scalar_lea.sflag [#allocation5], 1
    %2885 = vsyncpa %s2884, 1

</llo_original>
